<compile_context>
chip_gen: v7x
topology: tpu7x:2x2x1
jax: 0.10.0
libtpu: 0.0.40
codegen_flags: <defaults>
</compile_context>

<pallas_src>
import functools

import numpy as np
import jax
import jax.numpy as jnp
from jax.experimental import pallas as pl

BN_EPS = 1e-5
LAYERS = (1, 1, 1, 1)                 # `layers` constructor argument of SquiggleNet
LAYER_CHANNELS = (20, 30, 45, 67)
LAYER_STRIDES = (1, 2, 2, 2)
STEM_K, STEM_STRIDE, STEM_PAD, STEM_C = 19, 3, 5, 20
MXU_DTYPE = jnp.bfloat16              # matmul operand dtype (accumulation stays f32)


# ------------------------- static architecture plan -------------------------

def _layer_plan():
    """Static (cin, cout, stride, has_downsample) per Bottleneck block,
    mirroring SquiggleNet._make_layer with layers=LAYERS."""
    plan, chan = [], STEM_C
    for channels, stride, nblocks in zip(LAYER_CHANNELS, LAYER_STRIDES, LAYERS):
        has_ds = stride != 1 or chan != channels
        plan.append((chan, channels, stride, has_ds))
        if has_ds:
            chan = channels
        for _ in range(1, nblocks):
            plan.append((chan, channels, 1, False))
    return tuple(plan)


# ------------------------- the fused Pallas kernel -------------------------

def _squigglenet_kernel(*refs, cfg):
    """Entire SquiggleNet forward on VMEM-resident operands.

    `refs` = flat input refs (see squigglenet_forward for the exact order) followed
    by the single (1, B) output ref.  `cfg` is a static tuple of booleans telling,
    per Bottleneck block, whether it has a downsample branch.
    """
    it = iter(refs)
    p0_ref, w1c_ref, b1c_ref, pool_ref = next(it), next(it), next(it), next(it)

    # --- stem: Conv1d(1, 20, 19, padding=5, stride=3) + folded BN + ReLU ---
    h = jnp.dot(w1c_ref[...], p0_ref[...], preferred_element_type=jnp.float32)
    h = jnp.maximum(h + b1c_ref[...], 0.0)                      # (20, B*L1)

    # --- MaxPool1d(2, stride=2, padding=1) as max of two 0/1 selection matmuls.
    #     Post-ReLU activations are >= 0, so zero padding == -inf padding here. ---
    h = jnp.maximum(
        jnp.dot(h, pool_ref[0], preferred_element_type=jnp.float32),
        jnp.dot(h, pool_ref[1], preferred_element_type=jnp.float32))   # (20, B*L2)

    # --- Bottleneck blocks ---
    for has_ds in cfg:
        w1, b1, w2, b2, w3, b3, g = (next(it) for _ in range(7))
        wd, bd = (next(it), next(it)) if has_ds else (None, None)
        x = h
        # conv1x1 + BN + ReLU
        o = jnp.dot(w1[...], x.astype(MXU_DTYPE), preferred_element_type=jnp.float32)
        o = jnp.maximum(o + b1[...], 0.0)
        # conv(K=3, padding=1, stride folded into gather matrices) + BN + ReLU
        y = None
        for k in range(3):
            shifted = jnp.dot(o, g[k], preferred_element_type=jnp.float32)  # exact gather
            part = jnp.dot(w2[k], shifted.astype(MXU_DTYPE),
                           preferred_element_type=jnp.float32)
            y = part if y is None else y + part
        y = jnp.maximum(y + b2[...], 0.0)
        # conv1x1 + BN
        z = jnp.dot(w3[...], y.astype(MXU_DTYPE), preferred_element_type=jnp.float32)
        z = z + b3[...]
        # identity / downsample (1x1 conv with the block stride); the stride
        # subsampling is exactly the K=3 conv's centre-tap gather g[1].
        if has_ds:
            sel = jnp.dot(x, g[1], preferred_element_type=jnp.float32)
            idn = jnp.dot(wd[...], sel.astype(MXU_DTYPE),
                          preferred_element_type=jnp.float32) + bd[...]
        else:
            idn = x
        h = jnp.maximum(z + idn, 0.0)                           # residual add + ReLU

    # --- head: AdaptiveAvgPool1d(1) (averaging matmul) + Linear(67, 1)
    #     (VPU multiply + cross-sublane reduce instead of a wasteful 1x67 matmul). ---
    avg_ref, fcw_ref, fcb_ref, out_ref = next(it), next(it), next(it), next(it)
    pooled = jnp.dot(h, avg_ref[...], preferred_element_type=jnp.float32)   # (67, B)
    out_ref[...] = jnp.sum(fcw_ref[...] * pooled, axis=0, keepdims=True) + fcb_ref[...]


# ------------------------- wrapper-side glue -------------------------

def _conv1_patches(x, L_out):
    """(B, L) raw signal -> (K, B*L_out) im2col patches for the 1-channel stem conv."""
    xp = jnp.pad(x, ((0, 0), (STEM_PAD, STEM_PAD)))
    cols = [xp[:, k:k + STEM_STRIDE * (L_out - 1) + 1:STEM_STRIDE]
            for k in range(STEM_K)]                             # each (B, L_out)
    B = x.shape[0]
    return jnp.stack(cols, axis=0).reshape(STEM_K, B * L_out)


def _pool_select(B, L_in):
    """MaxPool1d(2, stride=2, padding=1): output j = max(in[2j-1], in[2j]) per batch,
    expressed as two (B*L_in, B*L_out) 0/1 selection matrices (zeros at the pads)."""
    L_out = (L_in + 2 - 2) // 2 + 1
    S = np.zeros((2, B * L_in, B * L_out), np.float32)
    for b in range(B):
        for j in range(L_out):
            for t, i in enumerate((2 * j - 1, 2 * j)):
                if 0 <= i < L_in:
                    S[t, b * L_in + i, b * L_out + j] = 1.0
    return jnp.asarray(S), L_out


def _conv3_gather(B, L_in, stride):
    """K=3, padding=1 conv: output j reads inputs stride*j + k - 1 (k=0,1,2); returns
    the three (B*L_in, B*L_out) 0/1 gather matrices (zeros at the pads)."""
    L_out = (L_in + 2 - 3) // stride + 1
    G = np.zeros((3, B * L_in, B * L_out), np.float32)
    for k in range(3):
        for b in range(B):
            for j in range(L_out):
                i = stride * j + k - 1
                if 0 <= i < L_in:
                    G[k, b * L_in + i, b * L_out + j] = 1.0
    return jnp.asarray(G), L_out


def _avg_select(B, L):
    """AdaptiveAvgPool1d(1): per-batch mean over L positions as a (B*L, B) matrix."""
    M = np.zeros((B * L, B), np.float32)
    for b in range(B):
        M[b * L:(b + 1) * L, b] = 1.0 / L
    return jnp.asarray(M)


def _fold_bn(w, conv_bias, bn):
    """Fold eval-mode BatchNorm1d into a Conv1d; returns (w_folded, bias_column)."""
    scale = bn["gamma"] / jnp.sqrt(bn["var"] + BN_EPS)          # (Cout,)
    shift = bn["beta"] - bn["mean"] * scale
    wf = w * scale[:, None, None]
    cb = jnp.zeros((w.shape[0],), jnp.float32) if conv_bias is None else conv_bias
    bias = (scale * cb + shift)[:, None]                        # (Cout, 1)
    return wf, bias


# ------------------------- parameters (deterministic, synthetic) -------------------------

def _kaiming_conv(key, cout, cin, k):
    # kaiming_normal_(mode='fan_out', nonlinearity='relu')
    fan_out = cout * k
    std = (2.0 / fan_out) ** 0.5
    return std * jax.random.normal(key, (cout, cin, k), jnp.float32)


def _init_bn(c):
    return dict(gamma=jnp.ones((c,), jnp.float32),
                beta=jnp.zeros((c,), jnp.float32),
                mean=jnp.zeros((c,), jnp.float32),
                var=jnp.ones((c,), jnp.float32))


def _init_bottleneck(key, cin, cout):
    k1, k2, k3 = jax.random.split(key, 3)
    return dict(
        c1_w=_kaiming_conv(k1, cin, cin, 1), bn1=_init_bn(cin),
        c2_w=_kaiming_conv(k2, cin, cin, 3), bn2=_init_bn(cin),
        c3_w=_kaiming_conv(k3, cout, cin, 1), bn3=_init_bn(cout),
    )


def init_params(key):
    it = iter(jax.random.split(key, 64))
    p = {}
    p["conv1_w"] = _kaiming_conv(next(it), STEM_C, 1, STEM_K)
    bound = 1.0 / (1 * STEM_K) ** 0.5
    p["conv1_b"] = jax.random.uniform(next(it), (STEM_C,), jnp.float32, -bound, bound)
    p["bn1"] = _init_bn(STEM_C)
    p["blocks"] = []
    for cin, cout, stride, has_ds in _layer_plan():
        blk = dict(params=_init_bottleneck(next(it), cin, cout), ds=None)
        if has_ds:
            blk["ds"] = dict(w=_kaiming_conv(next(it), cout, cin, 1), bn=_init_bn(cout))
        p["blocks"].append(blk)
    fb = 1.0 / 67 ** 0.5
    p["fc_w"] = jax.random.uniform(next(it), (1, 67), jnp.float32, -fb, fb)
    p["fc_b"] = jax.random.uniform(next(it), (1,), jnp.float32, -fb, fb)
    return p


# ------------------------- forward pass -------------------------

@jax.jit
def squigglenet_forward(params, x):
    """x: (B, L) raw 1-D signal (PyTorch forward does x.unsqueeze(1))."""
    B, L = x.shape
    x = x.astype(jnp.float32)
    plan = _layer_plan()

    inputs, cfg = [], []

    # stem operands: im2col patches + BN-folded conv1 weight/bias + pool selectors
    L1 = (L + 2 * STEM_PAD - STEM_K) // STEM_STRIDE + 1
    w1f, b1f = _fold_bn(params["conv1_w"], params["conv1_b"], params["bn1"])
    inputs.append(_conv1_patches(x, L1).astype(MXU_DTYPE))       # (19, B*L1)
    inputs.append(w1f.reshape(STEM_C, STEM_K).astype(MXU_DTYPE))  # (20, 19)
    inputs.append(b1f)                                            # (20, 1)  f32
    pool_sel, Lcur = _pool_select(B, L1)
    inputs.append(pool_sel)                                       # (2, B*L1, B*L2) f32

    # Bottleneck blocks (BN folded, weights as bf16, gather matrices as f32)
    for (cin, cout, stride, has_ds), blk in zip(plan, params["blocks"]):
        bp, ds = blk["params"], blk["ds"]
        w1, b1 = _fold_bn(bp["c1_w"], None, bp["bn1"])
        w2, b2 = _fold_bn(bp["c2_w"], None, bp["bn2"])
        w3, b3 = _fold_bn(bp["c3_w"], None, bp["bn3"])
        g, Lout = _conv3_gather(B, Lcur, stride)
        inputs += [w1[:, :, 0].astype(MXU_DTYPE), b1,
                   jnp.transpose(w2, (2, 0, 1)).astype(MXU_DTYPE), b2,
                   w3[:, :, 0].astype(MXU_DTYPE), b3,
                   g]
        if ds is not None:
            wd, bd = _fold_bn(ds["w"], None, ds["bn"])
            inputs += [wd[:, :, 0].astype(MXU_DTYPE), bd]
        cfg.append(ds is not None)
        Lcur = Lout

    # head operands
    inputs.append(_avg_select(B, Lcur))                           # (B*Lcur, B) f32
    inputs.append(params["fc_w"].reshape(-1, 1))                  # (67, 1) f32
    inputs.append(params["fc_b"].reshape(1, 1))                   # (1, 1)  f32

    kernel = functools.partial(_squigglenet_kernel, cfg=tuple(cfg))
    # Single grid-less pallas_call: every operand is a full-array VMEM block.
    out = pl.pallas_call(
        kernel,
        out_shape=jax.ShapeDtypeStruct((1, B), jnp.float32),
    )(*inputs)
    return out.reshape(B, 1)


if __name__ == "__main__":
    key = jax.random.PRNGKey(0)
    pkey, xkey = jax.random.split(key)
    params = init_params(pkey)
    x = jax.random.normal(xkey, (2, 200), jnp.float32)   # small: batch=2, signal length=200
    y = squigglenet_forward(params, x)
    y = jax.block_until_ready(y)
    assert y.shape == (2, 1)
    assert bool(jnp.all(jnp.isfinite(y)))
    print("KERNEL_OK")
</pallas_src>

<mosaic_0001>
module attributes {stable_mosaic.version = 11 : i64} {
  func.func @_squigglenet_kernel(%arg0: memref<19x128xbf16, #tpu.memory_space<vmem>>, %arg1: memref<20x19xbf16, #tpu.memory_space<vmem>>, %arg2: memref<20x1xf32, #tpu.memory_space<vmem>>, %arg3: memref<2x128x66xf32, #tpu.memory_space<vmem>>, %arg4: memref<20x20xbf16, #tpu.memory_space<vmem>>, %arg5: memref<20x1xf32, #tpu.memory_space<vmem>>, %arg6: memref<3x20x20xbf16, #tpu.memory_space<vmem>>, %arg7: memref<20x1xf32, #tpu.memory_space<vmem>>, %arg8: memref<20x20xbf16, #tpu.memory_space<vmem>>, %arg9: memref<20x1xf32, #tpu.memory_space<vmem>>, %arg10: memref<3x66x66xf32, #tpu.memory_space<vmem>>, %arg11: memref<20x20xbf16, #tpu.memory_space<vmem>>, %arg12: memref<20x1xf32, #tpu.memory_space<vmem>>, %arg13: memref<3x20x20xbf16, #tpu.memory_space<vmem>>, %arg14: memref<20x1xf32, #tpu.memory_space<vmem>>, %arg15: memref<30x20xbf16, #tpu.memory_space<vmem>>, %arg16: memref<30x1xf32, #tpu.memory_space<vmem>>, %arg17: memref<3x66x34xf32, #tpu.memory_space<vmem>>, %arg18: memref<30x20xbf16, #tpu.memory_space<vmem>>, %arg19: memref<30x1xf32, #tpu.memory_space<vmem>>, %arg20: memref<30x30xbf16, #tpu.memory_space<vmem>>, %arg21: memref<30x1xf32, #tpu.memory_space<vmem>>, %arg22: memref<3x30x30xbf16, #tpu.memory_space<vmem>>, %arg23: memref<30x1xf32, #tpu.memory_space<vmem>>, %arg24: memref<45x30xbf16, #tpu.memory_space<vmem>>, %arg25: memref<45x1xf32, #tpu.memory_space<vmem>>, %arg26: memref<3x34x18xf32, #tpu.memory_space<vmem>>, %arg27: memref<45x30xbf16, #tpu.memory_space<vmem>>, %arg28: memref<45x1xf32, #tpu.memory_space<vmem>>, %arg29: memref<45x45xbf16, #tpu.memory_space<vmem>>, %arg30: memref<45x1xf32, #tpu.memory_space<vmem>>, %arg31: memref<3x45x45xbf16, #tpu.memory_space<vmem>>, %arg32: memref<45x1xf32, #tpu.memory_space<vmem>>, %arg33: memref<67x45xbf16, #tpu.memory_space<vmem>>, %arg34: memref<67x1xf32, #tpu.memory_space<vmem>>, %arg35: memref<3x18x10xf32, #tpu.memory_space<vmem>>, %arg36: memref<67x45xbf16, #tpu.memory_space<vmem>>, %arg37: memref<67x1xf32, #tpu.memory_space<vmem>>, %arg38: memref<10x2xf32, #tpu.memory_space<vmem>>, %arg39: memref<67x1xf32, #tpu.memory_space<vmem>>, %arg40: memref<1x1xf32, #tpu.memory_space<vmem>>, %arg41: memref<1x2xf32, #tpu.memory_space<vmem>>) attributes {dimension_semantics = [], scalar_prefetch = 0 : i64, scratch_operands = 0 : i64, tpu.core_type = #tpu.core_type<tc>} {
    %c0 = arith.constant 0 : index
    %c0_0 = arith.constant 0 : index
    %0 = vector.load %arg1[%c0, %c0_0] : memref<20x19xbf16, #tpu.memory_space<vmem>>, vector<20x19xbf16>
    %c0_1 = arith.constant 0 : index
    %c0_2 = arith.constant 0 : index
    %1 = vector.load %arg0[%c0_1, %c0_2] : memref<19x128xbf16, #tpu.memory_space<vmem>>, vector<19x128xbf16>
    %cst = arith.constant dense<0.000000e+00> : vector<20x128xf32>
    %2 = tpu.matmul %0, %1, %cst {dimension_numbers = #tpu.dot_dimension_numbers<[1], [0], [0], [1], [0, 0, 1, 1], [], []>} : vector<20x19xbf16>, vector<19x128xbf16>, vector<20x128xf32> -> vector<20x128xf32>
    %c0_3 = arith.constant 0 : index
    %c0_4 = arith.constant 0 : index
    %3 = vector.load %arg2[%c0_3, %c0_4] : memref<20x1xf32, #tpu.memory_space<vmem>>, vector<20x1xf32>
    %4 = vector.broadcast %3 : vector<20x1xf32> to vector<20x128xf32>
    %5 = arith.addf %2, %4 : vector<20x128xf32>
    %cst_5 = arith.constant 0.000000e+00 : f32
    %6 = vector.broadcast %cst_5 : f32 to vector<20x128xf32>
    %7 = arith.maximumf %5, %6 : vector<20x128xf32>
    %c0_6 = arith.constant 0 : index
    %c0_7 = arith.constant 0 : index
    %c0_8 = arith.constant 0 : index
    %8 = vector.load %arg3[%c0_6, %c0_7, %c0_8] : memref<2x128x66xf32, #tpu.memory_space<vmem>>, vector<1x128x66xf32>
    %9 = vector.shape_cast %8 : vector<1x128x66xf32> to vector<128x66xf32>
    %cst_9 = arith.constant dense<0.000000e+00> : vector<20x66xf32>
    %10 = tpu.matmul %7, %9, %cst_9 {dimension_numbers = #tpu.dot_dimension_numbers<[1], [0], [0], [1], [0, 0, 1, 1], [], []>} : vector<20x128xf32>, vector<128x66xf32>, vector<20x66xf32> -> vector<20x66xf32>
    %c1 = arith.constant 1 : index
    %c0_10 = arith.constant 0 : index
    %c0_11 = arith.constant 0 : index
    %11 = vector.load %arg3[%c1, %c0_10, %c0_11] : memref<2x128x66xf32, #tpu.memory_space<vmem>>, vector<1x128x66xf32>
    %12 = vector.shape_cast %11 : vector<1x128x66xf32> to vector<128x66xf32>
    %cst_12 = arith.constant dense<0.000000e+00> : vector<20x66xf32>
    %13 = tpu.matmul %7, %12, %cst_12 {dimension_numbers = #tpu.dot_dimension_numbers<[1], [0], [0], [1], [0, 0, 1, 1], [], []>} : vector<20x128xf32>, vector<128x66xf32>, vector<20x66xf32> -> vector<20x66xf32>
    %14 = arith.maximumf %10, %13 : vector<20x66xf32>
    %c0_13 = arith.constant 0 : index
    %c0_14 = arith.constant 0 : index
    %15 = vector.load %arg4[%c0_13, %c0_14] : memref<20x20xbf16, #tpu.memory_space<vmem>>, vector<20x20xbf16>
    %16 = arith.truncf %14 : vector<20x66xf32> to vector<20x66xbf16>
    %cst_15 = arith.constant dense<0.000000e+00> : vector<20x66xf32>
    %17 = tpu.matmul %15, %16, %cst_15 {dimension_numbers = #tpu.dot_dimension_numbers<[1], [0], [0], [1], [0, 0, 1, 1], [], []>} : vector<20x20xbf16>, vector<20x66xbf16>, vector<20x66xf32> -> vector<20x66xf32>
    %c0_16 = arith.constant 0 : index
    %c0_17 = arith.constant 0 : index
    %18 = vector.load %arg5[%c0_16, %c0_17] : memref<20x1xf32, #tpu.memory_space<vmem>>, vector<20x1xf32>
    %19 = vector.broadcast %18 : vector<20x1xf32> to vector<20x66xf32>
    %20 = arith.addf %17, %19 : vector<20x66xf32>
    %cst_18 = arith.constant 0.000000e+00 : f32
    %21 = vector.broadcast %cst_18 : f32 to vector<20x66xf32>
    %22 = arith.maximumf %20, %21 : vector<20x66xf32>
    %c0_19 = arith.constant 0 : index
    %c0_20 = arith.constant 0 : index
    %c0_21 = arith.constant 0 : index
    %23 = vector.load %arg10[%c0_19, %c0_20, %c0_21] : memref<3x66x66xf32, #tpu.memory_space<vmem>>, vector<1x66x66xf32>
    %24 = vector.shape_cast %23 : vector<1x66x66xf32> to vector<66x66xf32>
    %cst_22 = arith.constant dense<0.000000e+00> : vector<20x66xf32>
    %25 = tpu.matmul %22, %24, %cst_22 {dimension_numbers = #tpu.dot_dimension_numbers<[1], [0], [0], [1], [0, 0, 1, 1], [], []>} : vector<20x66xf32>, vector<66x66xf32>, vector<20x66xf32> -> vector<20x66xf32>
    %c0_23 = arith.constant 0 : index
    %c0_24 = arith.constant 0 : index
    %c0_25 = arith.constant 0 : index
    %26 = vector.load %arg6[%c0_23, %c0_24, %c0_25] : memref<3x20x20xbf16, #tpu.memory_space<vmem>>, vector<1x20x20xbf16>
    %27 = vector.shape_cast %26 : vector<1x20x20xbf16> to vector<20x20xbf16>
    %28 = arith.truncf %25 : vector<20x66xf32> to vector<20x66xbf16>
    %cst_26 = arith.constant dense<0.000000e+00> : vector<20x66xf32>
    %29 = tpu.matmul %27, %28, %cst_26 {dimension_numbers = #tpu.dot_dimension_numbers<[1], [0], [0], [1], [0, 0, 1, 1], [], []>} : vector<20x20xbf16>, vector<20x66xbf16>, vector<20x66xf32> -> vector<20x66xf32>
    %c1_27 = arith.constant 1 : index
    %c0_28 = arith.constant 0 : index
    %c0_29 = arith.constant 0 : index
    %30 = vector.load %arg10[%c1_27, %c0_28, %c0_29] : memref<3x66x66xf32, #tpu.memory_space<vmem>>, vector<1x66x66xf32>
    %31 = vector.shape_cast %30 : vector<1x66x66xf32> to vector<66x66xf32>
    %cst_30 = arith.constant dense<0.000000e+00> : vector<20x66xf32>
    %32 = tpu.matmul %22, %31, %cst_30 {dimension_numbers = #tpu.dot_dimension_numbers<[1], [0], [0], [1], [0, 0, 1, 1], [], []>} : vector<20x66xf32>, vector<66x66xf32>, vector<20x66xf32> -> vector<20x66xf32>
    %c1_31 = arith.constant 1 : index
    %c0_32 = arith.constant 0 : index
    %c0_33 = arith.constant 0 : index
    %33 = vector.load %arg6[%c1_31, %c0_32, %c0_33] : memref<3x20x20xbf16, #tpu.memory_space<vmem>>, vector<1x20x20xbf16>
    %34 = vector.shape_cast %33 : vector<1x20x20xbf16> to vector<20x20xbf16>
    %35 = arith.truncf %32 : vector<20x66xf32> to vector<20x66xbf16>
    %cst_34 = arith.constant dense<0.000000e+00> : vector<20x66xf32>
    %36 = tpu.matmul %34, %35, %cst_34 {dimension_numbers = #tpu.dot_dimension_numbers<[1], [0], [0], [1], [0, 0, 1, 1], [], []>} : vector<20x20xbf16>, vector<20x66xbf16>, vector<20x66xf32> -> vector<20x66xf32>
    %37 = arith.addf %29, %36 : vector<20x66xf32>
    %c2 = arith.constant 2 : index
    %c0_35 = arith.constant 0 : index
    %c0_36 = arith.constant 0 : index
    %38 = vector.load %arg10[%c2, %c0_35, %c0_36] : memref<3x66x66xf32, #tpu.memory_space<vmem>>, vector<1x66x66xf32>
    %39 = vector.shape_cast %38 : vector<1x66x66xf32> to vector<66x66xf32>
    %cst_37 = arith.constant dense<0.000000e+00> : vector<20x66xf32>
    %40 = tpu.matmul %22, %39, %cst_37 {dimension_numbers = #tpu.dot_dimension_numbers<[1], [0], [0], [1], [0, 0, 1, 1], [], []>} : vector<20x66xf32>, vector<66x66xf32>, vector<20x66xf32> -> vector<20x66xf32>
    %c2_38 = arith.constant 2 : index
    %c0_39 = arith.constant 0 : index
    %c0_40 = arith.constant 0 : index
    %41 = vector.load %arg6[%c2_38, %c0_39, %c0_40] : memref<3x20x20xbf16, #tpu.memory_space<vmem>>, vector<1x20x20xbf16>
    %42 = vector.shape_cast %41 : vector<1x20x20xbf16> to vector<20x20xbf16>
    %43 = arith.truncf %40 : vector<20x66xf32> to vector<20x66xbf16>
    %cst_41 = arith.constant dense<0.000000e+00> : vector<20x66xf32>
    %44 = tpu.matmul %42, %43, %cst_41 {dimension_numbers = #tpu.dot_dimension_numbers<[1], [0], [0], [1], [0, 0, 1, 1], [], []>} : vector<20x20xbf16>, vector<20x66xbf16>, vector<20x66xf32> -> vector<20x66xf32>
    %45 = arith.addf %37, %44 : vector<20x66xf32>
    %c0_42 = arith.constant 0 : index
    %c0_43 = arith.constant 0 : index
    %46 = vector.load %arg7[%c0_42, %c0_43] : memref<20x1xf32, #tpu.memory_space<vmem>>, vector<20x1xf32>
    %47 = vector.broadcast %46 : vector<20x1xf32> to vector<20x66xf32>
    %48 = arith.addf %45, %47 : vector<20x66xf32>
    %cst_44 = arith.constant 0.000000e+00 : f32
    %49 = vector.broadcast %cst_44 : f32 to vector<20x66xf32>
    %50 = arith.maximumf %48, %49 : vector<20x66xf32>
    %c0_45 = arith.constant 0 : index
    %c0_46 = arith.constant 0 : index
    %51 = vector.load %arg8[%c0_45, %c0_46] : memref<20x20xbf16, #tpu.memory_space<vmem>>, vector<20x20xbf16>
    %52 = arith.truncf %50 : vector<20x66xf32> to vector<20x66xbf16>
    %cst_47 = arith.constant dense<0.000000e+00> : vector<20x66xf32>
    %53 = tpu.matmul %51, %52, %cst_47 {dimension_numbers = #tpu.dot_dimension_numbers<[1], [0], [0], [1], [0, 0, 1, 1], [], []>} : vector<20x20xbf16>, vector<20x66xbf16>, vector<20x66xf32> -> vector<20x66xf32>
    %c0_48 = arith.constant 0 : index
    %c0_49 = arith.constant 0 : index
    %54 = vector.load %arg9[%c0_48, %c0_49] : memref<20x1xf32, #tpu.memory_space<vmem>>, vector<20x1xf32>
    %55 = vector.broadcast %54 : vector<20x1xf32> to vector<20x66xf32>
    %56 = arith.addf %53, %55 : vector<20x66xf32>
    %57 = arith.addf %56, %14 : vector<20x66xf32>
    %cst_50 = arith.constant 0.000000e+00 : f32
    %58 = vector.broadcast %cst_50 : f32 to vector<20x66xf32>
    %59 = arith.maximumf %57, %58 : vector<20x66xf32>
    %c0_51 = arith.constant 0 : index
    %c0_52 = arith.constant 0 : index
    %60 = vector.load %arg11[%c0_51, %c0_52] : memref<20x20xbf16, #tpu.memory_space<vmem>>, vector<20x20xbf16>
    %61 = arith.truncf %59 : vector<20x66xf32> to vector<20x66xbf16>
    %cst_53 = arith.constant dense<0.000000e+00> : vector<20x66xf32>
    %62 = tpu.matmul %60, %61, %cst_53 {dimension_numbers = #tpu.dot_dimension_numbers<[1], [0], [0], [1], [0, 0, 1, 1], [], []>} : vector<20x20xbf16>, vector<20x66xbf16>, vector<20x66xf32> -> vector<20x66xf32>
    %c0_54 = arith.constant 0 : index
    %c0_55 = arith.constant 0 : index
    %63 = vector.load %arg12[%c0_54, %c0_55] : memref<20x1xf32, #tpu.memory_space<vmem>>, vector<20x1xf32>
    %64 = vector.broadcast %63 : vector<20x1xf32> to vector<20x66xf32>
    %65 = arith.addf %62, %64 : vector<20x66xf32>
    %cst_56 = arith.constant 0.000000e+00 : f32
    %66 = vector.broadcast %cst_56 : f32 to vector<20x66xf32>
    %67 = arith.maximumf %65, %66 : vector<20x66xf32>
    %c0_57 = arith.constant 0 : index
    %c0_58 = arith.constant 0 : index
    %c0_59 = arith.constant 0 : index
    %68 = vector.load %arg17[%c0_57, %c0_58, %c0_59] : memref<3x66x34xf32, #tpu.memory_space<vmem>>, vector<1x66x34xf32>
    %69 = vector.shape_cast %68 : vector<1x66x34xf32> to vector<66x34xf32>
    %cst_60 = arith.constant dense<0.000000e+00> : vector<20x34xf32>
    %70 = tpu.matmul %67, %69, %cst_60 {dimension_numbers = #tpu.dot_dimension_numbers<[1], [0], [0], [1], [0, 0, 1, 1], [], []>} : vector<20x66xf32>, vector<66x34xf32>, vector<20x34xf32> -> vector<20x34xf32>
    %c0_61 = arith.constant 0 : index
    %c0_62 = arith.constant 0 : index
    %c0_63 = arith.constant 0 : index
    %71 = vector.load %arg13[%c0_61, %c0_62, %c0_63] : memref<3x20x20xbf16, #tpu.memory_space<vmem>>, vector<1x20x20xbf16>
    %72 = vector.shape_cast %71 : vector<1x20x20xbf16> to vector<20x20xbf16>
    %73 = arith.truncf %70 : vector<20x34xf32> to vector<20x34xbf16>
    %cst_64 = arith.constant dense<0.000000e+00> : vector<20x34xf32>
    %74 = tpu.matmul %72, %73, %cst_64 {dimension_numbers = #tpu.dot_dimension_numbers<[1], [0], [0], [1], [0, 0, 1, 1], [], []>} : vector<20x20xbf16>, vector<20x34xbf16>, vector<20x34xf32> -> vector<20x34xf32>
    %c1_65 = arith.constant 1 : index
    %c0_66 = arith.constant 0 : index
    %c0_67 = arith.constant 0 : index
    %75 = vector.load %arg17[%c1_65, %c0_66, %c0_67] : memref<3x66x34xf32, #tpu.memory_space<vmem>>, vector<1x66x34xf32>
    %76 = vector.shape_cast %75 : vector<1x66x34xf32> to vector<66x34xf32>
    %cst_68 = arith.constant dense<0.000000e+00> : vector<20x34xf32>
    %77 = tpu.matmul %67, %76, %cst_68 {dimension_numbers = #tpu.dot_dimension_numbers<[1], [0], [0], [1], [0, 0, 1, 1], [], []>} : vector<20x66xf32>, vector<66x34xf32>, vector<20x34xf32> -> vector<20x34xf32>
    %c1_69 = arith.constant 1 : index
    %c0_70 = arith.constant 0 : index
    %c0_71 = arith.constant 0 : index
    %78 = vector.load %arg13[%c1_69, %c0_70, %c0_71] : memref<3x20x20xbf16, #tpu.memory_space<vmem>>, vector<1x20x20xbf16>
    %79 = vector.shape_cast %78 : vector<1x20x20xbf16> to vector<20x20xbf16>
    %80 = arith.truncf %77 : vector<20x34xf32> to vector<20x34xbf16>
    %cst_72 = arith.constant dense<0.000000e+00> : vector<20x34xf32>
    %81 = tpu.matmul %79, %80, %cst_72 {dimension_numbers = #tpu.dot_dimension_numbers<[1], [0], [0], [1], [0, 0, 1, 1], [], []>} : vector<20x20xbf16>, vector<20x34xbf16>, vector<20x34xf32> -> vector<20x34xf32>
    %82 = arith.addf %74, %81 : vector<20x34xf32>
    %c2_73 = arith.constant 2 : index
    %c0_74 = arith.constant 0 : index
    %c0_75 = arith.constant 0 : index
    %83 = vector.load %arg17[%c2_73, %c0_74, %c0_75] : memref<3x66x34xf32, #tpu.memory_space<vmem>>, vector<1x66x34xf32>
    %84 = vector.shape_cast %83 : vector<1x66x34xf32> to vector<66x34xf32>
    %cst_76 = arith.constant dense<0.000000e+00> : vector<20x34xf32>
    %85 = tpu.matmul %67, %84, %cst_76 {dimension_numbers = #tpu.dot_dimension_numbers<[1], [0], [0], [1], [0, 0, 1, 1], [], []>} : vector<20x66xf32>, vector<66x34xf32>, vector<20x34xf32> -> vector<20x34xf32>
    %c2_77 = arith.constant 2 : index
    %c0_78 = arith.constant 0 : index
    %c0_79 = arith.constant 0 : index
    %86 = vector.load %arg13[%c2_77, %c0_78, %c0_79] : memref<3x20x20xbf16, #tpu.memory_space<vmem>>, vector<1x20x20xbf16>
    %87 = vector.shape_cast %86 : vector<1x20x20xbf16> to vector<20x20xbf16>
    %88 = arith.truncf %85 : vector<20x34xf32> to vector<20x34xbf16>
    %cst_80 = arith.constant dense<0.000000e+00> : vector<20x34xf32>
    %89 = tpu.matmul %87, %88, %cst_80 {dimension_numbers = #tpu.dot_dimension_numbers<[1], [0], [0], [1], [0, 0, 1, 1], [], []>} : vector<20x20xbf16>, vector<20x34xbf16>, vector<20x34xf32> -> vector<20x34xf32>
    %90 = arith.addf %82, %89 : vector<20x34xf32>
    %c0_81 = arith.constant 0 : index
    %c0_82 = arith.constant 0 : index
    %91 = vector.load %arg14[%c0_81, %c0_82] : memref<20x1xf32, #tpu.memory_space<vmem>>, vector<20x1xf32>
    %92 = vector.broadcast %91 : vector<20x1xf32> to vector<20x34xf32>
    %93 = arith.addf %90, %92 : vector<20x34xf32>
    %cst_83 = arith.constant 0.000000e+00 : f32
    %94 = vector.broadcast %cst_83 : f32 to vector<20x34xf32>
    %95 = arith.maximumf %93, %94 : vector<20x34xf32>
    %c0_84 = arith.constant 0 : index
    %c0_85 = arith.constant 0 : index
    %96 = vector.load %arg15[%c0_84, %c0_85] : memref<30x20xbf16, #tpu.memory_space<vmem>>, vector<30x20xbf16>
    %97 = arith.truncf %95 : vector<20x34xf32> to vector<20x34xbf16>
    %cst_86 = arith.constant dense<0.000000e+00> : vector<30x34xf32>
    %98 = tpu.matmul %96, %97, %cst_86 {dimension_numbers = #tpu.dot_dimension_numbers<[1], [0], [0], [1], [0, 0, 1, 1], [], []>} : vector<30x20xbf16>, vector<20x34xbf16>, vector<30x34xf32> -> vector<30x34xf32>
    %c0_87 = arith.constant 0 : index
    %c0_88 = arith.constant 0 : index
    %99 = vector.load %arg16[%c0_87, %c0_88] : memref<30x1xf32, #tpu.memory_space<vmem>>, vector<30x1xf32>
    %100 = vector.broadcast %99 : vector<30x1xf32> to vector<30x34xf32>
    %101 = arith.addf %98, %100 : vector<30x34xf32>
    %c1_89 = arith.constant 1 : index
    %c0_90 = arith.constant 0 : index
    %c0_91 = arith.constant 0 : index
    %102 = vector.load %arg17[%c1_89, %c0_90, %c0_91] : memref<3x66x34xf32, #tpu.memory_space<vmem>>, vector<1x66x34xf32>
    %103 = vector.shape_cast %102 : vector<1x66x34xf32> to vector<66x34xf32>
    %cst_92 = arith.constant dense<0.000000e+00> : vector<20x34xf32>
    %104 = tpu.matmul %59, %103, %cst_92 {dimension_numbers = #tpu.dot_dimension_numbers<[1], [0], [0], [1], [0, 0, 1, 1], [], []>} : vector<20x66xf32>, vector<66x34xf32>, vector<20x34xf32> -> vector<20x34xf32>
    %c0_93 = arith.constant 0 : index
    %c0_94 = arith.constant 0 : index
    %105 = vector.load %arg18[%c0_93, %c0_94] : memref<30x20xbf16, #tpu.memory_space<vmem>>, vector<30x20xbf16>
    %106 = arith.truncf %104 : vector<20x34xf32> to vector<20x34xbf16>
    %cst_95 = arith.constant dense<0.000000e+00> : vector<30x34xf32>
    %107 = tpu.matmul %105, %106, %cst_95 {dimension_numbers = #tpu.dot_dimension_numbers<[1], [0], [0], [1], [0, 0, 1, 1], [], []>} : vector<30x20xbf16>, vector<20x34xbf16>, vector<30x34xf32> -> vector<30x34xf32>
    %c0_96 = arith.constant 0 : index
    %c0_97 = arith.constant 0 : index
    %108 = vector.load %arg19[%c0_96, %c0_97] : memref<30x1xf32, #tpu.memory_space<vmem>>, vector<30x1xf32>
    %109 = vector.broadcast %108 : vector<30x1xf32> to vector<30x34xf32>
    %110 = arith.addf %107, %109 : vector<30x34xf32>
    %111 = arith.addf %101, %110 : vector<30x34xf32>
    %cst_98 = arith.constant 0.000000e+00 : f32
    %112 = vector.broadcast %cst_98 : f32 to vector<30x34xf32>
    %113 = arith.maximumf %111, %112 : vector<30x34xf32>
    %c0_99 = arith.constant 0 : index
    %c0_100 = arith.constant 0 : index
    %114 = vector.load %arg20[%c0_99, %c0_100] : memref<30x30xbf16, #tpu.memory_space<vmem>>, vector<30x30xbf16>
    %115 = arith.truncf %113 : vector<30x34xf32> to vector<30x34xbf16>
    %cst_101 = arith.constant dense<0.000000e+00> : vector<30x34xf32>
    %116 = tpu.matmul %114, %115, %cst_101 {dimension_numbers = #tpu.dot_dimension_numbers<[1], [0], [0], [1], [0, 0, 1, 1], [], []>} : vector<30x30xbf16>, vector<30x34xbf16>, vector<30x34xf32> -> vector<30x34xf32>
    %c0_102 = arith.constant 0 : index
    %c0_103 = arith.constant 0 : index
    %117 = vector.load %arg21[%c0_102, %c0_103] : memref<30x1xf32, #tpu.memory_space<vmem>>, vector<30x1xf32>
    %118 = vector.broadcast %117 : vector<30x1xf32> to vector<30x34xf32>
    %119 = arith.addf %116, %118 : vector<30x34xf32>
    %cst_104 = arith.constant 0.000000e+00 : f32
    %120 = vector.broadcast %cst_104 : f32 to vector<30x34xf32>
    %121 = arith.maximumf %119, %120 : vector<30x34xf32>
    %c0_105 = arith.constant 0 : index
    %c0_106 = arith.constant 0 : index
    %c0_107 = arith.constant 0 : index
    %122 = vector.load %arg26[%c0_105, %c0_106, %c0_107] : memref<3x34x18xf32, #tpu.memory_space<vmem>>, vector<1x34x18xf32>
    %123 = vector.shape_cast %122 : vector<1x34x18xf32> to vector<34x18xf32>
    %cst_108 = arith.constant dense<0.000000e+00> : vector<30x18xf32>
    %124 = tpu.matmul %121, %123, %cst_108 {dimension_numbers = #tpu.dot_dimension_numbers<[1], [0], [0], [1], [0, 0, 1, 1], [], []>} : vector<30x34xf32>, vector<34x18xf32>, vector<30x18xf32> -> vector<30x18xf32>
    %c0_109 = arith.constant 0 : index
    %c0_110 = arith.constant 0 : index
    %c0_111 = arith.constant 0 : index
    %125 = vector.load %arg22[%c0_109, %c0_110, %c0_111] : memref<3x30x30xbf16, #tpu.memory_space<vmem>>, vector<1x30x30xbf16>
    %126 = vector.shape_cast %125 : vector<1x30x30xbf16> to vector<30x30xbf16>
    %127 = arith.truncf %124 : vector<30x18xf32> to vector<30x18xbf16>
    %cst_112 = arith.constant dense<0.000000e+00> : vector<30x18xf32>
    %128 = tpu.matmul %126, %127, %cst_112 {dimension_numbers = #tpu.dot_dimension_numbers<[1], [0], [0], [1], [0, 0, 1, 1], [], []>} : vector<30x30xbf16>, vector<30x18xbf16>, vector<30x18xf32> -> vector<30x18xf32>
    %c1_113 = arith.constant 1 : index
    %c0_114 = arith.constant 0 : index
    %c0_115 = arith.constant 0 : index
    %129 = vector.load %arg26[%c1_113, %c0_114, %c0_115] : memref<3x34x18xf32, #tpu.memory_space<vmem>>, vector<1x34x18xf32>
    %130 = vector.shape_cast %129 : vector<1x34x18xf32> to vector<34x18xf32>
    %cst_116 = arith.constant dense<0.000000e+00> : vector<30x18xf32>
    %131 = tpu.matmul %121, %130, %cst_116 {dimension_numbers = #tpu.dot_dimension_numbers<[1], [0], [0], [1], [0, 0, 1, 1], [], []>} : vector<30x34xf32>, vector<34x18xf32>, vector<30x18xf32> -> vector<30x18xf32>
    %c1_117 = arith.constant 1 : index
    %c0_118 = arith.constant 0 : index
    %c0_119 = arith.constant 0 : index
    %132 = vector.load %arg22[%c1_117, %c0_118, %c0_119] : memref<3x30x30xbf16, #tpu.memory_space<vmem>>, vector<1x30x30xbf16>
    %133 = vector.shape_cast %132 : vector<1x30x30xbf16> to vector<30x30xbf16>
    %134 = arith.truncf %131 : vector<30x18xf32> to vector<30x18xbf16>
    %cst_120 = arith.constant dense<0.000000e+00> : vector<30x18xf32>
    %135 = tpu.matmul %133, %134, %cst_120 {dimension_numbers = #tpu.dot_dimension_numbers<[1], [0], [0], [1], [0, 0, 1, 1], [], []>} : vector<30x30xbf16>, vector<30x18xbf16>, vector<30x18xf32> -> vector<30x18xf32>
    %136 = arith.addf %128, %135 : vector<30x18xf32>
    %c2_121 = arith.constant 2 : index
    %c0_122 = arith.constant 0 : index
    %c0_123 = arith.constant 0 : index
    %137 = vector.load %arg26[%c2_121, %c0_122, %c0_123] : memref<3x34x18xf32, #tpu.memory_space<vmem>>, vector<1x34x18xf32>
    %138 = vector.shape_cast %137 : vector<1x34x18xf32> to vector<34x18xf32>
    %cst_124 = arith.constant dense<0.000000e+00> : vector<30x18xf32>
    %139 = tpu.matmul %121, %138, %cst_124 {dimension_numbers = #tpu.dot_dimension_numbers<[1], [0], [0], [1], [0, 0, 1, 1], [], []>} : vector<30x34xf32>, vector<34x18xf32>, vector<30x18xf32> -> vector<30x18xf32>
    %c2_125 = arith.constant 2 : index
    %c0_126 = arith.constant 0 : index
    %c0_127 = arith.constant 0 : index
    %140 = vector.load %arg22[%c2_125, %c0_126, %c0_127] : memref<3x30x30xbf16, #tpu.memory_space<vmem>>, vector<1x30x30xbf16>
    %141 = vector.shape_cast %140 : vector<1x30x30xbf16> to vector<30x30xbf16>
    %142 = arith.truncf %139 : vector<30x18xf32> to vector<30x18xbf16>
    %cst_128 = arith.constant dense<0.000000e+00> : vector<30x18xf32>
    %143 = tpu.matmul %141, %142, %cst_128 {dimension_numbers = #tpu.dot_dimension_numbers<[1], [0], [0], [1], [0, 0, 1, 1], [], []>} : vector<30x30xbf16>, vector<30x18xbf16>, vector<30x18xf32> -> vector<30x18xf32>
    %144 = arith.addf %136, %143 : vector<30x18xf32>
    %c0_129 = arith.constant 0 : index
    %c0_130 = arith.constant 0 : index
    %145 = vector.load %arg23[%c0_129, %c0_130] : memref<30x1xf32, #tpu.memory_space<vmem>>, vector<30x1xf32>
    %146 = vector.broadcast %145 : vector<30x1xf32> to vector<30x18xf32>
    %147 = arith.addf %144, %146 : vector<30x18xf32>
    %cst_131 = arith.constant 0.000000e+00 : f32
    %148 = vector.broadcast %cst_131 : f32 to vector<30x18xf32>
    %149 = arith.maximumf %147, %148 : vector<30x18xf32>
    %c0_132 = arith.constant 0 : index
    %c0_133 = arith.constant 0 : index
    %150 = vector.load %arg24[%c0_132, %c0_133] : memref<45x30xbf16, #tpu.memory_space<vmem>>, vector<45x30xbf16>
    %151 = arith.truncf %149 : vector<30x18xf32> to vector<30x18xbf16>
    %cst_134 = arith.constant dense<0.000000e+00> : vector<45x18xf32>
    %152 = tpu.matmul %150, %151, %cst_134 {dimension_numbers = #tpu.dot_dimension_numbers<[1], [0], [0], [1], [0, 0, 1, 1], [], []>} : vector<45x30xbf16>, vector<30x18xbf16>, vector<45x18xf32> -> vector<45x18xf32>
    %c0_135 = arith.constant 0 : index
    %c0_136 = arith.constant 0 : index
    %153 = vector.load %arg25[%c0_135, %c0_136] : memref<45x1xf32, #tpu.memory_space<vmem>>, vector<45x1xf32>
    %154 = vector.broadcast %153 : vector<45x1xf32> to vector<45x18xf32>
    %155 = arith.addf %152, %154 : vector<45x18xf32>
    %c1_137 = arith.constant 1 : index
    %c0_138 = arith.constant 0 : index
    %c0_139 = arith.constant 0 : index
    %156 = vector.load %arg26[%c1_137, %c0_138, %c0_139] : memref<3x34x18xf32, #tpu.memory_space<vmem>>, vector<1x34x18xf32>
    %157 = vector.shape_cast %156 : vector<1x34x18xf32> to vector<34x18xf32>
    %cst_140 = arith.constant dense<0.000000e+00> : vector<30x18xf32>
    %158 = tpu.matmul %113, %157, %cst_140 {dimension_numbers = #tpu.dot_dimension_numbers<[1], [0], [0], [1], [0, 0, 1, 1], [], []>} : vector<30x34xf32>, vector<34x18xf32>, vector<30x18xf32> -> vector<30x18xf32>
    %c0_141 = arith.constant 0 : index
    %c0_142 = arith.constant 0 : index
    %159 = vector.load %arg27[%c0_141, %c0_142] : memref<45x30xbf16, #tpu.memory_space<vmem>>, vector<45x30xbf16>
    %160 = arith.truncf %158 : vector<30x18xf32> to vector<30x18xbf16>
    %cst_143 = arith.constant dense<0.000000e+00> : vector<45x18xf32>
    %161 = tpu.matmul %159, %160, %cst_143 {dimension_numbers = #tpu.dot_dimension_numbers<[1], [0], [0], [1], [0, 0, 1, 1], [], []>} : vector<45x30xbf16>, vector<30x18xbf16>, vector<45x18xf32> -> vector<45x18xf32>
    %c0_144 = arith.constant 0 : index
    %c0_145 = arith.constant 0 : index
    %162 = vector.load %arg28[%c0_144, %c0_145] : memref<45x1xf32, #tpu.memory_space<vmem>>, vector<45x1xf32>
    %163 = vector.broadcast %162 : vector<45x1xf32> to vector<45x18xf32>
    %164 = arith.addf %161, %163 : vector<45x18xf32>
    %165 = arith.addf %155, %164 : vector<45x18xf32>
    %cst_146 = arith.constant 0.000000e+00 : f32
    %166 = vector.broadcast %cst_146 : f32 to vector<45x18xf32>
    %167 = arith.maximumf %165, %166 : vector<45x18xf32>
    %c0_147 = arith.constant 0 : index
    %c0_148 = arith.constant 0 : index
    %168 = vector.load %arg29[%c0_147, %c0_148] : memref<45x45xbf16, #tpu.memory_space<vmem>>, vector<45x45xbf16>
    %169 = arith.truncf %167 : vector<45x18xf32> to vector<45x18xbf16>
    %cst_149 = arith.constant dense<0.000000e+00> : vector<45x18xf32>
    %170 = tpu.matmul %168, %169, %cst_149 {dimension_numbers = #tpu.dot_dimension_numbers<[1], [0], [0], [1], [0, 0, 1, 1], [], []>} : vector<45x45xbf16>, vector<45x18xbf16>, vector<45x18xf32> -> vector<45x18xf32>
    %c0_150 = arith.constant 0 : index
    %c0_151 = arith.constant 0 : index
    %171 = vector.load %arg30[%c0_150, %c0_151] : memref<45x1xf32, #tpu.memory_space<vmem>>, vector<45x1xf32>
    %172 = vector.broadcast %171 : vector<45x1xf32> to vector<45x18xf32>
    %173 = arith.addf %170, %172 : vector<45x18xf32>
    %cst_152 = arith.constant 0.000000e+00 : f32
    %174 = vector.broadcast %cst_152 : f32 to vector<45x18xf32>
    %175 = arith.maximumf %173, %174 : vector<45x18xf32>
    %c0_153 = arith.constant 0 : index
    %c0_154 = arith.constant 0 : index
    %c0_155 = arith.constant 0 : index
    %176 = vector.load %arg35[%c0_153, %c0_154, %c0_155] : memref<3x18x10xf32, #tpu.memory_space<vmem>>, vector<1x18x10xf32>
    %177 = vector.shape_cast %176 : vector<1x18x10xf32> to vector<18x10xf32>
    %cst_156 = arith.constant dense<0.000000e+00> : vector<45x10xf32>
    %178 = tpu.matmul %175, %177, %cst_156 {dimension_numbers = #tpu.dot_dimension_numbers<[1], [0], [0], [1], [0, 0, 1, 1], [], []>} : vector<45x18xf32>, vector<18x10xf32>, vector<45x10xf32> -> vector<45x10xf32>
    %c0_157 = arith.constant 0 : index
    %c0_158 = arith.constant 0 : index
    %c0_159 = arith.constant 0 : index
    %179 = vector.load %arg31[%c0_157, %c0_158, %c0_159] : memref<3x45x45xbf16, #tpu.memory_space<vmem>>, vector<1x45x45xbf16>
    %180 = vector.shape_cast %179 : vector<1x45x45xbf16> to vector<45x45xbf16>
    %181 = arith.truncf %178 : vector<45x10xf32> to vector<45x10xbf16>
    %cst_160 = arith.constant dense<0.000000e+00> : vector<45x10xf32>
    %182 = tpu.matmul %180, %181, %cst_160 {dimension_numbers = #tpu.dot_dimension_numbers<[1], [0], [0], [1], [0, 0, 1, 1], [], []>} : vector<45x45xbf16>, vector<45x10xbf16>, vector<45x10xf32> -> vector<45x10xf32>
    %c1_161 = arith.constant 1 : index
    %c0_162 = arith.constant 0 : index
    %c0_163 = arith.constant 0 : index
    %183 = vector.load %arg35[%c1_161, %c0_162, %c0_163] : memref<3x18x10xf32, #tpu.memory_space<vmem>>, vector<1x18x10xf32>
    %184 = vector.shape_cast %183 : vector<1x18x10xf32> to vector<18x10xf32>
    %cst_164 = arith.constant dense<0.000000e+00> : vector<45x10xf32>
    %185 = tpu.matmul %175, %184, %cst_164 {dimension_numbers = #tpu.dot_dimension_numbers<[1], [0], [0], [1], [0, 0, 1, 1], [], []>} : vector<45x18xf32>, vector<18x10xf32>, vector<45x10xf32> -> vector<45x10xf32>
    %c1_165 = arith.constant 1 : index
    %c0_166 = arith.constant 0 : index
    %c0_167 = arith.constant 0 : index
    %186 = vector.load %arg31[%c1_165, %c0_166, %c0_167] : memref<3x45x45xbf16, #tpu.memory_space<vmem>>, vector<1x45x45xbf16>
    %187 = vector.shape_cast %186 : vector<1x45x45xbf16> to vector<45x45xbf16>
    %188 = arith.truncf %185 : vector<45x10xf32> to vector<45x10xbf16>
    %cst_168 = arith.constant dense<0.000000e+00> : vector<45x10xf32>
    %189 = tpu.matmul %187, %188, %cst_168 {dimension_numbers = #tpu.dot_dimension_numbers<[1], [0], [0], [1], [0, 0, 1, 1], [], []>} : vector<45x45xbf16>, vector<45x10xbf16>, vector<45x10xf32> -> vector<45x10xf32>
    %190 = arith.addf %182, %189 : vector<45x10xf32>
    %c2_169 = arith.constant 2 : index
    %c0_170 = arith.constant 0 : index
    %c0_171 = arith.constant 0 : index
    %191 = vector.load %arg35[%c2_169, %c0_170, %c0_171] : memref<3x18x10xf32, #tpu.memory_space<vmem>>, vector<1x18x10xf32>
    %192 = vector.shape_cast %191 : vector<1x18x10xf32> to vector<18x10xf32>
    %cst_172 = arith.constant dense<0.000000e+00> : vector<45x10xf32>
    %193 = tpu.matmul %175, %192, %cst_172 {dimension_numbers = #tpu.dot_dimension_numbers<[1], [0], [0], [1], [0, 0, 1, 1], [], []>} : vector<45x18xf32>, vector<18x10xf32>, vector<45x10xf32> -> vector<45x10xf32>
    %c2_173 = arith.constant 2 : index
    %c0_174 = arith.constant 0 : index
    %c0_175 = arith.constant 0 : index
    %194 = vector.load %arg31[%c2_173, %c0_174, %c0_175] : memref<3x45x45xbf16, #tpu.memory_space<vmem>>, vector<1x45x45xbf16>
    %195 = vector.shape_cast %194 : vector<1x45x45xbf16> to vector<45x45xbf16>
    %196 = arith.truncf %193 : vector<45x10xf32> to vector<45x10xbf16>
    %cst_176 = arith.constant dense<0.000000e+00> : vector<45x10xf32>
    %197 = tpu.matmul %195, %196, %cst_176 {dimension_numbers = #tpu.dot_dimension_numbers<[1], [0], [0], [1], [0, 0, 1, 1], [], []>} : vector<45x45xbf16>, vector<45x10xbf16>, vector<45x10xf32> -> vector<45x10xf32>
    %198 = arith.addf %190, %197 : vector<45x10xf32>
    %c0_177 = arith.constant 0 : index
    %c0_178 = arith.constant 0 : index
    %199 = vector.load %arg32[%c0_177, %c0_178] : memref<45x1xf32, #tpu.memory_space<vmem>>, vector<45x1xf32>
    %200 = vector.broadcast %199 : vector<45x1xf32> to vector<45x10xf32>
    %201 = arith.addf %198, %200 : vector<45x10xf32>
    %cst_179 = arith.constant 0.000000e+00 : f32
    %202 = vector.broadcast %cst_179 : f32 to vector<45x10xf32>
    %203 = arith.maximumf %201, %202 : vector<45x10xf32>
    %c0_180 = arith.constant 0 : index
    %c0_181 = arith.constant 0 : index
    %204 = vector.load %arg33[%c0_180, %c0_181] : memref<67x45xbf16, #tpu.memory_space<vmem>>, vector<67x45xbf16>
    %205 = arith.truncf %203 : vector<45x10xf32> to vector<45x10xbf16>
    %cst_182 = arith.constant dense<0.000000e+00> : vector<67x10xf32>
    %206 = tpu.matmul %204, %205, %cst_182 {dimension_numbers = #tpu.dot_dimension_numbers<[1], [0], [0], [1], [0, 0, 1, 1], [], []>} : vector<67x45xbf16>, vector<45x10xbf16>, vector<67x10xf32> -> vector<67x10xf32>
    %c0_183 = arith.constant 0 : index
    %c0_184 = arith.constant 0 : index
    %207 = vector.load %arg34[%c0_183, %c0_184] : memref<67x1xf32, #tpu.memory_space<vmem>>, vector<67x1xf32>
    %208 = vector.broadcast %207 : vector<67x1xf32> to vector<67x10xf32>
    %209 = arith.addf %206, %208 : vector<67x10xf32>
    %c1_185 = arith.constant 1 : index
    %c0_186 = arith.constant 0 : index
    %c0_187 = arith.constant 0 : index
    %210 = vector.load %arg35[%c1_185, %c0_186, %c0_187] : memref<3x18x10xf32, #tpu.memory_space<vmem>>, vector<1x18x10xf32>
    %211 = vector.shape_cast %210 : vector<1x18x10xf32> to vector<18x10xf32>
    %cst_188 = arith.constant dense<0.000000e+00> : vector<45x10xf32>
    %212 = tpu.matmul %167, %211, %cst_188 {dimension_numbers = #tpu.dot_dimension_numbers<[1], [0], [0], [1], [0, 0, 1, 1], [], []>} : vector<45x18xf32>, vector<18x10xf32>, vector<45x10xf32> -> vector<45x10xf32>
    %c0_189 = arith.constant 0 : index
    %c0_190 = arith.constant 0 : index
    %213 = vector.load %arg36[%c0_189, %c0_190] : memref<67x45xbf16, #tpu.memory_space<vmem>>, vector<67x45xbf16>
    %214 = arith.truncf %212 : vector<45x10xf32> to vector<45x10xbf16>
    %cst_191 = arith.constant dense<0.000000e+00> : vector<67x10xf32>
    %215 = tpu.matmul %213, %214, %cst_191 {dimension_numbers = #tpu.dot_dimension_numbers<[1], [0], [0], [1], [0, 0, 1, 1], [], []>} : vector<67x45xbf16>, vector<45x10xbf16>, vector<67x10xf32> -> vector<67x10xf32>
    %c0_192 = arith.constant 0 : index
    %c0_193 = arith.constant 0 : index
    %216 = vector.load %arg37[%c0_192, %c0_193] : memref<67x1xf32, #tpu.memory_space<vmem>>, vector<67x1xf32>
    %217 = vector.broadcast %216 : vector<67x1xf32> to vector<67x10xf32>
    %218 = arith.addf %215, %217 : vector<67x10xf32>
    %219 = arith.addf %209, %218 : vector<67x10xf32>
    %cst_194 = arith.constant 0.000000e+00 : f32
    %220 = vector.broadcast %cst_194 : f32 to vector<67x10xf32>
    %221 = arith.maximumf %219, %220 : vector<67x10xf32>
    %c0_195 = arith.constant 0 : index
    %c0_196 = arith.constant 0 : index
    %222 = vector.load %arg38[%c0_195, %c0_196] : memref<10x2xf32, #tpu.memory_space<vmem>>, vector<10x2xf32>
    %cst_197 = arith.constant dense<0.000000e+00> : vector<67x2xf32>
    %223 = tpu.matmul %221, %222, %cst_197 {dimension_numbers = #tpu.dot_dimension_numbers<[1], [0], [0], [1], [0, 0, 1, 1], [], []>} : vector<67x10xf32>, vector<10x2xf32>, vector<67x2xf32> -> vector<67x2xf32>
    %c0_198 = arith.constant 0 : index
    %c0_199 = arith.constant 0 : index
    %224 = vector.load %arg39[%c0_198, %c0_199] : memref<67x1xf32, #tpu.memory_space<vmem>>, vector<67x1xf32>
    %225 = vector.broadcast %224 : vector<67x1xf32> to vector<67x2xf32>
    %226 = arith.mulf %225, %223 : vector<67x2xf32>
    %cst_200 = arith.constant dense<0.000000e+00> : vector<2xf32>
    %227 = vector.multi_reduction <add>, %226, %cst_200 [0] : vector<67x2xf32> to vector<2xf32>
    %228 = vector.shape_cast %227 : vector<2xf32> to vector<1x2xf32>
    %c0_201 = arith.constant 0 : index
    %c0_202 = arith.constant 0 : index
    %229 = vector.load %arg40[%c0_201, %c0_202] : memref<1x1xf32, #tpu.memory_space<vmem>>, vector<1x1xf32>
    %230 = vector.broadcast %229 : vector<1x1xf32> to vector<1x2xf32>
    %231 = arith.addf %228, %230 : vector<1x2xf32>
    %c0_203 = arith.constant 0 : index
    %c0_204 = arith.constant 0 : index
    %232 = vector.load %arg41[%c0_203, %c0_204] : memref<1x2xf32, #tpu.memory_space<vmem>>, vector<1x2xf32>
    tpu.vector_store %arg41[%c0_203, %c0_204], %231 {strides = array<i32>} : memref<1x2xf32, #tpu.memory_space<vmem>>, vector<1x2xf32>,
    return
  }
}

</mosaic_0001>

<llo_original>
// kernel: squigglenet_forward.1
$region0: #{squigglenet_forward.1}
  #allocation0 [shape = 'u32[]', space=smem, size = 0x4, offset = 0x4, fixed_abs, tag = 'smem constant byte address 0x4 - core index']
  #allocation1 [shape = 'u32[144,128]{1,0:T(1,128)}', space=vmem, size = 0x12000, scoped, tag = 'internal scratch']
  #allocation2 [shape = 'f32[1,1]{1,0:T(1,128)S(1)}', space=vmem, size = 0x200, scoped, tag = 'scoped memory for squigglenet_forward.1']
  %s0 = inlined_call_operand.smem [shape: u32[42], index: -1, kind: input, shape index: {}]
  %s1 = sld [smem:[%s0]]
  %s2 = scalar_lea.smem %s0, 1
  %s3 = sld [smem:[%s2]]
  %s4 = scalar_lea.smem %s0, 2
  %s5 = sld [smem:[%s4]]
  %s6 = scalar_lea.smem %s0, 3
  %s7 = sld [smem:[%s6]]
  %s8 = scalar_lea.smem %s0, 4
  %s9 = sld [smem:[%s8]]
  %s10 = scalar_lea.smem %s0, 5
  %s11 = sld [smem:[%s10]]
  %s12 = scalar_lea.smem %s0, 6
  %s13 = sld [smem:[%s12]]
  %s14 = scalar_lea.smem %s0, 7
  %s15 = sld [smem:[%s14]]
  %s16 = scalar_lea.smem %s0, 8
  %s17 = sld [smem:[%s16]]
  %s18 = scalar_lea.smem %s0, 9
  %s19 = sld [smem:[%s18]]
  %s20 = scalar_lea.smem %s0, 10
  %s21 = sld [smem:[%s20]]
  %s22 = scalar_lea.smem %s0, 11
  %s23 = sld [smem:[%s22]]
  %s24 = scalar_lea.smem %s0, 12
  %s25 = sld [smem:[%s24]]
  %s26 = scalar_lea.smem %s0, 13
  %s27 = sld [smem:[%s26]]
  %s28 = scalar_lea.smem %s0, 14
  %s29 = sld [smem:[%s28]]
  %s30 = scalar_lea.smem %s0, 15
  %s31 = sld [smem:[%s30]]
  %s32 = scalar_lea.smem %s0, 16
  %s33 = sld [smem:[%s32]]
  %s34 = scalar_lea.smem %s0, 17
  %s35 = sld [smem:[%s34]]
  %s36 = scalar_lea.smem %s0, 18
  %s37 = sld [smem:[%s36]]
  %s38 = scalar_lea.smem %s0, 19
  %s39 = sld [smem:[%s38]]
  %s40 = scalar_lea.smem %s0, 20
  %s41 = sld [smem:[%s40]]
  %s42 = scalar_lea.smem %s0, 21
  %s43 = sld [smem:[%s42]]
  %s44 = scalar_lea.smem %s0, 22
  %s45 = sld [smem:[%s44]]
  %s46 = scalar_lea.smem %s0, 23
  %s47 = sld [smem:[%s46]]
  %s48 = scalar_lea.smem %s0, 24
  %s49 = sld [smem:[%s48]]
  %s50 = scalar_lea.smem %s0, 25
  %s51 = sld [smem:[%s50]]
  %s52 = scalar_lea.smem %s0, 26
  %s53 = sld [smem:[%s52]]
  %s54 = scalar_lea.smem %s0, 27
  %s55 = sld [smem:[%s54]]
  %s56 = scalar_lea.smem %s0, 28
  %s57 = sld [smem:[%s56]]
  %s58 = scalar_lea.smem %s0, 29
  %s59 = sld [smem:[%s58]]
  %s60 = scalar_lea.smem %s0, 30
  %s61 = sld [smem:[%s60]]
  %s62 = scalar_lea.smem %s0, 31
  %s63 = sld [smem:[%s62]]
  %s64 = scalar_lea.smem %s0, 32
  %s65 = sld [smem:[%s64]]
  %s66 = scalar_lea.smem %s0, 33
  %s67 = sld [smem:[%s66]]
  %s68 = scalar_lea.smem %s0, 34
  %s69 = sld [smem:[%s68]]
  %s70 = scalar_lea.smem %s0, 35
  %s71 = sld [smem:[%s70]]
  %s72 = scalar_lea.smem %s0, 36
  %s73 = sld [smem:[%s72]]
  %s74 = scalar_lea.smem %s0, 37
  %s75 = sld [smem:[%s74]]
  %s76 = scalar_lea.smem %s0, 38
  %s77 = sld [smem:[%s76]]
  %s78 = scalar_lea.smem %s0, 39
  %s79 = sld [smem:[%s78]]
  %s80 = scalar_lea.smem %s0, 40
  %s81 = sld [smem:[%s80]]
  %s82 = scalar_lea.smem %s0, 41
  %s83 = sld [smem:[%s82]]
  %s84 = sld [smem:[#allocation0]]
  $region174: #{squigglenet_forward.1} parent=0
    _
  %s86 = ssub.s32 1, %s84
  %s87 = scalar_select 0, %s86, %s84
  %v88 = vstv %s81
  %89 = vst [vmem:[#allocation2] sm:$0x1] %v88
  $region1: #{squigglenet_forward.1} parent=0
    #allocation3 [shape = 'u8[512]{0}', space=vmem, size = 0x400, scoped, tag = 'output window, operand 0, single buffered']
    #allocation4 [shape = 's32[1]{0}', space=sflag, size = 0x4, scoped, tag = 'scoped memory for squigglenet_forward.1']
    %90 = vsyncpa [#allocation4], 0
    // Predicated region
    $region2: #{squigglenet_forward.1} parent=1 // pred_check
      _
    $region3: #{squigglenet_forward.1} parent=1 // pred_check_branch
      %92 = sbr.rel (0) target = $region5
    $region4: #{squigglenet_forward.1} parent=1 // pred_region
      _
    $region5: #{squigglenet_forward.1} parent=1 // pred_fallthru
      _
    // Predicated region
    $region6: #{squigglenet_forward.1} parent=1 // pred_check
      _
    $region7: #{squigglenet_forward.1} parent=1 // pred_check_branch
      %94 = sbr.rel (0) target = $region9
    $region8: #{squigglenet_forward.1} parent=1 // pred_region
      _
    $region9: #{squigglenet_forward.1} parent=1 // pred_fallthru
      _
    // Predicated region
    $region10: #{squigglenet_forward.1} parent=1 // pred_check
      _
    $region11: #{squigglenet_forward.1} parent=1 // pred_check_branch
      %96 = sbr.rel (0) target = $region13
    $region12: #{squigglenet_forward.1} parent=1 // pred_region
      _
    $region13: #{squigglenet_forward.1} parent=1 // pred_fallthru
      _
    // Predicated region
    $region14: #{squigglenet_forward.1} parent=1 // pred_check
      _
    $region15: #{squigglenet_forward.1} parent=1 // pred_check_branch
      %98 = sbr.rel (0) target = $region17
    $region16: #{squigglenet_forward.1} parent=1 // pred_region
      _
    $region17: #{squigglenet_forward.1} parent=1 // pred_fallthru
      _
    // Predicated region
    $region18: #{squigglenet_forward.1} parent=1 // pred_check
      _
    $region19: #{squigglenet_forward.1} parent=1 // pred_check_branch
      %100 = sbr.rel (0) target = $region21
    $region20: #{squigglenet_forward.1} parent=1 // pred_region
      _
    $region21: #{squigglenet_forward.1} parent=1 // pred_fallthru
      _
    // Predicated region
    $region22: #{squigglenet_forward.1} parent=1 // pred_check
      _
    $region23: #{squigglenet_forward.1} parent=1 // pred_check_branch
      %102 = sbr.rel (0) target = $region25
    $region24: #{squigglenet_forward.1} parent=1 // pred_region
      _
    $region25: #{squigglenet_forward.1} parent=1 // pred_fallthru
      _
    // Predicated region
    $region26: #{squigglenet_forward.1} parent=1 // pred_check
      _
    $region27: #{squigglenet_forward.1} parent=1 // pred_check_branch
      %104 = sbr.rel (0) target = $region29
    $region28: #{squigglenet_forward.1} parent=1 // pred_region
      _
    $region29: #{squigglenet_forward.1} parent=1 // pred_fallthru
      _
    // Predicated region
    $region30: #{squigglenet_forward.1} parent=1 // pred_check
      _
    $region31: #{squigglenet_forward.1} parent=1 // pred_check_branch
      %106 = sbr.rel (0) target = $region33
    $region32: #{squigglenet_forward.1} parent=1 // pred_region
      _
    $region33: #{squigglenet_forward.1} parent=1 // pred_fallthru
      _
    // Predicated region
    $region34: #{squigglenet_forward.1} parent=1 // pred_check
      _
    $region35: #{squigglenet_forward.1} parent=1 // pred_check_branch
      %108 = sbr.rel (0) target = $region37
    $region36: #{squigglenet_forward.1} parent=1 // pred_region
      _
    $region37: #{squigglenet_forward.1} parent=1 // pred_fallthru
      _
    // Predicated region
    $region38: #{squigglenet_forward.1} parent=1 // pred_check
      _
    $region39: #{squigglenet_forward.1} parent=1 // pred_check_branch
      %110 = sbr.rel (0) target = $region41
    $region40: #{squigglenet_forward.1} parent=1 // pred_region
      _
    $region41: #{squigglenet_forward.1} parent=1 // pred_fallthru
      _
    // Predicated region
    $region42: #{squigglenet_forward.1} parent=1 // pred_check
      _
    $region43: #{squigglenet_forward.1} parent=1 // pred_check_branch
      %112 = sbr.rel (0) target = $region45
    $region44: #{squigglenet_forward.1} parent=1 // pred_region
      _
    $region45: #{squigglenet_forward.1} parent=1 // pred_fallthru
      _
    // Predicated region
    $region46: #{squigglenet_forward.1} parent=1 // pred_check
      _
    $region47: #{squigglenet_forward.1} parent=1 // pred_check_branch
      %114 = sbr.rel (0) target = $region49
    $region48: #{squigglenet_forward.1} parent=1 // pred_region
      _
    $region49: #{squigglenet_forward.1} parent=1 // pred_fallthru
      _
    // Predicated region
    $region50: #{squigglenet_forward.1} parent=1 // pred_check
      _
    $region51: #{squigglenet_forward.1} parent=1 // pred_check_branch
      %116 = sbr.rel (0) target = $region53
    $region52: #{squigglenet_forward.1} parent=1 // pred_region
      _
    $region53: #{squigglenet_forward.1} parent=1 // pred_fallthru
      _
    // Predicated region
    $region54: #{squigglenet_forward.1} parent=1 // pred_check
      _
    $region55: #{squigglenet_forward.1} parent=1 // pred_check_branch
      %118 = sbr.rel (0) target = $region57
    $region56: #{squigglenet_forward.1} parent=1 // pred_region
      _
    $region57: #{squigglenet_forward.1} parent=1 // pred_fallthru
      _
    // Predicated region
    $region58: #{squigglenet_forward.1} parent=1 // pred_check
      _
    $region59: #{squigglenet_forward.1} parent=1 // pred_check_branch
      %120 = sbr.rel (0) target = $region61
    $region60: #{squigglenet_forward.1} parent=1 // pred_region
      _
    $region61: #{squigglenet_forward.1} parent=1 // pred_fallthru
      _
    // Predicated region
    $region62: #{squigglenet_forward.1} parent=1 // pred_check
      _
    $region63: #{squigglenet_forward.1} parent=1 // pred_check_branch
      %122 = sbr.rel (0) target = $region65
    $region64: #{squigglenet_forward.1} parent=1 // pred_region
      _
    $region65: #{squigglenet_forward.1} parent=1 // pred_fallthru
      _
    // Predicated region
    $region66: #{squigglenet_forward.1} parent=1 // pred_check
      _
    $region67: #{squigglenet_forward.1} parent=1 // pred_check_branch
      %124 = sbr.rel (0) target = $region69
    $region68: #{squigglenet_forward.1} parent=1 // pred_region
      _
    $region69: #{squigglenet_forward.1} parent=1 // pred_fallthru
      _
    // Predicated region
    $region70: #{squigglenet_forward.1} parent=1 // pred_check
      _
    $region71: #{squigglenet_forward.1} parent=1 // pred_check_branch
      %126 = sbr.rel (0) target = $region73
    $region72: #{squigglenet_forward.1} parent=1 // pred_region
      _
    $region73: #{squigglenet_forward.1} parent=1 // pred_fallthru
      _
    // Predicated region
    $region74: #{squigglenet_forward.1} parent=1 // pred_check
      _
    $region75: #{squigglenet_forward.1} parent=1 // pred_check_branch
      %128 = sbr.rel (0) target = $region77
    $region76: #{squigglenet_forward.1} parent=1 // pred_region
      _
    $region77: #{squigglenet_forward.1} parent=1 // pred_fallthru
      _
    // Predicated region
    $region78: #{squigglenet_forward.1} parent=1 // pred_check
      _
    $region79: #{squigglenet_forward.1} parent=1 // pred_check_branch
      %130 = sbr.rel (0) target = $region81
    $region80: #{squigglenet_forward.1} parent=1 // pred_region
      _
    $region81: #{squigglenet_forward.1} parent=1 // pred_fallthru
      _
    // Predicated region
    $region82: #{squigglenet_forward.1} parent=1 // pred_check
      _
    $region83: #{squigglenet_forward.1} parent=1 // pred_check_branch
      %132 = sbr.rel (0) target = $region85
    $region84: #{squigglenet_forward.1} parent=1 // pred_region
      _
    $region85: #{squigglenet_forward.1} parent=1 // pred_fallthru
      _
    // Predicated region
    $region86: #{squigglenet_forward.1} parent=1 // pred_check
      _
    $region87: #{squigglenet_forward.1} parent=1 // pred_check_branch
      %134 = sbr.rel (0) target = $region89
    $region88: #{squigglenet_forward.1} parent=1 // pred_region
      _
    $region89: #{squigglenet_forward.1} parent=1 // pred_fallthru
      _
    // Predicated region
    $region90: #{squigglenet_forward.1} parent=1 // pred_check
      _
    $region91: #{squigglenet_forward.1} parent=1 // pred_check_branch
      %136 = sbr.rel (0) target = $region93
    $region92: #{squigglenet_forward.1} parent=1 // pred_region
      _
    $region93: #{squigglenet_forward.1} parent=1 // pred_fallthru
      _
    // Predicated region
    $region94: #{squigglenet_forward.1} parent=1 // pred_check
      _
    $region95: #{squigglenet_forward.1} parent=1 // pred_check_branch
      %138 = sbr.rel (0) target = $region97
    $region96: #{squigglenet_forward.1} parent=1 // pred_region
      _
    $region97: #{squigglenet_forward.1} parent=1 // pred_fallthru
      _
    // Predicated region
    $region98: #{squigglenet_forward.1} parent=1 // pred_check
      _
    $region99: #{squigglenet_forward.1} parent=1 // pred_check_branch
      %140 = sbr.rel (0) target = $region101
    $region100: #{squigglenet_forward.1} parent=1 // pred_region
      _
    $region101: #{squigglenet_forward.1} parent=1 // pred_fallthru
      _
    // Predicated region
    $region102: #{squigglenet_forward.1} parent=1 // pred_check
      _
    $region103: #{squigglenet_forward.1} parent=1 // pred_check_branch
      %142 = sbr.rel (0) target = $region105
    $region104: #{squigglenet_forward.1} parent=1 // pred_region
      _
    $region105: #{squigglenet_forward.1} parent=1 // pred_fallthru
      _
    // Predicated region
    $region106: #{squigglenet_forward.1} parent=1 // pred_check
      _
    $region107: #{squigglenet_forward.1} parent=1 // pred_check_branch
      %144 = sbr.rel (0) target = $region109
    $region108: #{squigglenet_forward.1} parent=1 // pred_region
      _
    $region109: #{squigglenet_forward.1} parent=1 // pred_fallthru
      _
    // Predicated region
    $region110: #{squigglenet_forward.1} parent=1 // pred_check
      _
    $region111: #{squigglenet_forward.1} parent=1 // pred_check_branch
      %146 = sbr.rel (0) target = $region113
    $region112: #{squigglenet_forward.1} parent=1 // pred_region
      _
    $region113: #{squigglenet_forward.1} parent=1 // pred_fallthru
      _
    // Predicated region
    $region114: #{squigglenet_forward.1} parent=1 // pred_check
      _
    $region115: #{squigglenet_forward.1} parent=1 // pred_check_branch
      %148 = sbr.rel (0) target = $region117
    $region116: #{squigglenet_forward.1} parent=1 // pred_region
      _
    $region117: #{squigglenet_forward.1} parent=1 // pred_fallthru
      _
    // Predicated region
    $region118: #{squigglenet_forward.1} parent=1 // pred_check
      _
    $region119: #{squigglenet_forward.1} parent=1 // pred_check_branch
      %150 = sbr.rel (0) target = $region121
    $region120: #{squigglenet_forward.1} parent=1 // pred_region
      _
    $region121: #{squigglenet_forward.1} parent=1 // pred_fallthru
      _
    // Predicated region
    $region122: #{squigglenet_forward.1} parent=1 // pred_check
      _
    $region123: #{squigglenet_forward.1} parent=1 // pred_check_branch
      %152 = sbr.rel (0) target = $region125
    $region124: #{squigglenet_forward.1} parent=1 // pred_region
      _
    $region125: #{squigglenet_forward.1} parent=1 // pred_fallthru
      _
    // Predicated region
    $region126: #{squigglenet_forward.1} parent=1 // pred_check
      _
    $region127: #{squigglenet_forward.1} parent=1 // pred_check_branch
      %154 = sbr.rel (0) target = $region129
    $region128: #{squigglenet_forward.1} parent=1 // pred_region
      _
    $region129: #{squigglenet_forward.1} parent=1 // pred_fallthru
      _
    // Predicated region
    $region130: #{squigglenet_forward.1} parent=1 // pred_check
      _
    $region131: #{squigglenet_forward.1} parent=1 // pred_check_branch
      %156 = sbr.rel (0) target = $region133
    $region132: #{squigglenet_forward.1} parent=1 // pred_region
      _
    $region133: #{squigglenet_forward.1} parent=1 // pred_fallthru
      _
    // Predicated region
    $region134: #{squigglenet_forward.1} parent=1 // pred_check
      _
    $region135: #{squigglenet_forward.1} parent=1 // pred_check_branch
      %158 = sbr.rel (0) target = $region137
    $region136: #{squigglenet_forward.1} parent=1 // pred_region
      _
    $region137: #{squigglenet_forward.1} parent=1 // pred_fallthru
      _
    // Predicated region
    $region138: #{squigglenet_forward.1} parent=1 // pred_check
      _
    $region139: #{squigglenet_forward.1} parent=1 // pred_check_branch
      %160 = sbr.rel (0) target = $region141
    $region140: #{squigglenet_forward.1} parent=1 // pred_region
      _
    $region141: #{squigglenet_forward.1} parent=1 // pred_fallthru
      _
    // Predicated region
    $region142: #{squigglenet_forward.1} parent=1 // pred_check
      _
    $region143: #{squigglenet_forward.1} parent=1 // pred_check_branch
      %162 = sbr.rel (0) target = $region145
    $region144: #{squigglenet_forward.1} parent=1 // pred_region
      _
    $region145: #{squigglenet_forward.1} parent=1 // pred_fallthru
      _
    // Predicated region
    $region146: #{squigglenet_forward.1} parent=1 // pred_check
      _
    $region147: #{squigglenet_forward.1} parent=1 // pred_check_branch
      %164 = sbr.rel (0) target = $region149
    $region148: #{squigglenet_forward.1} parent=1 // pred_region
      _
    $region149: #{squigglenet_forward.1} parent=1 // pred_fallthru
      _
    // Predicated region
    $region150: #{squigglenet_forward.1} parent=1 // pred_check
      _
    $region151: #{squigglenet_forward.1} parent=1 // pred_check_branch
      %166 = sbr.rel (0) target = $region153
    $region152: #{squigglenet_forward.1} parent=1 // pred_region
      _
    $region153: #{squigglenet_forward.1} parent=1 // pred_fallthru
      _
    // Predicated region
    $region154: #{squigglenet_forward.1} parent=1 // pred_check
      _
    $region155: #{squigglenet_forward.1} parent=1 // pred_check_branch
      %168 = sbr.rel (0) target = $region157
    $region156: #{squigglenet_forward.1} parent=1 // pred_region
      _
    $region157: #{squigglenet_forward.1} parent=1 // pred_fallthru
      _
    // Predicated region
    $region158: #{squigglenet_forward.1} parent=1 // pred_check
      _
    $region159: #{squigglenet_forward.1} parent=1 // pred_check_branch
      %170 = sbr.rel (0) target = $region161
    $region160: #{squigglenet_forward.1} parent=1 // pred_region
      _
    $region161: #{squigglenet_forward.1} parent=1 // pred_fallthru
      _
    // Predicated region
    $region162: #{squigglenet_forward.1} parent=1 // pred_check
      _
    $region163: #{squigglenet_forward.1} parent=1 // pred_check_branch
      %172 = sbr.rel (0) target = $region165
    $region164: #{squigglenet_forward.1} parent=1 // pred_region
      _
    $region165: #{squigglenet_forward.1} parent=1 // pred_fallthru
      _
    %v174 = vld [vmem:[%s3] sm:$0xf]
    %v175 = vld [vmem:[%s3 + $0x4] sm:$0xf]
    %v176 = vld [vmem:[%s3 + $0x8] sm:$0x3]
    %v177 = vld [vmem:[%s1] sm:$0xf]
    %v178 = vld [vmem:[%s1 + $0x4] sm:$0xf]
    %v179 = vld [vmem:[%s1 + $0x8] sm:$0x3]
    %v180 = vld [vmem:[%s5] sm:$0xff]
    %v181 = vld [vmem:[%s5 + $0x8] sm:$0xff]
    %v182 = vld [vmem:[%s5 + $0x10] sm:$0xf]
    %184 = vset.pattern.permute.xlu0 0
    %185 = vperm.xlu0 %184, %v180
    %v186 = vpop.permute.xlu0 %185
    %189 = vset.pattern.permute.xlu0 0
    %190 = vperm.xlu0 %189, %v181
    %v191 = vpop.permute.xlu0 %190
    %194 = vset.pattern.permute.xlu0 0
    %195 = vperm.xlu0 %194, %v182
    %v196 = vpop.permute.xlu0 %195
    %v201 = vunpack.c.l.b16 %v174
    %v202 = vunpack.c.l.b16 %v175
    %v203 = vunpack.c.l.b16 %v176
    %v204 = vpack.c.b16 %v202, %v201
    %v205 = vpack.c.b16 %v203, %v203
    %v209 = vunpack.c.l.b16 %v177
    %v210 = vunpack.c.l.b16 %v178
    %v211 = vunpack.c.l.b16 %v179
    %v212 = vpack.c.b16 %v210, %v209
    %v213 = vpack.c.b16 %v211, %v211
    %vm215 = vcmask 154624
    %v217 = vsel %vm215, %v204, 0
    %v220 = vsel %vm215, %v205, 0
    %vm222 = vcmask 1040384
    %vm223 = vcmask 1041408
    %v224 = vsel %vm222, 4294967295, 65535
    %v225 = vsel %vm223, %v224, 0
    %v227 = vand.u32 %v213, %v225
    %229 = vmatprep.subr.bf16.mxu0 0
    %230 = vmatpush1.bf16.msra.mxu0 %v212
    %231 = vmatprep.subr.bf16.mxu0 0
    %232 = vmatpush1.bf16.msra.mxu0 %v227
    %233 = vmatprep.subr.bf16.mxu0 0
    %234 = vmatpush1.bf16.msra.mxu0 0
    %235 = vmatprep.subr.bf16.mxu0 0
    %236 = vmatpush1.bf16.msra.mxu0 0
    %237 = vmatprep.subr.bf16.mxu0 0
    %238 = vmatpush1.bf16.msra.mxu0 0
    %239 = vmatprep.subr.bf16.mxu0 0
    %240 = vmatpush1.bf16.msra.mxu0 0
    %241 = vmatprep.subr.bf16.mxu0 0
    %242 = vmatpush1.bf16.msra.mxu0 0
    %243 = vmatprep.subr.bf16.mxu0 0
    %244 = vmatpush1.bf16.msra.mxu0 0
    %245 = vmatprep.subr.bf16.mxu0 0
    %246 = vmatpush1.bf16.msra.mxu0 0
    %247 = vmatprep.subr.bf16.mxu0 0
    %248 = vmatpush1.bf16.msra.mxu0 0
    %249 = vmatprep.subr.bf16.mxu0 0
    %250 = vmatpush1.bf16.msra.mxu0 0
    %251 = vmatprep.subr.bf16.mxu0 0
    %252 = vmatpush1.bf16.msra.mxu0 0
    %253 = vmatprep.subr.bf16.mxu0 0
    %254 = vmatpush1.bf16.msra.mxu0 0
    %255 = vmatprep.subr.bf16.mxu0 0
    %256 = vmatpush1.bf16.msra.mxu0 0
    %257 = vmatprep.subr.bf16.mxu0 0
    %258 = vmatpush1.bf16.msra.mxu0 0
    %259 = vmatprep.subr.bf16.mxu0 0
    %260 = vmatpush1.bf16.msra.mxu0 0
    %261 = vmatprep.mubr.bf16.mxu0 0
    %262 = vmatmul.mubr.bf16.gmra.mrb[0].mxu0 %v217
    %v263 = vpop.f32.mrb[0].mxu0
    %v264 = vadd.f32 %v186, %v263
    %v265 = vpop.f32.mrb[0].mxu0
    %v266 = vpop.f32.mrb[0].mxu0
    %v267 = vadd.f32 %v191, %v266
    %v268 = vpop.f32.mrb[0].mxu0
    %269 = vmatprep.mubr.bf16.mxu0 0
    %270 = vmatmul.mubr.bf16.gmra.mrb[0].mxu0 %v220
    %v271 = vpop.f32.mrb[0].mxu0
    %v272 = vadd.f32 %v196, %v271
    %v273 = vpop.f32.mrb[0].mxu0
    %v274 = vpop.f32.mrb[0].mxu0
    %v275 = vpop.f32.mrb[0].mxu0
    %276 = vdwg.mxu0
    %v277 = vmax.f32 %v264, 0.0
    %v278 = vmax.f32 %v267, 0.0
    %v279 = vmax.f32 %v272, 0.0
    %v280 = vld [vmem:[%s7] sm:$0xff]
    %v281 = vld [vmem:[%s7 + $0x8] sm:$0xff]
    %v282 = vld [vmem:[%s7 + $0x10] sm:$0xff]
    %v283 = vld [vmem:[%s7 + $0x18] sm:$0xff]
    %v284 = vld [vmem:[%s7 + $0x20] sm:$0xff]
    %v285 = vld [vmem:[%s7 + $0x28] sm:$0xff]
    %v286 = vld [vmem:[%s7 + $0x30] sm:$0xff]
    %v287 = vld [vmem:[%s7 + $0x38] sm:$0xff]
    %v288 = vld [vmem:[%s7 + $0x40] sm:$0xff]
    %v289 = vld [vmem:[%s7 + $0x48] sm:$0xff]
    %v290 = vld [vmem:[%s7 + $0x50] sm:$0xff]
    %v291 = vld [vmem:[%s7 + $0x58] sm:$0xff]
    %v292 = vld [vmem:[%s7 + $0x60] sm:$0xff]
    %v293 = vld [vmem:[%s7 + $0x68] sm:$0xff]
    %v294 = vld [vmem:[%s7 + $0x70] sm:$0xff]
    %v295 = vld [vmem:[%s7 + $0x78] sm:$0xff]
    %296 = vmatprep.subr.mxu0 0.0
    %297 = vmatpush1.msra.mxu0 %v280
    %298 = vmatprep.subr.mxu0 0.0
    %299 = vmatpush1.msra.mxu0 %v281
    %300 = vmatprep.subr.mxu0 0.0
    %301 = vmatpush1.msra.mxu0 %v282
    %302 = vmatprep.subr.mxu0 0.0
    %303 = vmatpush1.msra.mxu0 %v283
    %304 = vmatprep.subr.mxu0 0.0
    %305 = vmatpush1.msra.mxu0 %v284
    %306 = vmatprep.subr.mxu0 0.0
    %307 = vmatpush1.msra.mxu0 %v285
    %308 = vmatprep.subr.mxu0 0.0
    %309 = vmatpush1.msra.mxu0 %v286
    %310 = vmatprep.subr.mxu0 0.0
    %311 = vmatpush1.msra.mxu0 %v287
    %312 = vmatprep.subr.mxu0 0.0
    %313 = vmatpush1.msra.mxu0 %v288
    %314 = vmatprep.subr.mxu0 0.0
    %315 = vmatpush1.msra.mxu0 %v289
    %316 = vmatprep.subr.mxu0 0.0
    %317 = vmatpush1.msra.mxu0 %v290
    %318 = vmatprep.subr.mxu0 0.0
    %319 = vmatpush1.msra.mxu0 %v291
    %320 = vmatprep.subr.mxu0 0.0
    %321 = vmatpush1.msra.mxu0 %v292
    %322 = vmatprep.subr.mxu0 0.0
    %323 = vmatpush1.msra.mxu0 %v293
    %324 = vmatprep.subr.mxu0 0.0
    %325 = vmatpush1.msra.mxu0 %v294
    %326 = vmatprep.subr.mxu0 0.0
    %327 = vmatpush1.msra.mxu0 %v295
    %328 = vmatprep.subr.mxu0 0.0
    %329 = vmatpush1.msra.mxu0 0.0
    %330 = vmatprep.subr.mxu0 0.0
    %331 = vmatpush1.msra.mxu0 0.0
    %332 = vmatprep.subr.mxu0 0.0
    %333 = vmatpush1.msra.mxu0 0.0
    %334 = vmatprep.subr.mxu0 0.0
    %335 = vmatpush1.msra.mxu0 0.0
    %336 = vmatprep.subr.mxu0 0.0
    %337 = vmatpush1.msra.mxu0 0.0
    %338 = vmatprep.subr.mxu0 0.0
    %339 = vmatpush1.msra.mxu0 0.0
    %340 = vmatprep.subr.mxu0 0.0
    %341 = vmatpush1.msra.mxu0 0.0
    %342 = vmatprep.subr.mxu0 0.0
    %343 = vmatpush1.msra.mxu0 0.0
    %344 = vmatprep.subr.mxu0 0.0
    %345 = vmatpush1.msra.mxu0 0.0
    %346 = vmatprep.subr.mxu0 0.0
    %347 = vmatpush1.msra.mxu0 0.0
    %348 = vmatprep.subr.mxu0 0.0
    %349 = vmatpush1.msra.mxu0 0.0
    %350 = vmatprep.subr.mxu0 0.0
    %351 = vmatpush1.msra.mxu0 0.0
    %352 = vmatprep.subr.mxu0 0.0
    %353 = vmatpush1.msra.mxu0 0.0
    %354 = vmatprep.subr.mxu0 0.0
    %355 = vmatpush1.msra.mxu0 0.0
    %356 = vmatprep.subr.mxu0 0.0
    %357 = vmatpush1.msra.mxu0 0.0
    %358 = vmatprep.subr.mxu0 0.0
    %359 = vmatpush1.msra.mxu0 0.0
    %360 = vmatprep.mubr.f32.mxu0 0.0
    %361 = vmatmul.mubr.f32.gmra.mrb[0].mxu0 %v277
    %v362 = vpop.f32.mrb[0].mxu0
    %v363 = vadd.f32 0.0, %v362
    %v364 = vpop.f32.mrb[0].mxu0
    %365 = vmatprep.mubr.f32.mxu0 0.0
    %366 = vmatmul.mubr.f32.gmra.mrb[0].mxu0 %v278
    %v367 = vpop.f32.mrb[0].mxu0
    %v368 = vadd.f32 0.0, %v367
    %v369 = vpop.f32.mrb[0].mxu0
    %370 = vmatprep.mubr.f32.mxu0 0.0
    %371 = vmatmul.mubr.f32.gmra.mrb[0].mxu0 %v279
    %v372 = vpop.f32.mrb[0].mxu0
    %v373 = vadd.f32 0.0, %v372
    %v374 = vpop.f32.mrb[0].mxu0
    %375 = vdwg.mxu0
    %s376 = scalar_lea.vmem %s7, 128
    %v377 = vld [vmem:[%s376] sm:$0xff]
    %v378 = vld [vmem:[%s376 + $0x8] sm:$0xff]
    %v379 = vld [vmem:[%s376 + $0x10] sm:$0xff]
    %v380 = vld [vmem:[%s376 + $0x18] sm:$0xff]
    %v381 = vld [vmem:[%s376 + $0x20] sm:$0xff]
    %v382 = vld [vmem:[%s376 + $0x28] sm:$0xff]
    %v383 = vld [vmem:[%s376 + $0x30] sm:$0xff]
    %v384 = vld [vmem:[%s376 + $0x38] sm:$0xff]
    %v385 = vld [vmem:[%s376 + $0x40] sm:$0xff]
    %v386 = vld [vmem:[%s376 + $0x48] sm:$0xff]
    %v387 = vld [vmem:[%s376 + $0x50] sm:$0xff]
    %v388 = vld [vmem:[%s376 + $0x58] sm:$0xff]
    %v389 = vld [vmem:[%s376 + $0x60] sm:$0xff]
    %v390 = vld [vmem:[%s376 + $0x68] sm:$0xff]
    %v391 = vld [vmem:[%s376 + $0x70] sm:$0xff]
    %v392 = vld [vmem:[%s376 + $0x78] sm:$0xff]
    %393 = vmatprep.subr.mxu0 0.0
    %394 = vmatpush1.msra.mxu0 %v377
    %395 = vmatprep.subr.mxu0 0.0
    %396 = vmatpush1.msra.mxu0 %v378
    %397 = vmatprep.subr.mxu0 0.0
    %398 = vmatpush1.msra.mxu0 %v379
    %399 = vmatprep.subr.mxu0 0.0
    %400 = vmatpush1.msra.mxu0 %v380
    %401 = vmatprep.subr.mxu0 0.0
    %402 = vmatpush1.msra.mxu0 %v381
    %403 = vmatprep.subr.mxu0 0.0
    %404 = vmatpush1.msra.mxu0 %v382
    %405 = vmatprep.subr.mxu0 0.0
    %406 = vmatpush1.msra.mxu0 %v383
    %407 = vmatprep.subr.mxu0 0.0
    %408 = vmatpush1.msra.mxu0 %v384
    %409 = vmatprep.subr.mxu0 0.0
    %410 = vmatpush1.msra.mxu0 %v385
    %411 = vmatprep.subr.mxu0 0.0
    %412 = vmatpush1.msra.mxu0 %v386
    %413 = vmatprep.subr.mxu0 0.0
    %414 = vmatpush1.msra.mxu0 %v387
    %415 = vmatprep.subr.mxu0 0.0
    %416 = vmatpush1.msra.mxu0 %v388
    %417 = vmatprep.subr.mxu0 0.0
    %418 = vmatpush1.msra.mxu0 %v389
    %419 = vmatprep.subr.mxu0 0.0
    %420 = vmatpush1.msra.mxu0 %v390
    %421 = vmatprep.subr.mxu0 0.0
    %422 = vmatpush1.msra.mxu0 %v391
    %423 = vmatprep.subr.mxu0 0.0
    %424 = vmatpush1.msra.mxu0 %v392
    %425 = vmatprep.subr.mxu0 0.0
    %426 = vmatpush1.msra.mxu0 0.0
    %427 = vmatprep.subr.mxu0 0.0
    %428 = vmatpush1.msra.mxu0 0.0
    %429 = vmatprep.subr.mxu0 0.0
    %430 = vmatpush1.msra.mxu0 0.0
    %431 = vmatprep.subr.mxu0 0.0
    %432 = vmatpush1.msra.mxu0 0.0
    %433 = vmatprep.subr.mxu0 0.0
    %434 = vmatpush1.msra.mxu0 0.0
    %435 = vmatprep.subr.mxu0 0.0
    %436 = vmatpush1.msra.mxu0 0.0
    %437 = vmatprep.subr.mxu0 0.0
    %438 = vmatpush1.msra.mxu0 0.0
    %439 = vmatprep.subr.mxu0 0.0
    %440 = vmatpush1.msra.mxu0 0.0
    %441 = vmatprep.subr.mxu0 0.0
    %442 = vmatpush1.msra.mxu0 0.0
    %443 = vmatprep.subr.mxu0 0.0
    %444 = vmatpush1.msra.mxu0 0.0
    %445 = vmatprep.subr.mxu0 0.0
    %446 = vmatpush1.msra.mxu0 0.0
    %447 = vmatprep.subr.mxu0 0.0
    %448 = vmatpush1.msra.mxu0 0.0
    %449 = vmatprep.subr.mxu0 0.0
    %450 = vmatpush1.msra.mxu0 0.0
    %451 = vmatprep.subr.mxu0 0.0
    %452 = vmatpush1.msra.mxu0 0.0
    %453 = vmatprep.subr.mxu0 0.0
    %454 = vmatpush1.msra.mxu0 0.0
    %455 = vmatprep.subr.mxu0 0.0
    %456 = vmatpush1.msra.mxu0 0.0
    %457 = vmatprep.mubr.f32.mxu0 0.0
    %458 = vmatmul.mubr.f32.gmra.mrb[0].mxu0 %v277
    %v459 = vpop.f32.mrb[0].mxu0
    %v460 = vadd.f32 0.0, %v459
    %v461 = vpop.f32.mrb[0].mxu0
    %462 = vmatprep.mubr.f32.mxu0 0.0
    %463 = vmatmul.mubr.f32.gmra.mrb[0].mxu0 %v278
    %v464 = vpop.f32.mrb[0].mxu0
    %v465 = vadd.f32 0.0, %v464
    %v466 = vpop.f32.mrb[0].mxu0
    %467 = vmatprep.mubr.f32.mxu0 0.0
    %468 = vmatmul.mubr.f32.gmra.mrb[0].mxu0 %v279
    %v469 = vpop.f32.mrb[0].mxu0
    %v470 = vadd.f32 0.0, %v469
    %v471 = vpop.f32.mrb[0].mxu0
    %472 = vdwg.mxu0
    %v473 = vmax.f32 %v363, %v460
    %v474 = vmax.f32 %v368, %v465
    %v475 = vmax.f32 %v373, %v470
    %v476 = vld [vmem:[%s9] sm:$0xf]
    %v477 = vld [vmem:[%s9 + $0x4] sm:$0xf]
    %v478 = vld [vmem:[%s9 + $0x8] sm:$0x3]
    %v479 = vpack.c.bf16 %v474, %v473
    %v480 = vpack.c.bf16 %v475, %v475
    %v481 = vld [vmem:[%s11] sm:$0xff]
    %v482 = vld [vmem:[%s11 + $0x8] sm:$0xff]
    %v483 = vld [vmem:[%s11 + $0x10] sm:$0xf]
    %485 = vset.pattern.permute.xlu0 0
    %486 = vperm.xlu0 %485, %v481
    %v487 = vpop.permute.xlu0 %486
    %490 = vset.pattern.permute.xlu0 0
    %491 = vperm.xlu0 %490, %v482
    %v492 = vpop.permute.xlu0 %491
    %495 = vset.pattern.permute.xlu0 0
    %496 = vperm.xlu0 %495, %v483
    %v497 = vpop.permute.xlu0 %496
    %v502 = vunpack.c.l.b16 %v476
    %v503 = vunpack.c.l.b16 %v477
    %v504 = vunpack.c.l.b16 %v478
    %v505 = vpack.c.b16 %v503, %v502
    %v506 = vpack.c.b16 %v504, %v504
    %vm507 = vcmask 162816
    %v509 = vsel %vm507, %v505, 0
    %v512 = vsel %vm507, %v506, 0
    %v515 = vsel %vm223, %v480, 0
    %517 = vmatprep.subr.bf16.mxu0 0
    %518 = vmatpush1.bf16.msra.mxu0 %v479
    %519 = vmatprep.subr.bf16.mxu0 0
    %520 = vmatpush1.bf16.msra.mxu0 %v515
    %521 = vmatprep.subr.bf16.mxu0 0
    %522 = vmatpush1.bf16.msra.mxu0 0
    %523 = vmatprep.subr.bf16.mxu0 0
    %524 = vmatpush1.bf16.msra.mxu0 0
    %525 = vmatprep.subr.bf16.mxu0 0
    %526 = vmatpush1.bf16.msra.mxu0 0
    %527 = vmatprep.subr.bf16.mxu0 0
    %528 = vmatpush1.bf16.msra.mxu0 0
    %529 = vmatprep.subr.bf16.mxu0 0
    %530 = vmatpush1.bf16.msra.mxu0 0
    %531 = vmatprep.subr.bf16.mxu0 0
    %532 = vmatpush1.bf16.msra.mxu0 0
    %533 = vmatprep.subr.bf16.mxu0 0
    %534 = vmatpush1.bf16.msra.mxu0 0
    %535 = vmatprep.subr.bf16.mxu0 0
    %536 = vmatpush1.bf16.msra.mxu0 0
    %537 = vmatprep.subr.bf16.mxu0 0
    %538 = vmatpush1.bf16.msra.mxu0 0
    %539 = vmatprep.subr.bf16.mxu0 0
    %540 = vmatpush1.bf16.msra.mxu0 0
    %541 = vmatprep.subr.bf16.mxu0 0
    %542 = vmatpush1.bf16.msra.mxu0 0
    %543 = vmatprep.subr.bf16.mxu0 0
    %544 = vmatpush1.bf16.msra.mxu0 0
    %545 = vmatprep.subr.bf16.mxu0 0
    %546 = vmatpush1.bf16.msra.mxu0 0
    %547 = vmatprep.subr.bf16.mxu0 0
    %548 = vmatpush1.bf16.msra.mxu0 0
    %549 = vmatprep.mubr.bf16.mxu0 0
    %550 = vmatmul.mubr.bf16.gmra.mrb[0].mxu0 %v509
    %v551 = vpop.f32.mrb[0].mxu0
    %v552 = vadd.f32 %v487, %v551
    %v553 = vpop.f32.mrb[0].mxu0
    %v554 = vpop.f32.mrb[0].mxu0
    %v555 = vadd.f32 %v492, %v554
    %v556 = vpop.f32.mrb[0].mxu0
    %557 = vmatprep.mubr.bf16.mxu0 0
    %558 = vmatmul.mubr.bf16.gmra.mrb[0].mxu0 %v512
    %v559 = vpop.f32.mrb[0].mxu0
    %v560 = vadd.f32 %v497, %v559
    %v561 = vpop.f32.mrb[0].mxu0
    %v562 = vpop.f32.mrb[0].mxu0
    %v563 = vpop.f32.mrb[0].mxu0
    %564 = vdwg.mxu0
    %v565 = vmax.f32 %v552, 0.0
    %v566 = vmax.f32 %v555, 0.0
    %v567 = vmax.f32 %v560, 0.0
    %v568 = vld [vmem:[%s21] sm:$0xff]
    %v569 = vld [vmem:[%s21 + $0x8] sm:$0xff]
    %v570 = vld [vmem:[%s21 + $0x10] sm:$0xff]
    %v571 = vld [vmem:[%s21 + $0x18] sm:$0xff]
    %v572 = vld [vmem:[%s21 + $0x20] sm:$0xff]
    %v573 = vld [vmem:[%s21 + $0x28] sm:$0xff]
    %v574 = vld [vmem:[%s21 + $0x30] sm:$0xff]
    %v575 = vld [vmem:[%s21 + $0x38] sm:$0xff]
    %v576 = vld [vmem:[%s21 + $0x40] sm:$0x3]
    %vm577 = vcmask 539648
    %v579 = vsel %vm577, %v565, 0
    %v582 = vsel %vm577, %v566, 0
    %v585 = vsel %vm577, %v567, 0
    %v588 = vsel %vm223, %v576, 0
    %590 = vmatprep.subr.mxu0 0.0
    %591 = vmatpush1.msra.mxu0 %v568
    %592 = vmatprep.subr.mxu0 0.0
    %593 = vmatpush1.msra.mxu0 %v569
    %594 = vmatprep.subr.mxu0 0.0
    %595 = vmatpush1.msra.mxu0 %v570
    %596 = vmatprep.subr.mxu0 0.0
    %597 = vmatpush1.msra.mxu0 %v571
    %598 = vmatprep.subr.mxu0 0.0
    %599 = vmatpush1.msra.mxu0 %v572
    %600 = vmatprep.subr.mxu0 0.0
    %601 = vmatpush1.msra.mxu0 %v573
    %602 = vmatprep.subr.mxu0 0.0
    %603 = vmatpush1.msra.mxu0 %v574
    %604 = vmatprep.subr.mxu0 0.0
    %605 = vmatpush1.msra.mxu0 %v575
    %606 = vmatprep.subr.mxu0 0.0
    %607 = vmatpush1.msra.mxu0 %v588
    %608 = vmatprep.subr.mxu0 0.0
    %609 = vmatpush1.msra.mxu0 0.0
    %610 = vmatprep.subr.mxu0 0.0
    %611 = vmatpush1.msra.mxu0 0.0
    %612 = vmatprep.subr.mxu0 0.0
    %613 = vmatpush1.msra.mxu0 0.0
    %614 = vmatprep.subr.mxu0 0.0
    %615 = vmatpush1.msra.mxu0 0.0
    %616 = vmatprep.subr.mxu0 0.0
    %617 = vmatpush1.msra.mxu0 0.0
    %618 = vmatprep.subr.mxu0 0.0
    %619 = vmatpush1.msra.mxu0 0.0
    %620 = vmatprep.subr.mxu0 0.0
    %621 = vmatpush1.msra.mxu0 0.0
    %622 = vmatprep.subr.mxu0 0.0
    %623 = vmatpush1.msra.mxu0 0.0
    %624 = vmatprep.subr.mxu0 0.0
    %625 = vmatpush1.msra.mxu0 0.0
    %626 = vmatprep.subr.mxu0 0.0
    %627 = vmatpush1.msra.mxu0 0.0
    %628 = vmatprep.subr.mxu0 0.0
    %629 = vmatpush1.msra.mxu0 0.0
    %630 = vmatprep.subr.mxu0 0.0
    %631 = vmatpush1.msra.mxu0 0.0
    %632 = vmatprep.subr.mxu0 0.0
    %633 = vmatpush1.msra.mxu0 0.0
    %634 = vmatprep.subr.mxu0 0.0
    %635 = vmatpush1.msra.mxu0 0.0
    %636 = vmatprep.subr.mxu0 0.0
    %637 = vmatpush1.msra.mxu0 0.0
    %638 = vmatprep.subr.mxu0 0.0
    %639 = vmatpush1.msra.mxu0 0.0
    %640 = vmatprep.subr.mxu0 0.0
    %641 = vmatpush1.msra.mxu0 0.0
    %642 = vmatprep.subr.mxu0 0.0
    %643 = vmatpush1.msra.mxu0 0.0
    %644 = vmatprep.subr.mxu0 0.0
    %645 = vmatpush1.msra.mxu0 0.0
    %646 = vmatprep.subr.mxu0 0.0
    %647 = vmatpush1.msra.mxu0 0.0
    %648 = vmatprep.subr.mxu0 0.0
    %649 = vmatpush1.msra.mxu0 0.0
    %650 = vmatprep.subr.mxu0 0.0
    %651 = vmatpush1.msra.mxu0 0.0
    %652 = vmatprep.subr.mxu0 0.0
    %653 = vmatpush1.msra.mxu0 0.0
    %654 = vmatprep.mubr.f32.mxu0 0.0
    %655 = vmatmul.mubr.f32.gmra.mrb[0].mxu0 %v579
    %v656 = vpop.f32.mrb[0].mxu0
    %v657 = vadd.f32 0.0, %v656
    %v658 = vpop.f32.mrb[0].mxu0
    %659 = vmatprep.mubr.f32.mxu0 0.0
    %660 = vmatmul.mubr.f32.gmra.mrb[0].mxu0 %v582
    %v661 = vpop.f32.mrb[0].mxu0
    %v662 = vadd.f32 0.0, %v661
    %v663 = vpop.f32.mrb[0].mxu0
    %664 = vmatprep.mubr.f32.mxu0 0.0
    %665 = vmatmul.mubr.f32.gmra.mrb[0].mxu0 %v585
    %v666 = vpop.f32.mrb[0].mxu0
    %v667 = vadd.f32 0.0, %v666
    %v668 = vpop.f32.mrb[0].mxu0
    %669 = vdwg.mxu0
    %v670 = vld [vmem:[%s13] sm:$0xf]
    %v671 = vld [vmem:[%s13 + $0x4] sm:$0xf]
    %v672 = vld [vmem:[%s13 + $0x8] sm:$0x3]
    %v673 = vpack.c.bf16 %v662, %v657
    %v674 = vpack.c.bf16 %v667, %v667
    %s675 = scalar_lea.vmem %s21, 72
    %v676 = vld [vmem:[%s675] sm:$0xff]
    %v677 = vld [vmem:[%s675 + $0x8] sm:$0xff]
    %v678 = vld [vmem:[%s675 + $0x10] sm:$0xff]
    %v679 = vld [vmem:[%s675 + $0x18] sm:$0xff]
    %v680 = vld [vmem:[%s675 + $0x20] sm:$0xff]
    %v681 = vld [vmem:[%s675 + $0x28] sm:$0xff]
    %v682 = vld [vmem:[%s675 + $0x30] sm:$0xff]
    %v683 = vld [vmem:[%s675 + $0x38] sm:$0xff]
    %v684 = vld [vmem:[%s675 + $0x40] sm:$0x3]
    %v686 = vsel %vm223, %v684, 0
    %688 = vmatprep.subr.mxu0 0.0
    %689 = vmatpush1.msra.mxu0 %v676
    %690 = vmatprep.subr.mxu0 0.0
    %691 = vmatpush1.msra.mxu0 %v677
    %692 = vmatprep.subr.mxu0 0.0
    %693 = vmatpush1.msra.mxu0 %v678
    %694 = vmatprep.subr.mxu0 0.0
    %695 = vmatpush1.msra.mxu0 %v679
    %696 = vmatprep.subr.mxu0 0.0
    %697 = vmatpush1.msra.mxu0 %v680
    %698 = vmatprep.subr.mxu0 0.0
    %699 = vmatpush1.msra.mxu0 %v681
    %700 = vmatprep.subr.mxu0 0.0
    %701 = vmatpush1.msra.mxu0 %v682
    %702 = vmatprep.subr.mxu0 0.0
    %703 = vmatpush1.msra.mxu0 %v683
    %704 = vmatprep.subr.mxu0 0.0
    %705 = vmatpush1.msra.mxu0 %v686
    %706 = vmatprep.subr.mxu0 0.0
    %707 = vmatpush1.msra.mxu0 0.0
    %708 = vmatprep.subr.mxu0 0.0
    %709 = vmatpush1.msra.mxu0 0.0
    %710 = vmatprep.subr.mxu0 0.0
    %711 = vmatpush1.msra.mxu0 0.0
    %712 = vmatprep.subr.mxu0 0.0
    %713 = vmatpush1.msra.mxu0 0.0
    %714 = vmatprep.subr.mxu0 0.0
    %715 = vmatpush1.msra.mxu0 0.0
    %716 = vmatprep.subr.mxu0 0.0
    %717 = vmatpush1.msra.mxu0 0.0
    %718 = vmatprep.subr.mxu0 0.0
    %719 = vmatpush1.msra.mxu0 0.0
    %720 = vmatprep.subr.mxu0 0.0
    %721 = vmatpush1.msra.mxu0 0.0
    %722 = vmatprep.subr.mxu0 0.0
    %723 = vmatpush1.msra.mxu0 0.0
    %724 = vmatprep.subr.mxu0 0.0
    %725 = vmatpush1.msra.mxu0 0.0
    %726 = vmatprep.subr.mxu0 0.0
    %727 = vmatpush1.msra.mxu0 0.0
    %728 = vmatprep.subr.mxu0 0.0
    %729 = vmatpush1.msra.mxu0 0.0
    %730 = vmatprep.subr.mxu0 0.0
    %731 = vmatpush1.msra.mxu0 0.0
    %732 = vmatprep.subr.mxu0 0.0
    %733 = vmatpush1.msra.mxu0 0.0
    %734 = vmatprep.subr.mxu0 0.0
    %735 = vmatpush1.msra.mxu0 0.0
    %736 = vmatprep.subr.mxu0 0.0
    %737 = vmatpush1.msra.mxu0 0.0
    %738 = vmatprep.subr.mxu0 0.0
    %739 = vmatpush1.msra.mxu0 0.0
    %740 = vmatprep.subr.mxu0 0.0
    %741 = vmatpush1.msra.mxu0 0.0
    %742 = vmatprep.subr.mxu0 0.0
    %743 = vmatpush1.msra.mxu0 0.0
    %744 = vmatprep.subr.mxu0 0.0
    %745 = vmatpush1.msra.mxu0 0.0
    %746 = vmatprep.subr.mxu0 0.0
    %747 = vmatpush1.msra.mxu0 0.0
    %748 = vmatprep.subr.mxu0 0.0
    %749 = vmatpush1.msra.mxu0 0.0
    %750 = vmatprep.subr.mxu0 0.0
    %751 = vmatpush1.msra.mxu0 0.0
    %752 = vmatprep.mubr.f32.mxu0 0.0
    %753 = vmatmul.mubr.f32.gmra.mrb[0].mxu0 %v579
    %v754 = vpop.f32.mrb[0].mxu0
    %v755 = vadd.f32 0.0, %v754
    %v756 = vpop.f32.mrb[0].mxu0
    %757 = vmatprep.mubr.f32.mxu0 0.0
    %758 = vmatmul.mubr.f32.gmra.mrb[0].mxu0 %v582
    %v759 = vpop.f32.mrb[0].mxu0
    %v760 = vadd.f32 0.0, %v759
    %v761 = vpop.f32.mrb[0].mxu0
    %762 = vmatprep.mubr.f32.mxu0 0.0
    %763 = vmatmul.mubr.f32.gmra.mrb[0].mxu0 %v585
    %v764 = vpop.f32.mrb[0].mxu0
    %v765 = vadd.f32 0.0, %v764
    %v766 = vpop.f32.mrb[0].mxu0
    %767 = vdwg.mxu0
    %s768 = scalar_lea.vmem %s13, 12
    %v769 = vld [vmem:[%s768] sm:$0xf]
    %v770 = vld [vmem:[%s768 + $0x4] sm:$0xf]
    %v771 = vld [vmem:[%s768 + $0x8] sm:$0x3]
    %v772 = vpack.c.bf16 %v760, %v755
    %v773 = vpack.c.bf16 %v765, %v765
    %v777 = vunpack.c.l.b16 %v769
    %v778 = vunpack.c.l.b16 %v770
    %v779 = vunpack.c.l.b16 %v771
    %v780 = vpack.c.b16 %v778, %v777
    %v781 = vpack.c.b16 %v779, %v779
    %v783 = vsel %vm507, %v780, 0
    %v786 = vsel %vm507, %v781, 0
    %v789 = vsel %vm223, %v773, 0
    %791 = vmatprep.subr.bf16.mxu0 0
    %792 = vmatpush1.bf16.msra.mxu0 %v772
    %793 = vmatprep.subr.bf16.mxu0 0
    %794 = vmatpush1.bf16.msra.mxu0 %v789
    %795 = vmatprep.subr.bf16.mxu0 0
    %796 = vmatpush1.bf16.msra.mxu0 0
    %797 = vmatprep.subr.bf16.mxu0 0
    %798 = vmatpush1.bf16.msra.mxu0 0
    %799 = vmatprep.subr.bf16.mxu0 0
    %800 = vmatpush1.bf16.msra.mxu0 0
    %801 = vmatprep.subr.bf16.mxu0 0
    %802 = vmatpush1.bf16.msra.mxu0 0
    %803 = vmatprep.subr.bf16.mxu0 0
    %804 = vmatpush1.bf16.msra.mxu0 0
    %805 = vmatprep.subr.bf16.mxu0 0
    %806 = vmatpush1.bf16.msra.mxu0 0
    %807 = vmatprep.subr.bf16.mxu0 0
    %808 = vmatpush1.bf16.msra.mxu0 0
    %809 = vmatprep.subr.bf16.mxu0 0
    %810 = vmatpush1.bf16.msra.mxu0 0
    %811 = vmatprep.subr.bf16.mxu0 0
    %812 = vmatpush1.bf16.msra.mxu0 0
    %813 = vmatprep.subr.bf16.mxu0 0
    %814 = vmatpush1.bf16.msra.mxu0 0
    %815 = vmatprep.subr.bf16.mxu0 0
    %816 = vmatpush1.bf16.msra.mxu0 0
    %817 = vmatprep.subr.bf16.mxu0 0
    %818 = vmatpush1.bf16.msra.mxu0 0
    %819 = vmatprep.subr.bf16.mxu0 0
    %820 = vmatpush1.bf16.msra.mxu0 0
    %821 = vmatprep.subr.bf16.mxu0 0
    %822 = vmatpush1.bf16.msra.mxu0 0
    %823 = vmatprep.mubr.bf16.mxu0 0
    %824 = vmatmul.mubr.bf16.gmra.mrb[0].mxu0 %v783
    %v825 = vpop.f32.mrb[0].mxu0
    %v826 = vadd.f32 0.0, %v825
    %v827 = vpop.f32.mrb[0].mxu0
    %v828 = vpop.f32.mrb[0].mxu0
    %v829 = vadd.f32 0.0, %v828
    %v830 = vpop.f32.mrb[0].mxu0
    %831 = vmatprep.mubr.bf16.mxu0 0
    %832 = vmatmul.mubr.bf16.gmra.mrb[0].mxu0 %v786
    %v833 = vpop.f32.mrb[0].mxu0
    %v834 = vadd.f32 0.0, %v833
    %v835 = vpop.f32.mrb[0].mxu0
    %v836 = vpop.f32.mrb[0].mxu0
    %v837 = vpop.f32.mrb[0].mxu0
    %838 = vdwg.mxu0
    %v842 = vunpack.c.l.b16 %v670
    %v843 = vunpack.c.l.b16 %v671
    %v844 = vunpack.c.l.b16 %v672
    %v845 = vpack.c.b16 %v843, %v842
    %v846 = vpack.c.b16 %v844, %v844
    %v848 = vsel %vm507, %v845, 0
    %v851 = vsel %vm507, %v846, 0
    %v854 = vsel %vm223, %v674, 0
    %856 = vmatprep.subr.bf16.mxu0 0
    %857 = vmatpush1.bf16.msra.mxu0 %v673
    %858 = vmatprep.subr.bf16.mxu0 0
    %859 = vmatpush1.bf16.msra.mxu0 %v854
    %860 = vmatprep.subr.bf16.mxu0 0
    %861 = vmatpush1.bf16.msra.mxu0 0
    %862 = vmatprep.subr.bf16.mxu0 0
    %863 = vmatpush1.bf16.msra.mxu0 0
    %864 = vmatprep.subr.bf16.mxu0 0
    %865 = vmatpush1.bf16.msra.mxu0 0
    %866 = vmatprep.subr.bf16.mxu0 0
    %867 = vmatpush1.bf16.msra.mxu0 0
    %868 = vmatprep.subr.bf16.mxu0 0
    %869 = vmatpush1.bf16.msra.mxu0 0
    %870 = vmatprep.subr.bf16.mxu0 0
    %871 = vmatpush1.bf16.msra.mxu0 0
    %872 = vmatprep.subr.bf16.mxu0 0
    %873 = vmatpush1.bf16.msra.mxu0 0
    %874 = vmatprep.subr.bf16.mxu0 0
    %875 = vmatpush1.bf16.msra.mxu0 0
    %876 = vmatprep.subr.bf16.mxu0 0
    %877 = vmatpush1.bf16.msra.mxu0 0
    %878 = vmatprep.subr.bf16.mxu0 0
    %879 = vmatpush1.bf16.msra.mxu0 0
    %880 = vmatprep.subr.bf16.mxu0 0
    %881 = vmatpush1.bf16.msra.mxu0 0
    %882 = vmatprep.subr.bf16.mxu0 0
    %883 = vmatpush1.bf16.msra.mxu0 0
    %884 = vmatprep.subr.bf16.mxu0 0
    %885 = vmatpush1.bf16.msra.mxu0 0
    %886 = vmatprep.subr.bf16.mxu0 0
    %887 = vmatpush1.bf16.msra.mxu0 0
    %888 = vmatprep.mubr.bf16.mxu0 0
    %889 = vmatmul.mubr.bf16.gmra.mrb[0].mxu0 %v848
    %v890 = vpop.f32.mrb[0].mxu0
    %v891 = vadd.f32 %v826, %v890
    %v892 = vpop.f32.mrb[0].mxu0
    %v893 = vpop.f32.mrb[0].mxu0
    %v894 = vadd.f32 %v829, %v893
    %v895 = vpop.f32.mrb[0].mxu0
    %896 = vmatprep.mubr.bf16.mxu0 0
    %897 = vmatmul.mubr.bf16.gmra.mrb[0].mxu0 %v851
    %v898 = vpop.f32.mrb[0].mxu0
    %v899 = vadd.f32 %v834, %v898
    %v900 = vpop.f32.mrb[0].mxu0
    %v901 = vpop.f32.mrb[0].mxu0
    %v902 = vpop.f32.mrb[0].mxu0
    %903 = vdwg.mxu0
    %s904 = scalar_lea.vmem %s21, 144
    %v905 = vld [vmem:[%s904] sm:$0xff]
    %v906 = vld [vmem:[%s904 + $0x8] sm:$0xff]
    %v907 = vld [vmem:[%s904 + $0x10] sm:$0xff]
    %v908 = vld [vmem:[%s904 + $0x18] sm:$0xff]
    %v909 = vld [vmem:[%s904 + $0x20] sm:$0xff]
    %v910 = vld [vmem:[%s904 + $0x28] sm:$0xff]
    %v911 = vld [vmem:[%s904 + $0x30] sm:$0xff]
    %v912 = vld [vmem:[%s904 + $0x38] sm:$0xff]
    %v913 = vld [vmem:[%s904 + $0x40] sm:$0x3]
    %v915 = vsel %vm223, %v913, 0
    %917 = vmatprep.subr.mxu0 0.0
    %918 = vmatpush1.msra.mxu0 %v905
    %919 = vmatprep.subr.mxu0 0.0
    %920 = vmatpush1.msra.mxu0 %v906
    %921 = vmatprep.subr.mxu0 0.0
    %922 = vmatpush1.msra.mxu0 %v907
    %923 = vmatprep.subr.mxu0 0.0
    %924 = vmatpush1.msra.mxu0 %v908
    %925 = vmatprep.subr.mxu0 0.0
    %926 = vmatpush1.msra.mxu0 %v909
    %927 = vmatprep.subr.mxu0 0.0
    %928 = vmatpush1.msra.mxu0 %v910
    %929 = vmatprep.subr.mxu0 0.0
    %930 = vmatpush1.msra.mxu0 %v911
    %931 = vmatprep.subr.mxu0 0.0
    %932 = vmatpush1.msra.mxu0 %v912
    %933 = vmatprep.subr.mxu0 0.0
    %934 = vmatpush1.msra.mxu0 %v915
    %935 = vmatprep.subr.mxu0 0.0
    %936 = vmatpush1.msra.mxu0 0.0
    %937 = vmatprep.subr.mxu0 0.0
    %938 = vmatpush1.msra.mxu0 0.0
    %939 = vmatprep.subr.mxu0 0.0
    %940 = vmatpush1.msra.mxu0 0.0
    %941 = vmatprep.subr.mxu0 0.0
    %942 = vmatpush1.msra.mxu0 0.0
    %943 = vmatprep.subr.mxu0 0.0
    %944 = vmatpush1.msra.mxu0 0.0
    %945 = vmatprep.subr.mxu0 0.0
    %946 = vmatpush1.msra.mxu0 0.0
    %947 = vmatprep.subr.mxu0 0.0
    %948 = vmatpush1.msra.mxu0 0.0
    %949 = vmatprep.subr.mxu0 0.0
    %950 = vmatpush1.msra.mxu0 0.0
    %951 = vmatprep.subr.mxu0 0.0
    %952 = vmatpush1.msra.mxu0 0.0
    %953 = vmatprep.subr.mxu0 0.0
    %954 = vmatpush1.msra.mxu0 0.0
    %955 = vmatprep.subr.mxu0 0.0
    %956 = vmatpush1.msra.mxu0 0.0
    %957 = vmatprep.subr.mxu0 0.0
    %958 = vmatpush1.msra.mxu0 0.0
    %959 = vmatprep.subr.mxu0 0.0
    %960 = vmatpush1.msra.mxu0 0.0
    %961 = vmatprep.subr.mxu0 0.0
    %962 = vmatpush1.msra.mxu0 0.0
    %963 = vmatprep.subr.mxu0 0.0
    %964 = vmatpush1.msra.mxu0 0.0
    %965 = vmatprep.subr.mxu0 0.0
    %966 = vmatpush1.msra.mxu0 0.0
    %967 = vmatprep.subr.mxu0 0.0
    %968 = vmatpush1.msra.mxu0 0.0
    %969 = vmatprep.subr.mxu0 0.0
    %970 = vmatpush1.msra.mxu0 0.0
    %971 = vmatprep.subr.mxu0 0.0
    %972 = vmatpush1.msra.mxu0 0.0
    %973 = vmatprep.subr.mxu0 0.0
    %974 = vmatpush1.msra.mxu0 0.0
    %975 = vmatprep.subr.mxu0 0.0
    %976 = vmatpush1.msra.mxu0 0.0
    %977 = vmatprep.subr.mxu0 0.0
    %978 = vmatpush1.msra.mxu0 0.0
    %979 = vmatprep.subr.mxu0 0.0
    %980 = vmatpush1.msra.mxu0 0.0
    %981 = vmatprep.mubr.f32.mxu0 0.0
    %982 = vmatmul.mubr.f32.gmra.mrb[0].mxu0 %v579
    %v983 = vpop.f32.mrb[0].mxu0
    %v984 = vadd.f32 0.0, %v983
    %v985 = vpop.f32.mrb[0].mxu0
    %986 = vmatprep.mubr.f32.mxu0 0.0
    %987 = vmatmul.mubr.f32.gmra.mrb[0].mxu0 %v582
    %v988 = vpop.f32.mrb[0].mxu0
    %v989 = vadd.f32 0.0, %v988
    %v990 = vpop.f32.mrb[0].mxu0
    %991 = vmatprep.mubr.f32.mxu0 0.0
    %992 = vmatmul.mubr.f32.gmra.mrb[0].mxu0 %v585
    %v993 = vpop.f32.mrb[0].mxu0
    %v994 = vadd.f32 0.0, %v993
    %v995 = vpop.f32.mrb[0].mxu0
    %996 = vdwg.mxu0
    %s997 = scalar_lea.vmem %s13, 24
    %v998 = vld [vmem:[%s997] sm:$0xf]
    %v999 = vld [vmem:[%s997 + $0x4] sm:$0xf]
    %v1000 = vld [vmem:[%s997 + $0x8] sm:$0x3]
    %v1001 = vpack.c.bf16 %v989, %v984
    %v1002 = vpack.c.bf16 %v994, %v994
    %v1006 = vunpack.c.l.b16 %v998
    %v1007 = vunpack.c.l.b16 %v999
    %v1008 = vunpack.c.l.b16 %v1000
    %v1009 = vpack.c.b16 %v1007, %v1006
    %v1010 = vpack.c.b16 %v1008, %v1008
    %v1012 = vsel %vm507, %v1009, 0
    %v1015 = vsel %vm507, %v1010, 0
    %v1018 = vsel %vm223, %v1002, 0
    %1020 = vmatprep.subr.bf16.mxu0 0
    %1021 = vmatpush1.bf16.msra.mxu0 %v1001
    %1022 = vmatprep.subr.bf16.mxu0 0
    %1023 = vmatpush1.bf16.msra.mxu0 %v1018
    %1024 = vmatprep.subr.bf16.mxu0 0
    %1025 = vmatpush1.bf16.msra.mxu0 0
    %1026 = vmatprep.subr.bf16.mxu0 0
    %1027 = vmatpush1.bf16.msra.mxu0 0
    %1028 = vmatprep.subr.bf16.mxu0 0
    %1029 = vmatpush1.bf16.msra.mxu0 0
    %1030 = vmatprep.subr.bf16.mxu0 0
    %1031 = vmatpush1.bf16.msra.mxu0 0
    %1032 = vmatprep.subr.bf16.mxu0 0
    %1033 = vmatpush1.bf16.msra.mxu0 0
    %1034 = vmatprep.subr.bf16.mxu0 0
    %1035 = vmatpush1.bf16.msra.mxu0 0
    %1036 = vmatprep.subr.bf16.mxu0 0
    %1037 = vmatpush1.bf16.msra.mxu0 0
    %1038 = vmatprep.subr.bf16.mxu0 0
    %1039 = vmatpush1.bf16.msra.mxu0 0
    %1040 = vmatprep.subr.bf16.mxu0 0
    %1041 = vmatpush1.bf16.msra.mxu0 0
    %1042 = vmatprep.subr.bf16.mxu0 0
    %1043 = vmatpush1.bf16.msra.mxu0 0
    %1044 = vmatprep.subr.bf16.mxu0 0
    %1045 = vmatpush1.bf16.msra.mxu0 0
    %1046 = vmatprep.subr.bf16.mxu0 0
    %1047 = vmatpush1.bf16.msra.mxu0 0
    %1048 = vmatprep.subr.bf16.mxu0 0
    %1049 = vmatpush1.bf16.msra.mxu0 0
    %1050 = vmatprep.subr.bf16.mxu0 0
    %1051 = vmatpush1.bf16.msra.mxu0 0
    %1052 = vmatprep.mubr.bf16.mxu0 0
    %1053 = vmatmul.mubr.bf16.gmra.mrb[0].mxu0 %v1012
    %v1054 = vpop.f32.mrb[0].mxu0
    %v1055 = vadd.f32 0.0, %v1054
    %v1056 = vpop.f32.mrb[0].mxu0
    %v1057 = vpop.f32.mrb[0].mxu0
    %v1058 = vadd.f32 0.0, %v1057
    %v1059 = vpop.f32.mrb[0].mxu0
    %1060 = vmatprep.mubr.bf16.mxu0 0
    %1061 = vmatmul.mubr.bf16.gmra.mrb[0].mxu0 %v1015
    %v1062 = vpop.f32.mrb[0].mxu0
    %v1063 = vadd.f32 0.0, %v1062
    %v1064 = vpop.f32.mrb[0].mxu0
    %v1065 = vpop.f32.mrb[0].mxu0
    %v1066 = vpop.f32.mrb[0].mxu0
    %1067 = vdwg.mxu0
    %v1068 = vadd.f32 %v891, %v1055
    %v1069 = vadd.f32 %v894, %v1058
    %v1070 = vadd.f32 %v899, %v1063
    %v1071 = vld [vmem:[%s15] sm:$0xff]
    %v1072 = vld [vmem:[%s15 + $0x8] sm:$0xff]
    %v1073 = vld [vmem:[%s15 + $0x10] sm:$0xf]
    %1075 = vset.pattern.permute.xlu0 0
    %1076 = vperm.xlu0 %1075, %v1071
    %v1077 = vpop.permute.xlu0 %1076
    %1080 = vset.pattern.permute.xlu0 0
    %1081 = vperm.xlu0 %1080, %v1072
    %v1082 = vpop.permute.xlu0 %1081
    %1085 = vset.pattern.permute.xlu0 0
    %1086 = vperm.xlu0 %1085, %v1073
    %v1087 = vpop.permute.xlu0 %1086
    %v1089 = vadd.f32 %v1068, %v1077
    %v1090 = vadd.f32 %v1069, %v1082
    %v1091 = vadd.f32 %v1070, %v1087
    %v1092 = vmax.f32 %v1089, 0.0
    %v1093 = vmax.f32 %v1090, 0.0
    %v1094 = vmax.f32 %v1091, 0.0
    %v1095 = vld [vmem:[%s17] sm:$0xf]
    %v1096 = vld [vmem:[%s17 + $0x4] sm:$0xf]
    %v1097 = vld [vmem:[%s17 + $0x8] sm:$0x3]
    %v1098 = vpack.c.bf16 %v1093, %v1092
    %v1099 = vpack.c.bf16 %v1094, %v1094
    %v1100 = vld [vmem:[%s19] sm:$0xff]
    %v1101 = vld [vmem:[%s19 + $0x8] sm:$0xff]
    %v1102 = vld [vmem:[%s19 + $0x10] sm:$0xf]
    %1104 = vset.pattern.permute.xlu0 0
    %1105 = vperm.xlu0 %1104, %v1100
    %v1106 = vpop.permute.xlu0 %1105
    %1109 = vset.pattern.permute.xlu0 0
    %1110 = vperm.xlu0 %1109, %v1101
    %v1111 = vpop.permute.xlu0 %1110
    %1114 = vset.pattern.permute.xlu0 0
    %1115 = vperm.xlu0 %1114, %v1102
    %v1116 = vpop.permute.xlu0 %1115
    %v1121 = vunpack.c.l.b16 %v1095
    %v1122 = vunpack.c.l.b16 %v1096
    %v1123 = vunpack.c.l.b16 %v1097
    %v1124 = vpack.c.b16 %v1122, %v1121
    %v1125 = vpack.c.b16 %v1123, %v1123
    %v1127 = vsel %vm507, %v1124, 0
    %v1130 = vsel %vm507, %v1125, 0
    %v1133 = vsel %vm223, %v1099, 0
    %1135 = vmatprep.subr.bf16.mxu0 0
    %1136 = vmatpush1.bf16.msra.mxu0 %v1098
    %1137 = vmatprep.subr.bf16.mxu0 0
    %1138 = vmatpush1.bf16.msra.mxu0 %v1133
    %1139 = vmatprep.subr.bf16.mxu0 0
    %1140 = vmatpush1.bf16.msra.mxu0 0
    %1141 = vmatprep.subr.bf16.mxu0 0
    %1142 = vmatpush1.bf16.msra.mxu0 0
    %1143 = vmatprep.subr.bf16.mxu0 0
    %1144 = vmatpush1.bf16.msra.mxu0 0
    %1145 = vmatprep.subr.bf16.mxu0 0
    %1146 = vmatpush1.bf16.msra.mxu0 0
    %1147 = vmatprep.subr.bf16.mxu0 0
    %1148 = vmatpush1.bf16.msra.mxu0 0
    %1149 = vmatprep.subr.bf16.mxu0 0
    %1150 = vmatpush1.bf16.msra.mxu0 0
    %1151 = vmatprep.subr.bf16.mxu0 0
    %1152 = vmatpush1.bf16.msra.mxu0 0
    %1153 = vmatprep.subr.bf16.mxu0 0
    %1154 = vmatpush1.bf16.msra.mxu0 0
    %1155 = vmatprep.subr.bf16.mxu0 0
    %1156 = vmatpush1.bf16.msra.mxu0 0
    %1157 = vmatprep.subr.bf16.mxu0 0
    %1158 = vmatpush1.bf16.msra.mxu0 0
    %1159 = vmatprep.subr.bf16.mxu0 0
    %1160 = vmatpush1.bf16.msra.mxu0 0
    %1161 = vmatprep.subr.bf16.mxu0 0
    %1162 = vmatpush1.bf16.msra.mxu0 0
    %1163 = vmatprep.subr.bf16.mxu0 0
    %1164 = vmatpush1.bf16.msra.mxu0 0
    %1165 = vmatprep.subr.bf16.mxu0 0
    %1166 = vmatpush1.bf16.msra.mxu0 0
    %1167 = vmatprep.mubr.bf16.mxu0 0
    %1168 = vmatmul.mubr.bf16.gmra.mrb[0].mxu0 %v1127
    %v1169 = vpop.f32.mrb[0].mxu0
    %v1170 = vadd.f32 %v1106, %v1169
    %v1171 = vpop.f32.mrb[0].mxu0
    %v1172 = vpop.f32.mrb[0].mxu0
    %v1173 = vadd.f32 %v1111, %v1172
    %v1174 = vpop.f32.mrb[0].mxu0
    %1175 = vmatprep.mubr.bf16.mxu0 0
    %1176 = vmatmul.mubr.bf16.gmra.mrb[0].mxu0 %v1130
    %v1177 = vpop.f32.mrb[0].mxu0
    %v1178 = vadd.f32 %v1116, %v1177
    %v1179 = vpop.f32.mrb[0].mxu0
    %v1180 = vpop.f32.mrb[0].mxu0
    %v1181 = vpop.f32.mrb[0].mxu0
    %1182 = vdwg.mxu0
    %v1183 = vadd.f32 %v1170, %v473
    %v1184 = vadd.f32 %v1173, %v474
    %v1185 = vadd.f32 %v1178, %v475
    %v1186 = vmax.f32 %v1183, 0.0
    %v1187 = vmax.f32 %v1184, 0.0
    %v1188 = vmax.f32 %v1185, 0.0
    %v1189 = vld [vmem:[%s23] sm:$0xf]
    %v1190 = vld [vmem:[%s23 + $0x4] sm:$0xf]
    %v1191 = vld [vmem:[%s23 + $0x8] sm:$0x3]
    %v1192 = vpack.c.bf16 %v1187, %v1186
    %v1193 = vpack.c.bf16 %v1188, %v1188
    %v1194 = vld [vmem:[%s25] sm:$0xff]
    %v1195 = vld [vmem:[%s25 + $0x8] sm:$0xff]
    %v1196 = vld [vmem:[%s25 + $0x10] sm:$0xf]
    %1198 = vset.pattern.permute.xlu0 0
    %1199 = vperm.xlu0 %1198, %v1194
    %v1200 = vpop.permute.xlu0 %1199
    %1203 = vset.pattern.permute.xlu0 0
    %1204 = vperm.xlu0 %1203, %v1195
    %v1205 = vpop.permute.xlu0 %1204
    %1208 = vset.pattern.permute.xlu0 0
    %1209 = vperm.xlu0 %1208, %v1196
    %v1210 = vpop.permute.xlu0 %1209
    %v1215 = vunpack.c.l.b16 %v1189
    %v1216 = vunpack.c.l.b16 %v1190
    %v1217 = vunpack.c.l.b16 %v1191
    %v1218 = vpack.c.b16 %v1216, %v1215
    %v1219 = vpack.c.b16 %v1217, %v1217
    %v1221 = vsel %vm507, %v1218, 0
    %v1224 = vsel %vm507, %v1219, 0
    %v1227 = vsel %vm223, %v1193, 0
    %1229 = vmatprep.subr.bf16.mxu0 0
    %1230 = vmatpush1.bf16.msra.mxu0 %v1192
    %1231 = vmatprep.subr.bf16.mxu0 0
    %1232 = vmatpush1.bf16.msra.mxu0 %v1227
    %1233 = vmatprep.subr.bf16.mxu0 0
    %1234 = vmatpush1.bf16.msra.mxu0 0
    %1235 = vmatprep.subr.bf16.mxu0 0
    %1236 = vmatpush1.bf16.msra.mxu0 0
    %1237 = vmatprep.subr.bf16.mxu0 0
    %1238 = vmatpush1.bf16.msra.mxu0 0
    %1239 = vmatprep.subr.bf16.mxu0 0
    %1240 = vmatpush1.bf16.msra.mxu0 0
    %1241 = vmatprep.subr.bf16.mxu0 0
    %1242 = vmatpush1.bf16.msra.mxu0 0
    %1243 = vmatprep.subr.bf16.mxu0 0
    %1244 = vmatpush1.bf16.msra.mxu0 0
    %1245 = vmatprep.subr.bf16.mxu0 0
    %1246 = vmatpush1.bf16.msra.mxu0 0
    %1247 = vmatprep.subr.bf16.mxu0 0
    %1248 = vmatpush1.bf16.msra.mxu0 0
    %1249 = vmatprep.subr.bf16.mxu0 0
    %1250 = vmatpush1.bf16.msra.mxu0 0
    %1251 = vmatprep.subr.bf16.mxu0 0
    %1252 = vmatpush1.bf16.msra.mxu0 0
    %1253 = vmatprep.subr.bf16.mxu0 0
    %1254 = vmatpush1.bf16.msra.mxu0 0
    %1255 = vmatprep.subr.bf16.mxu0 0
    %1256 = vmatpush1.bf16.msra.mxu0 0
    %1257 = vmatprep.subr.bf16.mxu0 0
    %1258 = vmatpush1.bf16.msra.mxu0 0
    %1259 = vmatprep.subr.bf16.mxu0 0
    %1260 = vmatpush1.bf16.msra.mxu0 0
    %1261 = vmatprep.mubr.bf16.mxu0 0
    %1262 = vmatmul.mubr.bf16.gmra.mrb[0].mxu0 %v1221
    %v1263 = vpop.f32.mrb[0].mxu0
    %v1264 = vadd.f32 %v1200, %v1263
    %v1265 = vpop.f32.mrb[0].mxu0
    %v1266 = vpop.f32.mrb[0].mxu0
    %v1267 = vadd.f32 %v1205, %v1266
    %v1268 = vpop.f32.mrb[0].mxu0
    %1269 = vmatprep.mubr.bf16.mxu0 0
    %1270 = vmatmul.mubr.bf16.gmra.mrb[0].mxu0 %v1224
    %v1271 = vpop.f32.mrb[0].mxu0
    %v1272 = vadd.f32 %v1210, %v1271
    %v1273 = vpop.f32.mrb[0].mxu0
    %v1274 = vpop.f32.mrb[0].mxu0
    %v1275 = vpop.f32.mrb[0].mxu0
    %1276 = vdwg.mxu0
    %v1277 = vmax.f32 %v1264, 0.0
    %v1278 = vmax.f32 %v1267, 0.0
    %v1279 = vmax.f32 %v1272, 0.0
    %v1280 = vld [vmem:[%s35] sm:$0xff]
    %v1281 = vld [vmem:[%s35 + $0x8] sm:$0xff]
    %v1282 = vld [vmem:[%s35 + $0x10] sm:$0xff]
    %v1283 = vld [vmem:[%s35 + $0x18] sm:$0xff]
    %v1284 = vld [vmem:[%s35 + $0x20] sm:$0xff]
    %v1285 = vld [vmem:[%s35 + $0x28] sm:$0xff]
    %v1286 = vld [vmem:[%s35 + $0x30] sm:$0xff]
    %v1287 = vld [vmem:[%s35 + $0x38] sm:$0xff]
    %v1288 = vld [vmem:[%s35 + $0x40] sm:$0x3]
    %v1290 = vsel %vm577, %v1277, 0
    %v1293 = vsel %vm577, %v1278, 0
    %v1296 = vsel %vm577, %v1279, 0
    %v1299 = vsel %vm223, %v1288, 0
    %1301 = vmatprep.subr.mxu0 0.0
    %1302 = vmatpush1.msra.mxu0 %v1280
    %1303 = vmatprep.subr.mxu0 0.0
    %1304 = vmatpush1.msra.mxu0 %v1281
    %1305 = vmatprep.subr.mxu0 0.0
    %1306 = vmatpush1.msra.mxu0 %v1282
    %1307 = vmatprep.subr.mxu0 0.0
    %1308 = vmatpush1.msra.mxu0 %v1283
    %1309 = vmatprep.subr.mxu0 0.0
    %1310 = vmatpush1.msra.mxu0 %v1284
    %1311 = vmatprep.subr.mxu0 0.0
    %1312 = vmatpush1.msra.mxu0 %v1285
    %1313 = vmatprep.subr.mxu0 0.0
    %1314 = vmatpush1.msra.mxu0 %v1286
    %1315 = vmatprep.subr.mxu0 0.0
    %1316 = vmatpush1.msra.mxu0 %v1287
    %1317 = vmatprep.subr.mxu0 0.0
    %1318 = vmatpush1.msra.mxu0 %v1299
    %1319 = vmatprep.subr.mxu0 0.0
    %1320 = vmatpush1.msra.mxu0 0.0
    %1321 = vmatprep.subr.mxu0 0.0
    %1322 = vmatpush1.msra.mxu0 0.0
    %1323 = vmatprep.subr.mxu0 0.0
    %1324 = vmatpush1.msra.mxu0 0.0
    %1325 = vmatprep.subr.mxu0 0.0
    %1326 = vmatpush1.msra.mxu0 0.0
    %1327 = vmatprep.subr.mxu0 0.0
    %1328 = vmatpush1.msra.mxu0 0.0
    %1329 = vmatprep.subr.mxu0 0.0
    %1330 = vmatpush1.msra.mxu0 0.0
    %1331 = vmatprep.subr.mxu0 0.0
    %1332 = vmatpush1.msra.mxu0 0.0
    %1333 = vmatprep.subr.mxu0 0.0
    %1334 = vmatpush1.msra.mxu0 0.0
    %1335 = vmatprep.subr.mxu0 0.0
    %1336 = vmatpush1.msra.mxu0 0.0
    %1337 = vmatprep.subr.mxu0 0.0
    %1338 = vmatpush1.msra.mxu0 0.0
    %1339 = vmatprep.subr.mxu0 0.0
    %1340 = vmatpush1.msra.mxu0 0.0
    %1341 = vmatprep.subr.mxu0 0.0
    %1342 = vmatpush1.msra.mxu0 0.0
    %1343 = vmatprep.subr.mxu0 0.0
    %1344 = vmatpush1.msra.mxu0 0.0
    %1345 = vmatprep.subr.mxu0 0.0
    %1346 = vmatpush1.msra.mxu0 0.0
    %1347 = vmatprep.subr.mxu0 0.0
    %1348 = vmatpush1.msra.mxu0 0.0
    %1349 = vmatprep.subr.mxu0 0.0
    %1350 = vmatpush1.msra.mxu0 0.0
    %1351 = vmatprep.subr.mxu0 0.0
    %1352 = vmatpush1.msra.mxu0 0.0
    %1353 = vmatprep.subr.mxu0 0.0
    %1354 = vmatpush1.msra.mxu0 0.0
    %1355 = vmatprep.subr.mxu0 0.0
    %1356 = vmatpush1.msra.mxu0 0.0
    %1357 = vmatprep.subr.mxu0 0.0
    %1358 = vmatpush1.msra.mxu0 0.0
    %1359 = vmatprep.subr.mxu0 0.0
    %1360 = vmatpush1.msra.mxu0 0.0
    %1361 = vmatprep.subr.mxu0 0.0
    %1362 = vmatpush1.msra.mxu0 0.0
    %1363 = vmatprep.subr.mxu0 0.0
    %1364 = vmatpush1.msra.mxu0 0.0
    %1365 = vmatprep.mubr.f32.mxu0 0.0
    %1366 = vmatmul.mubr.f32.gmra.mrb[0].mxu0 %v1290
    %v1367 = vpop.f32.mrb[0].mxu0
    %v1368 = vadd.f32 0.0, %v1367
    %v1369 = vpop.f32.mrb[0].mxu0
    %1370 = vmatprep.mubr.f32.mxu0 0.0
    %1371 = vmatmul.mubr.f32.gmra.mrb[0].mxu0 %v1293
    %v1372 = vpop.f32.mrb[0].mxu0
    %v1373 = vadd.f32 0.0, %v1372
    %v1374 = vpop.f32.mrb[0].mxu0
    %1375 = vmatprep.mubr.f32.mxu0 0.0
    %1376 = vmatmul.mubr.f32.gmra.mrb[0].mxu0 %v1296
    %v1377 = vpop.f32.mrb[0].mxu0
    %v1378 = vadd.f32 0.0, %v1377
    %v1379 = vpop.f32.mrb[0].mxu0
    %1380 = vdwg.mxu0
    %v1381 = vld [vmem:[%s27] sm:$0xf]
    %v1382 = vld [vmem:[%s27 + $0x4] sm:$0xf]
    %v1383 = vld [vmem:[%s27 + $0x8] sm:$0x3]
    %v1384 = vpack.c.bf16 %v1373, %v1368
    %v1385 = vpack.c.bf16 %v1378, %v1378
    %s1386 = scalar_lea.vmem %s35, 72
    %v1387 = vld [vmem:[%s1386] sm:$0xff]
    %v1388 = vld [vmem:[%s1386 + $0x8] sm:$0xff]
    %v1389 = vld [vmem:[%s1386 + $0x10] sm:$0xff]
    %v1390 = vld [vmem:[%s1386 + $0x18] sm:$0xff]
    %v1391 = vld [vmem:[%s1386 + $0x20] sm:$0xff]
    %v1392 = vld [vmem:[%s1386 + $0x28] sm:$0xff]
    %v1393 = vld [vmem:[%s1386 + $0x30] sm:$0xff]
    %v1394 = vld [vmem:[%s1386 + $0x38] sm:$0xff]
    %v1395 = vld [vmem:[%s1386 + $0x40] sm:$0x3]
    %v1397 = vsel %vm223, %v1395, 0
    %1399 = vmatprep.subr.mxu0 0.0
    %1400 = vmatpush1.msra.mxu0 %v1387
    %1401 = vmatprep.subr.mxu0 0.0
    %1402 = vmatpush1.msra.mxu0 %v1388
    %1403 = vmatprep.subr.mxu0 0.0
    %1404 = vmatpush1.msra.mxu0 %v1389
    %1405 = vmatprep.subr.mxu0 0.0
    %1406 = vmatpush1.msra.mxu0 %v1390
    %1407 = vmatprep.subr.mxu0 0.0
    %1408 = vmatpush1.msra.mxu0 %v1391
    %1409 = vmatprep.subr.mxu0 0.0
    %1410 = vmatpush1.msra.mxu0 %v1392
    %1411 = vmatprep.subr.mxu0 0.0
    %1412 = vmatpush1.msra.mxu0 %v1393
    %1413 = vmatprep.subr.mxu0 0.0
    %1414 = vmatpush1.msra.mxu0 %v1394
    %1415 = vmatprep.subr.mxu0 0.0
    %1416 = vmatpush1.msra.mxu0 %v1397
    %1417 = vmatprep.subr.mxu0 0.0
    %1418 = vmatpush1.msra.mxu0 0.0
    %1419 = vmatprep.subr.mxu0 0.0
    %1420 = vmatpush1.msra.mxu0 0.0
    %1421 = vmatprep.subr.mxu0 0.0
    %1422 = vmatpush1.msra.mxu0 0.0
    %1423 = vmatprep.subr.mxu0 0.0
    %1424 = vmatpush1.msra.mxu0 0.0
    %1425 = vmatprep.subr.mxu0 0.0
    %1426 = vmatpush1.msra.mxu0 0.0
    %1427 = vmatprep.subr.mxu0 0.0
    %1428 = vmatpush1.msra.mxu0 0.0
    %1429 = vmatprep.subr.mxu0 0.0
    %1430 = vmatpush1.msra.mxu0 0.0
    %1431 = vmatprep.subr.mxu0 0.0
    %1432 = vmatpush1.msra.mxu0 0.0
    %1433 = vmatprep.subr.mxu0 0.0
    %1434 = vmatpush1.msra.mxu0 0.0
    %1435 = vmatprep.subr.mxu0 0.0
    %1436 = vmatpush1.msra.mxu0 0.0
    %1437 = vmatprep.subr.mxu0 0.0
    %1438 = vmatpush1.msra.mxu0 0.0
    %1439 = vmatprep.subr.mxu0 0.0
    %1440 = vmatpush1.msra.mxu0 0.0
    %1441 = vmatprep.subr.mxu0 0.0
    %1442 = vmatpush1.msra.mxu0 0.0
    %1443 = vmatprep.subr.mxu0 0.0
    %1444 = vmatpush1.msra.mxu0 0.0
    %1445 = vmatprep.subr.mxu0 0.0
    %1446 = vmatpush1.msra.mxu0 0.0
    %1447 = vmatprep.subr.mxu0 0.0
    %1448 = vmatpush1.msra.mxu0 0.0
    %1449 = vmatprep.subr.mxu0 0.0
    %1450 = vmatpush1.msra.mxu0 0.0
    %1451 = vmatprep.subr.mxu0 0.0
    %1452 = vmatpush1.msra.mxu0 0.0
    %1453 = vmatprep.subr.mxu0 0.0
    %1454 = vmatpush1.msra.mxu0 0.0
    %1455 = vmatprep.subr.mxu0 0.0
    %1456 = vmatpush1.msra.mxu0 0.0
    %1457 = vmatprep.subr.mxu0 0.0
    %1458 = vmatpush1.msra.mxu0 0.0
    %1459 = vmatprep.subr.mxu0 0.0
    %1460 = vmatpush1.msra.mxu0 0.0
    %1461 = vmatprep.subr.mxu0 0.0
    %1462 = vmatpush1.msra.mxu0 0.0
    %1463 = vmatprep.mubr.f32.mxu0 0.0
    %1464 = vmatmul.mubr.f32.gmra.mrb[0].mxu0 %v1290
    %v1465 = vpop.f32.mrb[0].mxu0
    %v1466 = vadd.f32 0.0, %v1465
    %v1467 = vpop.f32.mrb[0].mxu0
    %1468 = vmatprep.mubr.f32.mxu0 0.0
    %1469 = vmatmul.mubr.f32.gmra.mrb[0].mxu0 %v1293
    %v1470 = vpop.f32.mrb[0].mxu0
    %v1471 = vadd.f32 0.0, %v1470
    %v1472 = vpop.f32.mrb[0].mxu0
    %1473 = vmatprep.mubr.f32.mxu0 0.0
    %1474 = vmatmul.mubr.f32.gmra.mrb[0].mxu0 %v1296
    %v1475 = vpop.f32.mrb[0].mxu0
    %v1476 = vadd.f32 0.0, %v1475
    %v1477 = vpop.f32.mrb[0].mxu0
    %1478 = vdwg.mxu0
    %s1479 = scalar_lea.vmem %s27, 12
    %v1480 = vld [vmem:[%s1479] sm:$0xf]
    %v1481 = vld [vmem:[%s1479 + $0x4] sm:$0xf]
    %v1482 = vld [vmem:[%s1479 + $0x8] sm:$0x3]
    %v1483 = vpack.c.bf16 %v1471, %v1466
    %v1484 = vpack.c.bf16 %v1476, %v1476
    %v1488 = vunpack.c.l.b16 %v1480
    %v1489 = vunpack.c.l.b16 %v1481
    %v1490 = vunpack.c.l.b16 %v1482
    %v1491 = vpack.c.b16 %v1489, %v1488
    %v1492 = vpack.c.b16 %v1490, %v1490
    %v1494 = vsel %vm507, %v1491, 0
    %v1497 = vsel %vm507, %v1492, 0
    %v1500 = vsel %vm223, %v1484, 0
    %1502 = vmatprep.subr.bf16.mxu0 0
    %1503 = vmatpush1.bf16.msra.mxu0 %v1483
    %1504 = vmatprep.subr.bf16.mxu0 0
    %1505 = vmatpush1.bf16.msra.mxu0 %v1500
    %1506 = vmatprep.subr.bf16.mxu0 0
    %1507 = vmatpush1.bf16.msra.mxu0 0
    %1508 = vmatprep.subr.bf16.mxu0 0
    %1509 = vmatpush1.bf16.msra.mxu0 0
    %1510 = vmatprep.subr.bf16.mxu0 0
    %1511 = vmatpush1.bf16.msra.mxu0 0
    %1512 = vmatprep.subr.bf16.mxu0 0
    %1513 = vmatpush1.bf16.msra.mxu0 0
    %1514 = vmatprep.subr.bf16.mxu0 0
    %1515 = vmatpush1.bf16.msra.mxu0 0
    %1516 = vmatprep.subr.bf16.mxu0 0
    %1517 = vmatpush1.bf16.msra.mxu0 0
    %1518 = vmatprep.subr.bf16.mxu0 0
    %1519 = vmatpush1.bf16.msra.mxu0 0
    %1520 = vmatprep.subr.bf16.mxu0 0
    %1521 = vmatpush1.bf16.msra.mxu0 0
    %1522 = vmatprep.subr.bf16.mxu0 0
    %1523 = vmatpush1.bf16.msra.mxu0 0
    %1524 = vmatprep.subr.bf16.mxu0 0
    %1525 = vmatpush1.bf16.msra.mxu0 0
    %1526 = vmatprep.subr.bf16.mxu0 0
    %1527 = vmatpush1.bf16.msra.mxu0 0
    %1528 = vmatprep.subr.bf16.mxu0 0
    %1529 = vmatpush1.bf16.msra.mxu0 0
    %1530 = vmatprep.subr.bf16.mxu0 0
    %1531 = vmatpush1.bf16.msra.mxu0 0
    %1532 = vmatprep.subr.bf16.mxu0 0
    %1533 = vmatpush1.bf16.msra.mxu0 0
    %1534 = vmatprep.mubr.bf16.mxu0 0
    %1535 = vmatmul.mubr.bf16.gmra.mrb[0].mxu0 %v1494
    %v1536 = vpop.f32.mrb[0].mxu0
    %v1537 = vadd.f32 0.0, %v1536
    %v1538 = vpop.f32.mrb[0].mxu0
    %v1539 = vpop.f32.mrb[0].mxu0
    %v1540 = vadd.f32 0.0, %v1539
    %v1541 = vpop.f32.mrb[0].mxu0
    %1542 = vmatprep.mubr.bf16.mxu0 0
    %1543 = vmatmul.mubr.bf16.gmra.mrb[0].mxu0 %v1497
    %v1544 = vpop.f32.mrb[0].mxu0
    %v1545 = vadd.f32 0.0, %v1544
    %v1546 = vpop.f32.mrb[0].mxu0
    %v1547 = vpop.f32.mrb[0].mxu0
    %v1548 = vpop.f32.mrb[0].mxu0
    %1549 = vdwg.mxu0
    %v1553 = vunpack.c.l.b16 %v1381
    %v1554 = vunpack.c.l.b16 %v1382
    %v1555 = vunpack.c.l.b16 %v1383
    %v1556 = vpack.c.b16 %v1554, %v1553
    %v1557 = vpack.c.b16 %v1555, %v1555
    %v1559 = vsel %vm507, %v1556, 0
    %v1562 = vsel %vm507, %v1557, 0
    %v1565 = vsel %vm223, %v1385, 0
    %1567 = vmatprep.subr.bf16.mxu0 0
    %1568 = vmatpush1.bf16.msra.mxu0 %v1384
    %1569 = vmatprep.subr.bf16.mxu0 0
    %1570 = vmatpush1.bf16.msra.mxu0 %v1565
    %1571 = vmatprep.subr.bf16.mxu0 0
    %1572 = vmatpush1.bf16.msra.mxu0 0
    %1573 = vmatprep.subr.bf16.mxu0 0
    %1574 = vmatpush1.bf16.msra.mxu0 0
    %1575 = vmatprep.subr.bf16.mxu0 0
    %1576 = vmatpush1.bf16.msra.mxu0 0
    %1577 = vmatprep.subr.bf16.mxu0 0
    %1578 = vmatpush1.bf16.msra.mxu0 0
    %1579 = vmatprep.subr.bf16.mxu0 0
    %1580 = vmatpush1.bf16.msra.mxu0 0
    %1581 = vmatprep.subr.bf16.mxu0 0
    %1582 = vmatpush1.bf16.msra.mxu0 0
    %1583 = vmatprep.subr.bf16.mxu0 0
    %1584 = vmatpush1.bf16.msra.mxu0 0
    %1585 = vmatprep.subr.bf16.mxu0 0
    %1586 = vmatpush1.bf16.msra.mxu0 0
    %1587 = vmatprep.subr.bf16.mxu0 0
    %1588 = vmatpush1.bf16.msra.mxu0 0
    %1589 = vmatprep.subr.bf16.mxu0 0
    %1590 = vmatpush1.bf16.msra.mxu0 0
    %1591 = vmatprep.subr.bf16.mxu0 0
    %1592 = vmatpush1.bf16.msra.mxu0 0
    %1593 = vmatprep.subr.bf16.mxu0 0
    %1594 = vmatpush1.bf16.msra.mxu0 0
    %1595 = vmatprep.subr.bf16.mxu0 0
    %1596 = vmatpush1.bf16.msra.mxu0 0
    %1597 = vmatprep.subr.bf16.mxu0 0
    %1598 = vmatpush1.bf16.msra.mxu0 0
    %1599 = vmatprep.mubr.bf16.mxu0 0
    %1600 = vmatmul.mubr.bf16.gmra.mrb[0].mxu0 %v1559
    %v1601 = vpop.f32.mrb[0].mxu0
    %v1602 = vadd.f32 %v1537, %v1601
    %v1603 = vpop.f32.mrb[0].mxu0
    %v1604 = vpop.f32.mrb[0].mxu0
    %v1605 = vadd.f32 %v1540, %v1604
    %v1606 = vpop.f32.mrb[0].mxu0
    %1607 = vmatprep.mubr.bf16.mxu0 0
    %1608 = vmatmul.mubr.bf16.gmra.mrb[0].mxu0 %v1562
    %v1609 = vpop.f32.mrb[0].mxu0
    %v1610 = vadd.f32 %v1545, %v1609
    %v1611 = vpop.f32.mrb[0].mxu0
    %v1612 = vpop.f32.mrb[0].mxu0
    %v1613 = vpop.f32.mrb[0].mxu0
    %1614 = vdwg.mxu0
    %s1615 = scalar_lea.vmem %s35, 144
    %v1616 = vld [vmem:[%s1615] sm:$0xff]
    %v1617 = vld [vmem:[%s1615 + $0x8] sm:$0xff]
    %v1618 = vld [vmem:[%s1615 + $0x10] sm:$0xff]
    %v1619 = vld [vmem:[%s1615 + $0x18] sm:$0xff]
    %v1620 = vld [vmem:[%s1615 + $0x20] sm:$0xff]
    %v1621 = vld [vmem:[%s1615 + $0x28] sm:$0xff]
    %v1622 = vld [vmem:[%s1615 + $0x30] sm:$0xff]
    %v1623 = vld [vmem:[%s1615 + $0x38] sm:$0xff]
    %v1624 = vld [vmem:[%s1615 + $0x40] sm:$0x3]
    %v1626 = vsel %vm223, %v1624, 0
    %1628 = vmatprep.subr.mxu0 0.0
    %1629 = vmatpush1.msra.mxu0 %v1616
    %1630 = vmatprep.subr.mxu0 0.0
    %1631 = vmatpush1.msra.mxu0 %v1617
    %1632 = vmatprep.subr.mxu0 0.0
    %1633 = vmatpush1.msra.mxu0 %v1618
    %1634 = vmatprep.subr.mxu0 0.0
    %1635 = vmatpush1.msra.mxu0 %v1619
    %1636 = vmatprep.subr.mxu0 0.0
    %1637 = vmatpush1.msra.mxu0 %v1620
    %1638 = vmatprep.subr.mxu0 0.0
    %1639 = vmatpush1.msra.mxu0 %v1621
    %1640 = vmatprep.subr.mxu0 0.0
    %1641 = vmatpush1.msra.mxu0 %v1622
    %1642 = vmatprep.subr.mxu0 0.0
    %1643 = vmatpush1.msra.mxu0 %v1623
    %1644 = vmatprep.subr.mxu0 0.0
    %1645 = vmatpush1.msra.mxu0 %v1626
    %1646 = vmatprep.subr.mxu0 0.0
    %1647 = vmatpush1.msra.mxu0 0.0
    %1648 = vmatprep.subr.mxu0 0.0
    %1649 = vmatpush1.msra.mxu0 0.0
    %1650 = vmatprep.subr.mxu0 0.0
    %1651 = vmatpush1.msra.mxu0 0.0
    %1652 = vmatprep.subr.mxu0 0.0
    %1653 = vmatpush1.msra.mxu0 0.0
    %1654 = vmatprep.subr.mxu0 0.0
    %1655 = vmatpush1.msra.mxu0 0.0
    %1656 = vmatprep.subr.mxu0 0.0
    %1657 = vmatpush1.msra.mxu0 0.0
    %1658 = vmatprep.subr.mxu0 0.0
    %1659 = vmatpush1.msra.mxu0 0.0
    %1660 = vmatprep.subr.mxu0 0.0
    %1661 = vmatpush1.msra.mxu0 0.0
    %1662 = vmatprep.subr.mxu0 0.0
    %1663 = vmatpush1.msra.mxu0 0.0
    %1664 = vmatprep.subr.mxu0 0.0
    %1665 = vmatpush1.msra.mxu0 0.0
    %1666 = vmatprep.subr.mxu0 0.0
    %1667 = vmatpush1.msra.mxu0 0.0
    %1668 = vmatprep.subr.mxu0 0.0
    %1669 = vmatpush1.msra.mxu0 0.0
    %1670 = vmatprep.subr.mxu0 0.0
    %1671 = vmatpush1.msra.mxu0 0.0
    %1672 = vmatprep.subr.mxu0 0.0
    %1673 = vmatpush1.msra.mxu0 0.0
    %1674 = vmatprep.subr.mxu0 0.0
    %1675 = vmatpush1.msra.mxu0 0.0
    %1676 = vmatprep.subr.mxu0 0.0
    %1677 = vmatpush1.msra.mxu0 0.0
    %1678 = vmatprep.subr.mxu0 0.0
    %1679 = vmatpush1.msra.mxu0 0.0
    %1680 = vmatprep.subr.mxu0 0.0
    %1681 = vmatpush1.msra.mxu0 0.0
    %1682 = vmatprep.subr.mxu0 0.0
    %1683 = vmatpush1.msra.mxu0 0.0
    %1684 = vmatprep.subr.mxu0 0.0
    %1685 = vmatpush1.msra.mxu0 0.0
    %1686 = vmatprep.subr.mxu0 0.0
    %1687 = vmatpush1.msra.mxu0 0.0
    %1688 = vmatprep.subr.mxu0 0.0
    %1689 = vmatpush1.msra.mxu0 0.0
    %1690 = vmatprep.subr.mxu0 0.0
    %1691 = vmatpush1.msra.mxu0 0.0
    %1692 = vmatprep.mubr.f32.mxu0 0.0
    %1693 = vmatmul.mubr.f32.gmra.mrb[0].mxu0 %v1290
    %v1694 = vpop.f32.mrb[0].mxu0
    %v1695 = vadd.f32 0.0, %v1694
    %v1696 = vpop.f32.mrb[0].mxu0
    %1697 = vmatprep.mubr.f32.mxu0 0.0
    %1698 = vmatmul.mubr.f32.gmra.mrb[0].mxu0 %v1293
    %v1699 = vpop.f32.mrb[0].mxu0
    %v1700 = vadd.f32 0.0, %v1699
    %v1701 = vpop.f32.mrb[0].mxu0
    %1702 = vmatprep.mubr.f32.mxu0 0.0
    %1703 = vmatmul.mubr.f32.gmra.mrb[0].mxu0 %v1296
    %v1704 = vpop.f32.mrb[0].mxu0
    %v1705 = vadd.f32 0.0, %v1704
    %v1706 = vpop.f32.mrb[0].mxu0
    %1707 = vdwg.mxu0
    %s1708 = scalar_lea.vmem %s27, 24
    %v1709 = vld [vmem:[%s1708] sm:$0xf]
    %v1710 = vld [vmem:[%s1708 + $0x4] sm:$0xf]
    %v1711 = vld [vmem:[%s1708 + $0x8] sm:$0x3]
    %v1712 = vpack.c.bf16 %v1700, %v1695
    %v1713 = vpack.c.bf16 %v1705, %v1705
    %v1717 = vunpack.c.l.b16 %v1709
    %v1718 = vunpack.c.l.b16 %v1710
    %v1719 = vunpack.c.l.b16 %v1711
    %v1720 = vpack.c.b16 %v1718, %v1717
    %v1721 = vpack.c.b16 %v1719, %v1719
    %v1723 = vsel %vm507, %v1720, 0
    %v1726 = vsel %vm507, %v1721, 0
    %v1729 = vsel %vm223, %v1713, 0
    %1731 = vmatprep.subr.bf16.mxu0 0
    %1732 = vmatpush1.bf16.msra.mxu0 %v1712
    %1733 = vmatprep.subr.bf16.mxu0 0
    %1734 = vmatpush1.bf16.msra.mxu0 %v1729
    %1735 = vmatprep.subr.bf16.mxu0 0
    %1736 = vmatpush1.bf16.msra.mxu0 0
    %1737 = vmatprep.subr.bf16.mxu0 0
    %1738 = vmatpush1.bf16.msra.mxu0 0
    %1739 = vmatprep.subr.bf16.mxu0 0
    %1740 = vmatpush1.bf16.msra.mxu0 0
    %1741 = vmatprep.subr.bf16.mxu0 0
    %1742 = vmatpush1.bf16.msra.mxu0 0
    %1743 = vmatprep.subr.bf16.mxu0 0
    %1744 = vmatpush1.bf16.msra.mxu0 0
    %1745 = vmatprep.subr.bf16.mxu0 0
    %1746 = vmatpush1.bf16.msra.mxu0 0
    %1747 = vmatprep.subr.bf16.mxu0 0
    %1748 = vmatpush1.bf16.msra.mxu0 0
    %1749 = vmatprep.subr.bf16.mxu0 0
    %1750 = vmatpush1.bf16.msra.mxu0 0
    %1751 = vmatprep.subr.bf16.mxu0 0
    %1752 = vmatpush1.bf16.msra.mxu0 0
    %1753 = vmatprep.subr.bf16.mxu0 0
    %1754 = vmatpush1.bf16.msra.mxu0 0
    %1755 = vmatprep.subr.bf16.mxu0 0
    %1756 = vmatpush1.bf16.msra.mxu0 0
    %1757 = vmatprep.subr.bf16.mxu0 0
    %1758 = vmatpush1.bf16.msra.mxu0 0
    %1759 = vmatprep.subr.bf16.mxu0 0
    %1760 = vmatpush1.bf16.msra.mxu0 0
    %1761 = vmatprep.subr.bf16.mxu0 0
    %1762 = vmatpush1.bf16.msra.mxu0 0
    %1763 = vmatprep.mubr.bf16.mxu0 0
    %1764 = vmatmul.mubr.bf16.gmra.mrb[0].mxu0 %v1723
    %v1765 = vpop.f32.mrb[0].mxu0
    %v1766 = vadd.f32 0.0, %v1765
    %v1767 = vpop.f32.mrb[0].mxu0
    %v1768 = vpop.f32.mrb[0].mxu0
    %v1769 = vadd.f32 0.0, %v1768
    %v1770 = vpop.f32.mrb[0].mxu0
    %1771 = vmatprep.mubr.bf16.mxu0 0
    %1772 = vmatmul.mubr.bf16.gmra.mrb[0].mxu0 %v1726
    %v1773 = vpop.f32.mrb[0].mxu0
    %v1774 = vadd.f32 0.0, %v1773
    %v1775 = vpop.f32.mrb[0].mxu0
    %v1776 = vpop.f32.mrb[0].mxu0
    %v1777 = vpop.f32.mrb[0].mxu0
    %1778 = vdwg.mxu0
    %v1779 = vadd.f32 %v1602, %v1766
    %v1780 = vadd.f32 %v1605, %v1769
    %v1781 = vadd.f32 %v1610, %v1774
    %v1782 = vld [vmem:[%s29] sm:$0xff]
    %v1783 = vld [vmem:[%s29 + $0x8] sm:$0xff]
    %v1784 = vld [vmem:[%s29 + $0x10] sm:$0xf]
    %1786 = vset.pattern.permute.xlu0 0
    %1787 = vperm.xlu0 %1786, %v1782
    %v1788 = vpop.permute.xlu0 %1787
    %1791 = vset.pattern.permute.xlu0 0
    %1792 = vperm.xlu0 %1791, %v1783
    %v1793 = vpop.permute.xlu0 %1792
    %1796 = vset.pattern.permute.xlu0 0
    %1797 = vperm.xlu0 %1796, %v1784
    %v1798 = vpop.permute.xlu0 %1797
    %v1800 = vadd.f32 %v1779, %v1788
    %v1801 = vadd.f32 %v1780, %v1793
    %v1802 = vadd.f32 %v1781, %v1798
    %v1803 = vmax.f32 %v1800, 0.0
    %v1804 = vmax.f32 %v1801, 0.0
    %v1805 = vmax.f32 %v1802, 0.0
    %v1806 = vld [vmem:[%s31] sm:$0xf]
    %v1807 = vld [vmem:[%s31 + $0x4] sm:$0xf]
    %v1808 = vld [vmem:[%s31 + $0x8] sm:$0xf]
    %v1809 = vld [vmem:[%s31 + $0xc] sm:$0x7]
    %v1810 = vpack.c.bf16 %v1804, %v1803
    %v1811 = vpack.c.bf16 %v1805, %v1805
    %v1812 = vld [vmem:[%s33] sm:$0xff]
    %v1813 = vld [vmem:[%s33 + $0x8] sm:$0xff]
    %v1814 = vld [vmem:[%s33 + $0x10] sm:$0xff]
    %v1815 = vld [vmem:[%s33 + $0x18] sm:$0x3f]
    %1817 = vset.pattern.permute.xlu0 0
    %1818 = vperm.xlu0 %1817, %v1812
    %v1819 = vpop.permute.xlu0 %1818
    %1822 = vset.pattern.permute.xlu0 0
    %1823 = vperm.xlu0 %1822, %v1813
    %v1824 = vpop.permute.xlu0 %1823
    %1827 = vset.pattern.permute.xlu0 0
    %1828 = vperm.xlu0 %1827, %v1814
    %v1829 = vpop.permute.xlu0 %1828
    %1832 = vset.pattern.permute.xlu0 0
    %1833 = vperm.xlu0 %1832, %v1815
    %v1834 = vpop.permute.xlu0 %1833
    %v1840 = vunpack.c.l.b16 %v1806
    %v1841 = vunpack.c.l.b16 %v1807
    %v1842 = vunpack.c.l.b16 %v1808
    %v1843 = vunpack.c.l.b16 %v1809
    %v1844 = vpack.c.b16 %v1841, %v1840
    %v1845 = vpack.c.b16 %v1843, %v1842
    %v1847 = vsel %vm507, %v1844, 0
    %v1850 = vsel %vm507, %v1845, 0
    %v1853 = vsel %vm223, %v1811, 0
    %1855 = vmatprep.subr.bf16.mxu0 0
    %1856 = vmatpush1.bf16.msra.mxu0 %v1810
    %1857 = vmatprep.subr.bf16.mxu0 0
    %1858 = vmatpush1.bf16.msra.mxu0 %v1853
    %1859 = vmatprep.subr.bf16.mxu0 0
    %1860 = vmatpush1.bf16.msra.mxu0 0
    %1861 = vmatprep.subr.bf16.mxu0 0
    %1862 = vmatpush1.bf16.msra.mxu0 0
    %1863 = vmatprep.subr.bf16.mxu0 0
    %1864 = vmatpush1.bf16.msra.mxu0 0
    %1865 = vmatprep.subr.bf16.mxu0 0
    %1866 = vmatpush1.bf16.msra.mxu0 0
    %1867 = vmatprep.subr.bf16.mxu0 0
    %1868 = vmatpush1.bf16.msra.mxu0 0
    %1869 = vmatprep.subr.bf16.mxu0 0
    %1870 = vmatpush1.bf16.msra.mxu0 0
    %1871 = vmatprep.subr.bf16.mxu0 0
    %1872 = vmatpush1.bf16.msra.mxu0 0
    %1873 = vmatprep.subr.bf16.mxu0 0
    %1874 = vmatpush1.bf16.msra.mxu0 0
    %1875 = vmatprep.subr.bf16.mxu0 0
    %1876 = vmatpush1.bf16.msra.mxu0 0
    %1877 = vmatprep.subr.bf16.mxu0 0
    %1878 = vmatpush1.bf16.msra.mxu0 0
    %1879 = vmatprep.subr.bf16.mxu0 0
    %1880 = vmatpush1.bf16.msra.mxu0 0
    %1881 = vmatprep.subr.bf16.mxu0 0
    %1882 = vmatpush1.bf16.msra.mxu0 0
    %1883 = vmatprep.subr.bf16.mxu0 0
    %1884 = vmatpush1.bf16.msra.mxu0 0
    %1885 = vmatprep.subr.bf16.mxu0 0
    %1886 = vmatpush1.bf16.msra.mxu0 0
    %1887 = vmatprep.mubr.bf16.mxu0 0
    %1888 = vmatmul.mubr.bf16.gmra.mrb[0].mxu0 %v1847
    %v1889 = vpop.f32.mrb[0].mxu0
    %v1890 = vadd.f32 %v1819, %v1889
    %v1891 = vpop.f32.mrb[0].mxu0
    %v1892 = vpop.f32.mrb[0].mxu0
    %v1893 = vadd.f32 %v1824, %v1892
    %v1894 = vpop.f32.mrb[0].mxu0
    %1895 = vmatprep.mubr.bf16.mxu0 0
    %1896 = vmatmul.mubr.bf16.gmra.mrb[0].mxu0 %v1850
    %v1897 = vpop.f32.mrb[0].mxu0
    %v1898 = vadd.f32 %v1829, %v1897
    %v1899 = vpop.f32.mrb[0].mxu0
    %v1900 = vpop.f32.mrb[0].mxu0
    %v1901 = vadd.f32 %v1834, %v1900
    %v1902 = vpop.f32.mrb[0].mxu0
    %1903 = vdwg.mxu0
    %v1905 = vsel %vm577, %v1186, 0
    %v1908 = vsel %vm577, %v1187, 0
    %v1911 = vsel %vm577, %v1188, 0
    %1913 = vmatprep.subr.mxu0 0.0
    %1914 = vmatpush1.msra.mxu0 %v1387
    %1915 = vmatprep.subr.mxu0 0.0
    %1916 = vmatpush1.msra.mxu0 %v1388
    %1917 = vmatprep.subr.mxu0 0.0
    %1918 = vmatpush1.msra.mxu0 %v1389
    %1919 = vmatprep.subr.mxu0 0.0
    %1920 = vmatpush1.msra.mxu0 %v1390
    %1921 = vmatprep.subr.mxu0 0.0
    %1922 = vmatpush1.msra.mxu0 %v1391
    %1923 = vmatprep.subr.mxu0 0.0
    %1924 = vmatpush1.msra.mxu0 %v1392
    %1925 = vmatprep.subr.mxu0 0.0
    %1926 = vmatpush1.msra.mxu0 %v1393
    %1927 = vmatprep.subr.mxu0 0.0
    %1928 = vmatpush1.msra.mxu0 %v1394
    %1929 = vmatprep.subr.mxu0 0.0
    %1930 = vmatpush1.msra.mxu0 %v1397
    %1931 = vmatprep.subr.mxu0 0.0
    %1932 = vmatpush1.msra.mxu0 0.0
    %1933 = vmatprep.subr.mxu0 0.0
    %1934 = vmatpush1.msra.mxu0 0.0
    %1935 = vmatprep.subr.mxu0 0.0
    %1936 = vmatpush1.msra.mxu0 0.0
    %1937 = vmatprep.subr.mxu0 0.0
    %1938 = vmatpush1.msra.mxu0 0.0
    %1939 = vmatprep.subr.mxu0 0.0
    %1940 = vmatpush1.msra.mxu0 0.0
    %1941 = vmatprep.subr.mxu0 0.0
    %1942 = vmatpush1.msra.mxu0 0.0
    %1943 = vmatprep.subr.mxu0 0.0
    %1944 = vmatpush1.msra.mxu0 0.0
    %1945 = vmatprep.subr.mxu0 0.0
    %1946 = vmatpush1.msra.mxu0 0.0
    %1947 = vmatprep.subr.mxu0 0.0
    %1948 = vmatpush1.msra.mxu0 0.0
    %1949 = vmatprep.subr.mxu0 0.0
    %1950 = vmatpush1.msra.mxu0 0.0
    %1951 = vmatprep.subr.mxu0 0.0
    %1952 = vmatpush1.msra.mxu0 0.0
    %1953 = vmatprep.subr.mxu0 0.0
    %1954 = vmatpush1.msra.mxu0 0.0
    %1955 = vmatprep.subr.mxu0 0.0
    %1956 = vmatpush1.msra.mxu0 0.0
    %1957 = vmatprep.subr.mxu0 0.0
    %1958 = vmatpush1.msra.mxu0 0.0
    %1959 = vmatprep.subr.mxu0 0.0
    %1960 = vmatpush1.msra.mxu0 0.0
    %1961 = vmatprep.subr.mxu0 0.0
    %1962 = vmatpush1.msra.mxu0 0.0
    %1963 = vmatprep.subr.mxu0 0.0
    %1964 = vmatpush1.msra.mxu0 0.0
    %1965 = vmatprep.subr.mxu0 0.0
    %1966 = vmatpush1.msra.mxu0 0.0
    %1967 = vmatprep.subr.mxu0 0.0
    %1968 = vmatpush1.msra.mxu0 0.0
    %1969 = vmatprep.subr.mxu0 0.0
    %1970 = vmatpush1.msra.mxu0 0.0
    %1971 = vmatprep.subr.mxu0 0.0
    %1972 = vmatpush1.msra.mxu0 0.0
    %1973 = vmatprep.subr.mxu0 0.0
    %1974 = vmatpush1.msra.mxu0 0.0
    %1975 = vmatprep.subr.mxu0 0.0
    %1976 = vmatpush1.msra.mxu0 0.0
    %1977 = vmatprep.mubr.f32.mxu0 0.0
    %1978 = vmatmul.mubr.f32.gmra.mrb[0].mxu0 %v1905
    %v1979 = vpop.f32.mrb[0].mxu0
    %v1980 = vadd.f32 0.0, %v1979
    %v1981 = vpop.f32.mrb[0].mxu0
    %1982 = vmatprep.mubr.f32.mxu0 0.0
    %1983 = vmatmul.mubr.f32.gmra.mrb[0].mxu0 %v1908
    %v1984 = vpop.f32.mrb[0].mxu0
    %v1985 = vadd.f32 0.0, %v1984
    %v1986 = vpop.f32.mrb[0].mxu0
    %1987 = vmatprep.mubr.f32.mxu0 0.0
    %1988 = vmatmul.mubr.f32.gmra.mrb[0].mxu0 %v1911
    %v1989 = vpop.f32.mrb[0].mxu0
    %v1990 = vadd.f32 0.0, %v1989
    %v1991 = vpop.f32.mrb[0].mxu0
    %1992 = vdwg.mxu0
    %v1993 = vld [vmem:[%s37] sm:$0xf]
    %v1994 = vld [vmem:[%s37 + $0x4] sm:$0xf]
    %v1995 = vld [vmem:[%s37 + $0x8] sm:$0xf]
    %v1996 = vld [vmem:[%s37 + $0xc] sm:$0x7]
    %v1997 = vpack.c.bf16 %v1985, %v1980
    %v1998 = vpack.c.bf16 %v1990, %v1990
    %v1999 = vld [vmem:[%s39] sm:$0xff]
    %v2000 = vld [vmem:[%s39 + $0x8] sm:$0xff]
    %v2001 = vld [vmem:[%s39 + $0x10] sm:$0xff]
    %v2002 = vld [vmem:[%s39 + $0x18] sm:$0x3f]
    %2004 = vset.pattern.permute.xlu0 0
    %2005 = vperm.xlu0 %2004, %v1999
    %v2006 = vpop.permute.xlu0 %2005
    %2009 = vset.pattern.permute.xlu0 0
    %2010 = vperm.xlu0 %2009, %v2000
    %v2011 = vpop.permute.xlu0 %2010
    %2014 = vset.pattern.permute.xlu0 0
    %2015 = vperm.xlu0 %2014, %v2001
    %v2016 = vpop.permute.xlu0 %2015
    %2019 = vset.pattern.permute.xlu0 0
    %2020 = vperm.xlu0 %2019, %v2002
    %v2021 = vpop.permute.xlu0 %2020
    %v2027 = vunpack.c.l.b16 %v1993
    %v2028 = vunpack.c.l.b16 %v1994
    %v2029 = vunpack.c.l.b16 %v1995
    %v2030 = vunpack.c.l.b16 %v1996
    %v2031 = vpack.c.b16 %v2028, %v2027
    %v2032 = vpack.c.b16 %v2030, %v2029
    %v2034 = vsel %vm507, %v2031, 0
    %v2037 = vsel %vm507, %v2032, 0
    %v2040 = vsel %vm223, %v1998, 0
    %2042 = vmatprep.subr.bf16.mxu0 0
    %2043 = vmatpush1.bf16.msra.mxu0 %v1997
    %2044 = vmatprep.subr.bf16.mxu0 0
    %2045 = vmatpush1.bf16.msra.mxu0 %v2040
    %2046 = vmatprep.subr.bf16.mxu0 0
    %2047 = vmatpush1.bf16.msra.mxu0 0
    %2048 = vmatprep.subr.bf16.mxu0 0
    %2049 = vmatpush1.bf16.msra.mxu0 0
    %2050 = vmatprep.subr.bf16.mxu0 0
    %2051 = vmatpush1.bf16.msra.mxu0 0
    %2052 = vmatprep.subr.bf16.mxu0 0
    %2053 = vmatpush1.bf16.msra.mxu0 0
    %2054 = vmatprep.subr.bf16.mxu0 0
    %2055 = vmatpush1.bf16.msra.mxu0 0
    %2056 = vmatprep.subr.bf16.mxu0 0
    %2057 = vmatpush1.bf16.msra.mxu0 0
    %2058 = vmatprep.subr.bf16.mxu0 0
    %2059 = vmatpush1.bf16.msra.mxu0 0
    %2060 = vmatprep.subr.bf16.mxu0 0
    %2061 = vmatpush1.bf16.msra.mxu0 0
    %2062 = vmatprep.subr.bf16.mxu0 0
    %2063 = vmatpush1.bf16.msra.mxu0 0
    %2064 = vmatprep.subr.bf16.mxu0 0
    %2065 = vmatpush1.bf16.msra.mxu0 0
    %2066 = vmatprep.subr.bf16.mxu0 0
    %2067 = vmatpush1.bf16.msra.mxu0 0
    %2068 = vmatprep.subr.bf16.mxu0 0
    %2069 = vmatpush1.bf16.msra.mxu0 0
    %2070 = vmatprep.subr.bf16.mxu0 0
    %2071 = vmatpush1.bf16.msra.mxu0 0
    %2072 = vmatprep.subr.bf16.mxu0 0
    %2073 = vmatpush1.bf16.msra.mxu0 0
    %2074 = vmatprep.mubr.bf16.mxu0 0
    %2075 = vmatmul.mubr.bf16.gmra.mrb[0].mxu0 %v2034
    %v2076 = vpop.f32.mrb[0].mxu0
    %v2077 = vadd.f32 %v2006, %v2076
    %v2078 = vpop.f32.mrb[0].mxu0
    %v2079 = vpop.f32.mrb[0].mxu0
    %v2080 = vadd.f32 %v2011, %v2079
    %v2081 = vpop.f32.mrb[0].mxu0
    %2082 = vmatprep.mubr.bf16.mxu0 0
    %2083 = vmatmul.mubr.bf16.gmra.mrb[0].mxu0 %v2037
    %v2084 = vpop.f32.mrb[0].mxu0
    %v2085 = vadd.f32 %v2016, %v2084
    %v2086 = vpop.f32.mrb[0].mxu0
    %v2087 = vpop.f32.mrb[0].mxu0
    %v2088 = vadd.f32 %v2021, %v2087
    %v2089 = vpop.f32.mrb[0].mxu0
    %2090 = vdwg.mxu0
    %v2091 = vadd.f32 %v1890, %v2077
    %v2092 = vadd.f32 %v1893, %v2080
    %v2093 = vadd.f32 %v1898, %v2085
    %v2094 = vadd.f32 %v1901, %v2088
    %v2095 = vmax.f32 %v2091, 0.0
    %v2096 = vmax.f32 %v2092, 0.0
    %v2097 = vmax.f32 %v2093, 0.0
    %v2098 = vmax.f32 %v2094, 0.0
    %v2099 = vld [vmem:[%s41] sm:$0xf]
    %v2100 = vld [vmem:[%s41 + $0x4] sm:$0xf]
    %v2101 = vld [vmem:[%s41 + $0x8] sm:$0xf]
    %v2102 = vld [vmem:[%s41 + $0xc] sm:$0x7]
    %v2103 = vpack.c.bf16 %v2096, %v2095
    %v2104 = vpack.c.bf16 %v2098, %v2097
    %v2105 = vld [vmem:[%s43] sm:$0xff]
    %v2106 = vld [vmem:[%s43 + $0x8] sm:$0xff]
    %v2107 = vld [vmem:[%s43 + $0x10] sm:$0xff]
    %v2108 = vld [vmem:[%s43 + $0x18] sm:$0x3f]
    %2110 = vset.pattern.permute.xlu0 0
    %2111 = vperm.xlu0 %2110, %v2105
    %v2112 = vpop.permute.xlu0 %2111
    %2115 = vset.pattern.permute.xlu0 0
    %2116 = vperm.xlu0 %2115, %v2106
    %v2117 = vpop.permute.xlu0 %2116
    %2120 = vset.pattern.permute.xlu0 0
    %2121 = vperm.xlu0 %2120, %v2107
    %v2122 = vpop.permute.xlu0 %2121
    %2125 = vset.pattern.permute.xlu0 0
    %2126 = vperm.xlu0 %2125, %v2108
    %v2127 = vpop.permute.xlu0 %2126
    %v2133 = vunpack.c.l.b16 %v2099
    %v2134 = vunpack.c.l.b16 %v2100
    %v2135 = vunpack.c.l.b16 %v2101
    %v2136 = vunpack.c.l.b16 %v2102
    %v2137 = vpack.c.b16 %v2134, %v2133
    %v2138 = vpack.c.b16 %v2136, %v2135
    %vm2139 = vcmask 244736
    %v2141 = vsel %vm2139, %v2137, 0
    %v2144 = vsel %vm2139, %v2138, 0
    %vm2146 = vcmask 1046528
    %v2148 = vsel %vm2146, %v2104, 0
    %2150 = vmatprep.subr.bf16.mxu0 0
    %2151 = vmatpush1.bf16.msra.mxu0 %v2103
    %2152 = vmatprep.subr.bf16.mxu0 0
    %2153 = vmatpush1.bf16.msra.mxu0 %v2148
    %2154 = vmatprep.subr.bf16.mxu0 0
    %2155 = vmatpush1.bf16.msra.mxu0 0
    %2156 = vmatprep.subr.bf16.mxu0 0
    %2157 = vmatpush1.bf16.msra.mxu0 0
    %2158 = vmatprep.subr.bf16.mxu0 0
    %2159 = vmatpush1.bf16.msra.mxu0 0
    %2160 = vmatprep.subr.bf16.mxu0 0
    %2161 = vmatpush1.bf16.msra.mxu0 0
    %2162 = vmatprep.subr.bf16.mxu0 0
    %2163 = vmatpush1.bf16.msra.mxu0 0
    %2164 = vmatprep.subr.bf16.mxu0 0
    %2165 = vmatpush1.bf16.msra.mxu0 0
    %2166 = vmatprep.subr.bf16.mxu0 0
    %2167 = vmatpush1.bf16.msra.mxu0 0
    %2168 = vmatprep.subr.bf16.mxu0 0
    %2169 = vmatpush1.bf16.msra.mxu0 0
    %2170 = vmatprep.subr.bf16.mxu0 0
    %2171 = vmatpush1.bf16.msra.mxu0 0
    %2172 = vmatprep.subr.bf16.mxu0 0
    %2173 = vmatpush1.bf16.msra.mxu0 0
    %2174 = vmatprep.subr.bf16.mxu0 0
    %2175 = vmatpush1.bf16.msra.mxu0 0
    %2176 = vmatprep.subr.bf16.mxu0 0
    %2177 = vmatpush1.bf16.msra.mxu0 0
    %2178 = vmatprep.subr.bf16.mxu0 0
    %2179 = vmatpush1.bf16.msra.mxu0 0
    %2180 = vmatprep.subr.bf16.mxu0 0
    %2181 = vmatpush1.bf16.msra.mxu0 0
    %2182 = vmatprep.mubr.bf16.mxu0 0
    %2183 = vmatmul.mubr.bf16.gmra.mrb[0].mxu0 %v2141
    %v2184 = vpop.f32.mrb[0].mxu0
    %v2185 = vadd.f32 %v2112, %v2184
    %v2186 = vpop.f32.mrb[0].mxu0
    %v2187 = vpop.f32.mrb[0].mxu0
    %v2188 = vadd.f32 %v2117, %v2187
    %v2189 = vpop.f32.mrb[0].mxu0
    %2190 = vmatprep.mubr.bf16.mxu0 0
    %2191 = vmatmul.mubr.bf16.gmra.mrb[0].mxu0 %v2144
    %v2192 = vpop.f32.mrb[0].mxu0
    %v2193 = vadd.f32 %v2122, %v2192
    %v2194 = vpop.f32.mrb[0].mxu0
    %v2195 = vpop.f32.mrb[0].mxu0
    %v2196 = vadd.f32 %v2127, %v2195
    %v2197 = vpop.f32.mrb[0].mxu0
    %2198 = vdwg.mxu0
    %v2199 = vmax.f32 %v2185, 0.0
    %v2200 = vmax.f32 %v2188, 0.0
    %v2201 = vmax.f32 %v2193, 0.0
    %v2202 = vmax.f32 %v2196, 0.0
    %v2203 = vld [vmem:[%s53] sm:$0xff]
    %v2204 = vld [vmem:[%s53 + $0x8] sm:$0xff]
    %v2205 = vld [vmem:[%s53 + $0x10] sm:$0xff]
    %v2206 = vld [vmem:[%s53 + $0x18] sm:$0xff]
    %v2207 = vld [vmem:[%s53 + $0x20] sm:$0x3]
    %vm2208 = vcmask 277504
    %v2210 = vsel %vm2208, %v2199, 0
    %v2213 = vsel %vm2208, %v2200, 0
    %v2216 = vsel %vm2208, %v2201, 0
    %v2219 = vsel %vm2208, %v2202, 0
    %v2222 = vsel %vm223, %v2207, 0
    %2224 = vmatprep.subr.mxu0 0.0
    %2225 = vmatpush1.msra.mxu0 %v2203
    %2226 = vmatprep.subr.mxu0 0.0
    %2227 = vmatpush1.msra.mxu0 %v2204
    %2228 = vmatprep.subr.mxu0 0.0
    %2229 = vmatpush1.msra.mxu0 %v2205
    %2230 = vmatprep.subr.mxu0 0.0
    %2231 = vmatpush1.msra.mxu0 %v2206
    %2232 = vmatprep.subr.mxu0 0.0
    %2233 = vmatpush1.msra.mxu0 %v2222
    %2234 = vmatprep.subr.mxu0 0.0
    %2235 = vmatpush1.msra.mxu0 0.0
    %2236 = vmatprep.subr.mxu0 0.0
    %2237 = vmatpush1.msra.mxu0 0.0
    %2238 = vmatprep.subr.mxu0 0.0
    %2239 = vmatpush1.msra.mxu0 0.0
    %2240 = vmatprep.subr.mxu0 0.0
    %2241 = vmatpush1.msra.mxu0 0.0
    %2242 = vmatprep.subr.mxu0 0.0
    %2243 = vmatpush1.msra.mxu0 0.0
    %2244 = vmatprep.subr.mxu0 0.0
    %2245 = vmatpush1.msra.mxu0 0.0
    %2246 = vmatprep.subr.mxu0 0.0
    %2247 = vmatpush1.msra.mxu0 0.0
    %2248 = vmatprep.subr.mxu0 0.0
    %2249 = vmatpush1.msra.mxu0 0.0
    %2250 = vmatprep.subr.mxu0 0.0
    %2251 = vmatpush1.msra.mxu0 0.0
    %2252 = vmatprep.subr.mxu0 0.0
    %2253 = vmatpush1.msra.mxu0 0.0
    %2254 = vmatprep.subr.mxu0 0.0
    %2255 = vmatpush1.msra.mxu0 0.0
    %2256 = vmatprep.subr.mxu0 0.0
    %2257 = vmatpush1.msra.mxu0 0.0
    %2258 = vmatprep.subr.mxu0 0.0
    %2259 = vmatpush1.msra.mxu0 0.0
    %2260 = vmatprep.subr.mxu0 0.0
    %2261 = vmatpush1.msra.mxu0 0.0
    %2262 = vmatprep.subr.mxu0 0.0
    %2263 = vmatpush1.msra.mxu0 0.0
    %2264 = vmatprep.subr.mxu0 0.0
    %2265 = vmatpush1.msra.mxu0 0.0
    %2266 = vmatprep.subr.mxu0 0.0
    %2267 = vmatpush1.msra.mxu0 0.0
    %2268 = vmatprep.subr.mxu0 0.0
    %2269 = vmatpush1.msra.mxu0 0.0
    %2270 = vmatprep.subr.mxu0 0.0
    %2271 = vmatpush1.msra.mxu0 0.0
    %2272 = vmatprep.subr.mxu0 0.0
    %2273 = vmatpush1.msra.mxu0 0.0
    %2274 = vmatprep.subr.mxu0 0.0
    %2275 = vmatpush1.msra.mxu0 0.0
    %2276 = vmatprep.subr.mxu0 0.0
    %2277 = vmatpush1.msra.mxu0 0.0
    %2278 = vmatprep.subr.mxu0 0.0
    %2279 = vmatpush1.msra.mxu0 0.0
    %2280 = vmatprep.subr.mxu0 0.0
    %2281 = vmatpush1.msra.mxu0 0.0
    %2282 = vmatprep.subr.mxu0 0.0
    %2283 = vmatpush1.msra.mxu0 0.0
    %2284 = vmatprep.subr.mxu0 0.0
    %2285 = vmatpush1.msra.mxu0 0.0
    %2286 = vmatprep.subr.mxu0 0.0
    %2287 = vmatpush1.msra.mxu0 0.0
    %2288 = vmatprep.mubr.f32.mxu0 0.0
    %2289 = vmatmul.mubr.f32.gmra.mrb[0].mxu0 %v2210
    %v2290 = vpop.f32.mrb[0].mxu0
    %v2291 = vadd.f32 0.0, %v2290
    %v2292 = vpop.f32.mrb[0].mxu0
    %2293 = vmatprep.mubr.f32.mxu0 0.0
    %2294 = vmatmul.mubr.f32.gmra.mrb[0].mxu0 %v2213
    %v2295 = vpop.f32.mrb[0].mxu0
    %v2296 = vadd.f32 0.0, %v2295
    %v2297 = vpop.f32.mrb[0].mxu0
    %2298 = vmatprep.mubr.f32.mxu0 0.0
    %2299 = vmatmul.mubr.f32.gmra.mrb[0].mxu0 %v2216
    %v2300 = vpop.f32.mrb[0].mxu0
    %v2301 = vadd.f32 0.0, %v2300
    %v2302 = vpop.f32.mrb[0].mxu0
    %2303 = vmatprep.mubr.f32.mxu0 0.0
    %2304 = vmatmul.mubr.f32.gmra.mrb[0].mxu0 %v2219
    %v2305 = vpop.f32.mrb[0].mxu0
    %v2306 = vadd.f32 0.0, %v2305
    %v2307 = vpop.f32.mrb[0].mxu0
    %2308 = vdwg.mxu0
    %v2309 = vld [vmem:[%s45] sm:$0xf]
    %v2310 = vld [vmem:[%s45 + $0x4] sm:$0xf]
    %v2311 = vld [vmem:[%s45 + $0x8] sm:$0xf]
    %v2312 = vld [vmem:[%s45 + $0xc] sm:$0x7]
    %v2313 = vpack.c.bf16 %v2296, %v2291
    %v2314 = vpack.c.bf16 %v2306, %v2301
    %s2315 = scalar_lea.vmem %s53, 40
    %v2316 = vld [vmem:[%s2315] sm:$0xff]
    %v2317 = vld [vmem:[%s2315 + $0x8] sm:$0xff]
    %v2318 = vld [vmem:[%s2315 + $0x10] sm:$0xff]
    %v2319 = vld [vmem:[%s2315 + $0x18] sm:$0xff]
    %v2320 = vld [vmem:[%s2315 + $0x20] sm:$0x3]
    %v2322 = vsel %vm223, %v2320, 0
    %2324 = vmatprep.subr.mxu0 0.0
    %2325 = vmatpush1.msra.mxu0 %v2316
    %2326 = vmatprep.subr.mxu0 0.0
    %2327 = vmatpush1.msra.mxu0 %v2317
    %2328 = vmatprep.subr.mxu0 0.0
    %2329 = vmatpush1.msra.mxu0 %v2318
    %2330 = vmatprep.subr.mxu0 0.0
    %2331 = vmatpush1.msra.mxu0 %v2319
    %2332 = vmatprep.subr.mxu0 0.0
    %2333 = vmatpush1.msra.mxu0 %v2322
    %2334 = vmatprep.subr.mxu0 0.0
    %2335 = vmatpush1.msra.mxu0 0.0
    %2336 = vmatprep.subr.mxu0 0.0
    %2337 = vmatpush1.msra.mxu0 0.0
    %2338 = vmatprep.subr.mxu0 0.0
    %2339 = vmatpush1.msra.mxu0 0.0
    %2340 = vmatprep.subr.mxu0 0.0
    %2341 = vmatpush1.msra.mxu0 0.0
    %2342 = vmatprep.subr.mxu0 0.0
    %2343 = vmatpush1.msra.mxu0 0.0
    %2344 = vmatprep.subr.mxu0 0.0
    %2345 = vmatpush1.msra.mxu0 0.0
    %2346 = vmatprep.subr.mxu0 0.0
    %2347 = vmatpush1.msra.mxu0 0.0
    %2348 = vmatprep.subr.mxu0 0.0
    %2349 = vmatpush1.msra.mxu0 0.0
    %2350 = vmatprep.subr.mxu0 0.0
    %2351 = vmatpush1.msra.mxu0 0.0
    %2352 = vmatprep.subr.mxu0 0.0
    %2353 = vmatpush1.msra.mxu0 0.0
    %2354 = vmatprep.subr.mxu0 0.0
    %2355 = vmatpush1.msra.mxu0 0.0
    %2356 = vmatprep.subr.mxu0 0.0
    %2357 = vmatpush1.msra.mxu0 0.0
    %2358 = vmatprep.subr.mxu0 0.0
    %2359 = vmatpush1.msra.mxu0 0.0
    %2360 = vmatprep.subr.mxu0 0.0
    %2361 = vmatpush1.msra.mxu0 0.0
    %2362 = vmatprep.subr.mxu0 0.0
    %2363 = vmatpush1.msra.mxu0 0.0
    %2364 = vmatprep.subr.mxu0 0.0
    %2365 = vmatpush1.msra.mxu0 0.0
    %2366 = vmatprep.subr.mxu0 0.0
    %2367 = vmatpush1.msra.mxu0 0.0
    %2368 = vmatprep.subr.mxu0 0.0
    %2369 = vmatpush1.msra.mxu0 0.0
    %2370 = vmatprep.subr.mxu0 0.0
    %2371 = vmatpush1.msra.mxu0 0.0
    %2372 = vmatprep.subr.mxu0 0.0
    %2373 = vmatpush1.msra.mxu0 0.0
    %2374 = vmatprep.subr.mxu0 0.0
    %2375 = vmatpush1.msra.mxu0 0.0
    %2376 = vmatprep.subr.mxu0 0.0
    %2377 = vmatpush1.msra.mxu0 0.0
    %2378 = vmatprep.subr.mxu0 0.0
    %2379 = vmatpush1.msra.mxu0 0.0
    %2380 = vmatprep.subr.mxu0 0.0
    %2381 = vmatpush1.msra.mxu0 0.0
    %2382 = vmatprep.subr.mxu0 0.0
    %2383 = vmatpush1.msra.mxu0 0.0
    %2384 = vmatprep.subr.mxu0 0.0
    %2385 = vmatpush1.msra.mxu0 0.0
    %2386 = vmatprep.subr.mxu0 0.0
    %2387 = vmatpush1.msra.mxu0 0.0
    %2388 = vmatprep.mubr.f32.mxu0 0.0
    %2389 = vmatmul.mubr.f32.gmra.mrb[0].mxu0 %v2210
    %v2390 = vpop.f32.mrb[0].mxu0
    %v2391 = vadd.f32 0.0, %v2390
    %v2392 = vpop.f32.mrb[0].mxu0
    %2393 = vmatprep.mubr.f32.mxu0 0.0
    %2394 = vmatmul.mubr.f32.gmra.mrb[0].mxu0 %v2213
    %v2395 = vpop.f32.mrb[0].mxu0
    %v2396 = vadd.f32 0.0, %v2395
    %v2397 = vpop.f32.mrb[0].mxu0
    %2398 = vmatprep.mubr.f32.mxu0 0.0
    %2399 = vmatmul.mubr.f32.gmra.mrb[0].mxu0 %v2216
    %v2400 = vpop.f32.mrb[0].mxu0
    %v2401 = vadd.f32 0.0, %v2400
    %v2402 = vpop.f32.mrb[0].mxu0
    %2403 = vmatprep.mubr.f32.mxu0 0.0
    %2404 = vmatmul.mubr.f32.gmra.mrb[0].mxu0 %v2219
    %v2405 = vpop.f32.mrb[0].mxu0
    %v2406 = vadd.f32 0.0, %v2405
    %v2407 = vpop.f32.mrb[0].mxu0
    %2408 = vdwg.mxu0
    %s2409 = scalar_lea.vmem %s45, 16
    %v2410 = vld [vmem:[%s2409] sm:$0xf]
    %v2411 = vld [vmem:[%s2409 + $0x4] sm:$0xf]
    %v2412 = vld [vmem:[%s2409 + $0x8] sm:$0xf]
    %v2413 = vld [vmem:[%s2409 + $0xc] sm:$0x7]
    %v2414 = vpack.c.bf16 %v2396, %v2391
    %v2415 = vpack.c.bf16 %v2406, %v2401
    %v2420 = vunpack.c.l.b16 %v2410
    %v2421 = vunpack.c.l.b16 %v2411
    %v2422 = vunpack.c.l.b16 %v2412
    %v2423 = vunpack.c.l.b16 %v2413
    %v2424 = vpack.c.b16 %v2421, %v2420
    %v2425 = vpack.c.b16 %v2423, %v2422
    %v2427 = vsel %vm2139, %v2424, 0
    %v2430 = vsel %vm2139, %v2425, 0
    %v2433 = vsel %vm2146, %v2415, 0
    %2435 = vmatprep.subr.bf16.mxu0 0
    %2436 = vmatpush1.bf16.msra.mxu0 %v2414
    %2437 = vmatprep.subr.bf16.mxu0 0
    %2438 = vmatpush1.bf16.msra.mxu0 %v2433
    %2439 = vmatprep.subr.bf16.mxu0 0
    %2440 = vmatpush1.bf16.msra.mxu0 0
    %2441 = vmatprep.subr.bf16.mxu0 0
    %2442 = vmatpush1.bf16.msra.mxu0 0
    %2443 = vmatprep.subr.bf16.mxu0 0
    %2444 = vmatpush1.bf16.msra.mxu0 0
    %2445 = vmatprep.subr.bf16.mxu0 0
    %2446 = vmatpush1.bf16.msra.mxu0 0
    %2447 = vmatprep.subr.bf16.mxu0 0
    %2448 = vmatpush1.bf16.msra.mxu0 0
    %2449 = vmatprep.subr.bf16.mxu0 0
    %2450 = vmatpush1.bf16.msra.mxu0 0
    %2451 = vmatprep.subr.bf16.mxu0 0
    %2452 = vmatpush1.bf16.msra.mxu0 0
    %2453 = vmatprep.subr.bf16.mxu0 0
    %2454 = vmatpush1.bf16.msra.mxu0 0
    %2455 = vmatprep.subr.bf16.mxu0 0
    %2456 = vmatpush1.bf16.msra.mxu0 0
    %2457 = vmatprep.subr.bf16.mxu0 0
    %2458 = vmatpush1.bf16.msra.mxu0 0
    %2459 = vmatprep.subr.bf16.mxu0 0
    %2460 = vmatpush1.bf16.msra.mxu0 0
    %2461 = vmatprep.subr.bf16.mxu0 0
    %2462 = vmatpush1.bf16.msra.mxu0 0
    %2463 = vmatprep.subr.bf16.mxu0 0
    %2464 = vmatpush1.bf16.msra.mxu0 0
    %2465 = vmatprep.subr.bf16.mxu0 0
    %2466 = vmatpush1.bf16.msra.mxu0 0
    %2467 = vmatprep.mubr.bf16.mxu0 0
    %2468 = vmatmul.mubr.bf16.gmra.mrb[0].mxu0 %v2427
    %v2469 = vpop.f32.mrb[0].mxu0
    %v2470 = vadd.f32 0.0, %v2469
    %v2471 = vpop.f32.mrb[0].mxu0
    %v2472 = vpop.f32.mrb[0].mxu0
    %v2473 = vadd.f32 0.0, %v2472
    %v2474 = vpop.f32.mrb[0].mxu0
    %2475 = vmatprep.mubr.bf16.mxu0 0
    %2476 = vmatmul.mubr.bf16.gmra.mrb[0].mxu0 %v2430
    %v2477 = vpop.f32.mrb[0].mxu0
    %v2478 = vadd.f32 0.0, %v2477
    %v2479 = vpop.f32.mrb[0].mxu0
    %v2480 = vpop.f32.mrb[0].mxu0
    %v2481 = vadd.f32 0.0, %v2480
    %v2482 = vpop.f32.mrb[0].mxu0
    %2483 = vdwg.mxu0
    %v2488 = vunpack.c.l.b16 %v2309
    %v2489 = vunpack.c.l.b16 %v2310
    %v2490 = vunpack.c.l.b16 %v2311
    %v2491 = vunpack.c.l.b16 %v2312
    %v2492 = vpack.c.b16 %v2489, %v2488
    %v2493 = vpack.c.b16 %v2491, %v2490
    %v2495 = vsel %vm2139, %v2492, 0
    %v2498 = vsel %vm2139, %v2493, 0
    %v2501 = vsel %vm2146, %v2314, 0
    %2503 = vmatprep.subr.bf16.mxu0 0
    %2504 = vmatpush1.bf16.msra.mxu0 %v2313
    %2505 = vmatprep.subr.bf16.mxu0 0
    %2506 = vmatpush1.bf16.msra.mxu0 %v2501
    %2507 = vmatprep.subr.bf16.mxu0 0
    %2508 = vmatpush1.bf16.msra.mxu0 0
    %2509 = vmatprep.subr.bf16.mxu0 0
    %2510 = vmatpush1.bf16.msra.mxu0 0
    %2511 = vmatprep.subr.bf16.mxu0 0
    %2512 = vmatpush1.bf16.msra.mxu0 0
    %2513 = vmatprep.subr.bf16.mxu0 0
    %2514 = vmatpush1.bf16.msra.mxu0 0
    %2515 = vmatprep.subr.bf16.mxu0 0
    %2516 = vmatpush1.bf16.msra.mxu0 0
    %2517 = vmatprep.subr.bf16.mxu0 0
    %2518 = vmatpush1.bf16.msra.mxu0 0
    %2519 = vmatprep.subr.bf16.mxu0 0
    %2520 = vmatpush1.bf16.msra.mxu0 0
    %2521 = vmatprep.subr.bf16.mxu0 0
    %2522 = vmatpush1.bf16.msra.mxu0 0
    %2523 = vmatprep.subr.bf16.mxu0 0
    %2524 = vmatpush1.bf16.msra.mxu0 0
    %2525 = vmatprep.subr.bf16.mxu0 0
    %2526 = vmatpush1.bf16.msra.mxu0 0
    %2527 = vmatprep.subr.bf16.mxu0 0
    %2528 = vmatpush1.bf16.msra.mxu0 0
    %2529 = vmatprep.subr.bf16.mxu0 0
    %2530 = vmatpush1.bf16.msra.mxu0 0
    %2531 = vmatprep.subr.bf16.mxu0 0
    %2532 = vmatpush1.bf16.msra.mxu0 0
    %2533 = vmatprep.subr.bf16.mxu0 0
    %2534 = vmatpush1.bf16.msra.mxu0 0
    %2535 = vmatprep.mubr.bf16.mxu0 0
    %2536 = vmatmul.mubr.bf16.gmra.mrb[0].mxu0 %v2495
    %v2537 = vpop.f32.mrb[0].mxu0
    %v2538 = vadd.f32 %v2470, %v2537
    %v2539 = vpop.f32.mrb[0].mxu0
    %v2540 = vpop.f32.mrb[0].mxu0
    %v2541 = vadd.f32 %v2473, %v2540
    %v2542 = vpop.f32.mrb[0].mxu0
    %2543 = vmatprep.mubr.bf16.mxu0 0
    %2544 = vmatmul.mubr.bf16.gmra.mrb[0].mxu0 %v2498
    %v2545 = vpop.f32.mrb[0].mxu0
    %v2546 = vadd.f32 %v2478, %v2545
    %v2547 = vpop.f32.mrb[0].mxu0
    %v2548 = vpop.f32.mrb[0].mxu0
    %v2549 = vadd.f32 %v2481, %v2548
    %v2550 = vpop.f32.mrb[0].mxu0
    %2551 = vdwg.mxu0
    %s2552 = scalar_lea.vmem %s53, 80
    %v2553 = vld [vmem:[%s2552] sm:$0xff]
    %v2554 = vld [vmem:[%s2552 + $0x8] sm:$0xff]
    %v2555 = vld [vmem:[%s2552 + $0x10] sm:$0xff]
    %v2556 = vld [vmem:[%s2552 + $0x18] sm:$0xff]
    %v2557 = vld [vmem:[%s2552 + $0x20] sm:$0x3]
    %v2559 = vsel %vm223, %v2557, 0
    %2561 = vmatprep.subr.mxu0 0.0
    %2562 = vmatpush1.msra.mxu0 %v2553
    %2563 = vmatprep.subr.mxu0 0.0
    %2564 = vmatpush1.msra.mxu0 %v2554
    %2565 = vmatprep.subr.mxu0 0.0
    %2566 = vmatpush1.msra.mxu0 %v2555
    %2567 = vmatprep.subr.mxu0 0.0
    %2568 = vmatpush1.msra.mxu0 %v2556
    %2569 = vmatprep.subr.mxu0 0.0
    %2570 = vmatpush1.msra.mxu0 %v2559
    %2571 = vmatprep.subr.mxu0 0.0
    %2572 = vmatpush1.msra.mxu0 0.0
    %2573 = vmatprep.subr.mxu0 0.0
    %2574 = vmatpush1.msra.mxu0 0.0
    %2575 = vmatprep.subr.mxu0 0.0
    %2576 = vmatpush1.msra.mxu0 0.0
    %2577 = vmatprep.subr.mxu0 0.0
    %2578 = vmatpush1.msra.mxu0 0.0
    %2579 = vmatprep.subr.mxu0 0.0
    %2580 = vmatpush1.msra.mxu0 0.0
    %2581 = vmatprep.subr.mxu0 0.0
    %2582 = vmatpush1.msra.mxu0 0.0
    %2583 = vmatprep.subr.mxu0 0.0
    %2584 = vmatpush1.msra.mxu0 0.0
    %2585 = vmatprep.subr.mxu0 0.0
    %2586 = vmatpush1.msra.mxu0 0.0
    %2587 = vmatprep.subr.mxu0 0.0
    %2588 = vmatpush1.msra.mxu0 0.0
    %2589 = vmatprep.subr.mxu0 0.0
    %2590 = vmatpush1.msra.mxu0 0.0
    %2591 = vmatprep.subr.mxu0 0.0
    %2592 = vmatpush1.msra.mxu0 0.0
    %2593 = vmatprep.subr.mxu0 0.0
    %2594 = vmatpush1.msra.mxu0 0.0
    %2595 = vmatprep.subr.mxu0 0.0
    %2596 = vmatpush1.msra.mxu0 0.0
    %2597 = vmatprep.subr.mxu0 0.0
    %2598 = vmatpush1.msra.mxu0 0.0
    %2599 = vmatprep.subr.mxu0 0.0
    %2600 = vmatpush1.msra.mxu0 0.0
    %2601 = vmatprep.subr.mxu0 0.0
    %2602 = vmatpush1.msra.mxu0 0.0
    %2603 = vmatprep.subr.mxu0 0.0
    %2604 = vmatpush1.msra.mxu0 0.0
    %2605 = vmatprep.subr.mxu0 0.0
    %2606 = vmatpush1.msra.mxu0 0.0
    %2607 = vmatprep.subr.mxu0 0.0
    %2608 = vmatpush1.msra.mxu0 0.0
    %2609 = vmatprep.subr.mxu0 0.0
    %2610 = vmatpush1.msra.mxu0 0.0
    %2611 = vmatprep.subr.mxu0 0.0
    %2612 = vmatpush1.msra.mxu0 0.0
    %2613 = vmatprep.subr.mxu0 0.0
    %2614 = vmatpush1.msra.mxu0 0.0
    %2615 = vmatprep.subr.mxu0 0.0
    %2616 = vmatpush1.msra.mxu0 0.0
    %2617 = vmatprep.subr.mxu0 0.0
    %2618 = vmatpush1.msra.mxu0 0.0
    %2619 = vmatprep.subr.mxu0 0.0
    %2620 = vmatpush1.msra.mxu0 0.0
    %2621 = vmatprep.subr.mxu0 0.0
    %2622 = vmatpush1.msra.mxu0 0.0
    %2623 = vmatprep.subr.mxu0 0.0
    %2624 = vmatpush1.msra.mxu0 0.0
    %2625 = vmatprep.mubr.f32.mxu0 0.0
    %2626 = vmatmul.mubr.f32.gmra.mrb[0].mxu0 %v2210
    %v2627 = vpop.f32.mrb[0].mxu0
    %v2628 = vadd.f32 0.0, %v2627
    %v2629 = vpop.f32.mrb[0].mxu0
    %2630 = vmatprep.mubr.f32.mxu0 0.0
    %2631 = vmatmul.mubr.f32.gmra.mrb[0].mxu0 %v2213
    %v2632 = vpop.f32.mrb[0].mxu0
    %v2633 = vadd.f32 0.0, %v2632
    %v2634 = vpop.f32.mrb[0].mxu0
    %2635 = vmatprep.mubr.f32.mxu0 0.0
    %2636 = vmatmul.mubr.f32.gmra.mrb[0].mxu0 %v2216
    %v2637 = vpop.f32.mrb[0].mxu0
    %v2638 = vadd.f32 0.0, %v2637
    %v2639 = vpop.f32.mrb[0].mxu0
    %2640 = vmatprep.mubr.f32.mxu0 0.0
    %2641 = vmatmul.mubr.f32.gmra.mrb[0].mxu0 %v2219
    %v2642 = vpop.f32.mrb[0].mxu0
    %v2643 = vadd.f32 0.0, %v2642
    %v2644 = vpop.f32.mrb[0].mxu0
    %2645 = vdwg.mxu0
    %s2646 = scalar_lea.vmem %s45, 32
    %v2647 = vld [vmem:[%s2646] sm:$0xf]
    %v2648 = vld [vmem:[%s2646 + $0x4] sm:$0xf]
    %v2649 = vld [vmem:[%s2646 + $0x8] sm:$0xf]
    %v2650 = vld [vmem:[%s2646 + $0xc] sm:$0x7]
    %v2651 = vpack.c.bf16 %v2633, %v2628
    %v2652 = vpack.c.bf16 %v2643, %v2638
    %v2657 = vunpack.c.l.b16 %v2647
    %v2658 = vunpack.c.l.b16 %v2648
    %v2659 = vunpack.c.l.b16 %v2649
    %v2660 = vunpack.c.l.b16 %v2650
    %v2661 = vpack.c.b16 %v2658, %v2657
    %v2662 = vpack.c.b16 %v2660, %v2659
    %v2664 = vsel %vm2139, %v2661, 0
    %v2667 = vsel %vm2139, %v2662, 0
    %v2670 = vsel %vm2146, %v2652, 0
    %2672 = vmatprep.subr.bf16.mxu0 0
    %2673 = vmatpush1.bf16.msra.mxu0 %v2651
    %2674 = vmatprep.subr.bf16.mxu0 0
    %2675 = vmatpush1.bf16.msra.mxu0 %v2670
    %2676 = vmatprep.subr.bf16.mxu0 0
    %2677 = vmatpush1.bf16.msra.mxu0 0
    %2678 = vmatprep.subr.bf16.mxu0 0
    %2679 = vmatpush1.bf16.msra.mxu0 0
    %2680 = vmatprep.subr.bf16.mxu0 0
    %2681 = vmatpush1.bf16.msra.mxu0 0
    %2682 = vmatprep.subr.bf16.mxu0 0
    %2683 = vmatpush1.bf16.msra.mxu0 0
    %2684 = vmatprep.subr.bf16.mxu0 0
    %2685 = vmatpush1.bf16.msra.mxu0 0
    %2686 = vmatprep.subr.bf16.mxu0 0
    %2687 = vmatpush1.bf16.msra.mxu0 0
    %2688 = vmatprep.subr.bf16.mxu0 0
    %2689 = vmatpush1.bf16.msra.mxu0 0
    %2690 = vmatprep.subr.bf16.mxu0 0
    %2691 = vmatpush1.bf16.msra.mxu0 0
    %2692 = vmatprep.subr.bf16.mxu0 0
    %2693 = vmatpush1.bf16.msra.mxu0 0
    %2694 = vmatprep.subr.bf16.mxu0 0
    %2695 = vmatpush1.bf16.msra.mxu0 0
    %2696 = vmatprep.subr.bf16.mxu0 0
    %2697 = vmatpush1.bf16.msra.mxu0 0
    %2698 = vmatprep.subr.bf16.mxu0 0
    %2699 = vmatpush1.bf16.msra.mxu0 0
    %2700 = vmatprep.subr.bf16.mxu0 0
    %2701 = vmatpush1.bf16.msra.mxu0 0
    %2702 = vmatprep.subr.bf16.mxu0 0
    %2703 = vmatpush1.bf16.msra.mxu0 0
    %2704 = vmatprep.mubr.bf16.mxu0 0
    %2705 = vmatmul.mubr.bf16.gmra.mrb[0].mxu0 %v2664
    %v2706 = vpop.f32.mrb[0].mxu0
    %v2707 = vadd.f32 0.0, %v2706
    %v2708 = vpop.f32.mrb[0].mxu0
    %v2709 = vpop.f32.mrb[0].mxu0
    %v2710 = vadd.f32 0.0, %v2709
    %v2711 = vpop.f32.mrb[0].mxu0
    %2712 = vmatprep.mubr.bf16.mxu0 0
    %2713 = vmatmul.mubr.bf16.gmra.mrb[0].mxu0 %v2667
    %v2714 = vpop.f32.mrb[0].mxu0
    %v2715 = vadd.f32 0.0, %v2714
    %v2716 = vpop.f32.mrb[0].mxu0
    %v2717 = vpop.f32.mrb[0].mxu0
    %v2718 = vadd.f32 0.0, %v2717
    %v2719 = vpop.f32.mrb[0].mxu0
    %2720 = vdwg.mxu0
    %v2721 = vadd.f32 %v2538, %v2707
    %v2722 = vadd.f32 %v2541, %v2710
    %v2723 = vadd.f32 %v2546, %v2715
    %v2724 = vadd.f32 %v2549, %v2718
    %v2725 = vld [vmem:[%s47] sm:$0xff]
    %v2726 = vld [vmem:[%s47 + $0x8] sm:$0xff]
    %v2727 = vld [vmem:[%s47 + $0x10] sm:$0xff]
    %v2728 = vld [vmem:[%s47 + $0x18] sm:$0x3f]
    %2730 = vset.pattern.permute.xlu0 0
    %2731 = vperm.xlu0 %2730, %v2725
    %v2732 = vpop.permute.xlu0 %2731
    %2735 = vset.pattern.permute.xlu0 0
    %2736 = vperm.xlu0 %2735, %v2726
    %v2737 = vpop.permute.xlu0 %2736
    %2740 = vset.pattern.permute.xlu0 0
    %2741 = vperm.xlu0 %2740, %v2727
    %v2742 = vpop.permute.xlu0 %2741
    %2745 = vset.pattern.permute.xlu0 0
    %2746 = vperm.xlu0 %2745, %v2728
    %v2747 = vpop.permute.xlu0 %2746
    %v2749 = vadd.f32 %v2721, %v2732
    %v2750 = vadd.f32 %v2722, %v2737
    %v2751 = vadd.f32 %v2723, %v2742
    %v2752 = vadd.f32 %v2724, %v2747
    %v2753 = vmax.f32 %v2749, 0.0
    %v2754 = vmax.f32 %v2750, 0.0
    %v2755 = vmax.f32 %v2751, 0.0
    %v2756 = vmax.f32 %v2752, 0.0
    %v2757 = vld [vmem:[%s49] sm:$0xf]
    %v2758 = vld [vmem:[%s49 + $0x4] sm:$0xf]
    %v2759 = vld [vmem:[%s49 + $0x8] sm:$0xf]
    %v2760 = vld [vmem:[%s49 + $0xc] sm:$0xf]
    %v2761 = vld [vmem:[%s49 + $0x10] sm:$0xf]
    %v2762 = vld [vmem:[%s49 + $0x14] sm:$0x7]
    %v2763 = vpack.c.bf16 %v2754, %v2753
    %v2764 = vpack.c.bf16 %v2756, %v2755
    %v2765 = vld [vmem:[%s51] sm:$0xff]
    %v2766 = vld [vmem:[%s51 + $0x8] sm:$0xff]
    %v2767 = vld [vmem:[%s51 + $0x10] sm:$0xff]
    %v2768 = vld [vmem:[%s51 + $0x18] sm:$0xff]
    %v2769 = vld [vmem:[%s51 + $0x20] sm:$0xff]
    %v2770 = vld [vmem:[%s51 + $0x28] sm:$0x1f]
    %2772 = vset.pattern.permute.xlu0 0
    %2773 = vperm.xlu0 %2772, %v2765
    %v2774 = vpop.permute.xlu0 %2773
    %2777 = vset.pattern.permute.xlu0 0
    %2778 = vperm.xlu0 %2777, %v2766
    %v2779 = vpop.permute.xlu0 %2778
    %2782 = vset.pattern.permute.xlu0 0
    %2783 = vperm.xlu0 %2782, %v2767
    %v2784 = vpop.permute.xlu0 %2783
    %2787 = vset.pattern.permute.xlu0 0
    %2788 = vperm.xlu0 %2787, %v2768
    %v2789 = vpop.permute.xlu0 %2788
    %2792 = vset.pattern.permute.xlu0 0
    %2793 = vperm.xlu0 %2792, %v2769
    %v2794 = vpop.permute.xlu0 %2793
    %2797 = vset.pattern.permute.xlu0 0
    %2798 = vperm.xlu0 %2797, %v2770
    %v2799 = vpop.permute.xlu0 %2798
    %v2807 = vunpack.c.l.b16 %v2757
    %v2808 = vunpack.c.l.b16 %v2758
    %v2809 = vunpack.c.l.b16 %v2759
    %v2810 = vunpack.c.l.b16 %v2760
    %v2811 = vunpack.c.l.b16 %v2761
    %v2812 = vunpack.c.l.b16 %v2762
    %v2813 = vpack.c.b16 %v2808, %v2807
    %v2814 = vpack.c.b16 %v2810, %v2809
    %v2815 = vpack.c.b16 %v2812, %v2811
    %v2817 = vsel %vm2139, %v2813, 0
    %v2820 = vsel %vm2139, %v2814, 0
    %v2823 = vsel %vm2139, %v2815, 0
    %v2826 = vsel %vm2146, %v2764, 0
    %2828 = vmatprep.subr.bf16.mxu0 0
    %2829 = vmatpush1.bf16.msra.mxu0 %v2763
    %2830 = vmatprep.subr.bf16.mxu0 0
    %2831 = vmatpush1.bf16.msra.mxu0 %v2826
    %2832 = vmatprep.subr.bf16.mxu0 0
    %2833 = vmatpush1.bf16.msra.mxu0 0
    %2834 = vmatprep.subr.bf16.mxu0 0
    %2835 = vmatpush1.bf16.msra.mxu0 0
    %2836 = vmatprep.subr.bf16.mxu0 0
    %2837 = vmatpush1.bf16.msra.mxu0 0
    %2838 = vmatprep.subr.bf16.mxu0 0
    %2839 = vmatpush1.bf16.msra.mxu0 0
    %2840 = vmatprep.subr.bf16.mxu0 0
    %2841 = vmatpush1.bf16.msra.mxu0 0
    %2842 = vmatprep.subr.bf16.mxu0 0
    %2843 = vmatpush1.bf16.msra.mxu0 0
    %2844 = vmatprep.subr.bf16.mxu0 0
    %2845 = vmatpush1.bf16.msra.mxu0 0
    %2846 = vmatprep.subr.bf16.mxu0 0
    %2847 = vmatpush1.bf16.msra.mxu0 0
    %2848 = vmatprep.subr.bf16.mxu0 0
    %2849 = vmatpush1.bf16.msra.mxu0 0
    %2850 = vmatprep.subr.bf16.mxu0 0
    %2851 = vmatpush1.bf16.msra.mxu0 0
    %2852 = vmatprep.subr.bf16.mxu0 0
    %2853 = vmatpush1.bf16.msra.mxu0 0
    %2854 = vmatprep.subr.bf16.mxu0 0
    %2855 = vmatpush1.bf16.msra.mxu0 0
    %2856 = vmatprep.subr.bf16.mxu0 0
    %2857 = vmatpush1.bf16.msra.mxu0 0
    %2858 = vmatprep.subr.bf16.mxu0 0
    %2859 = vmatpush1.bf16.msra.mxu0 0
    %2860 = vmatprep.mubr.bf16.mxu0 0
    %2861 = vmatmul.mubr.bf16.gmra.mrb[0].mxu0 %v2817
    %v2862 = vpop.f32.mrb[0].mxu0
    %v2863 = vadd.f32 %v2774, %v2862
    %v2864 = vpop.f32.mrb[0].mxu0
    %v2865 = vpop.f32.mrb[0].mxu0
    %v2866 = vadd.f32 %v2779, %v2865
    %v2867 = vpop.f32.mrb[0].mxu0
    %2868 = vmatprep.mubr.bf16.mxu0 0
    %2869 = vmatmul.mubr.bf16.gmra.mrb[0].mxu0 %v2820
    %v2870 = vpop.f32.mrb[0].mxu0
    %v2871 = vadd.f32 %v2784, %v2870
    %v2872 = vpop.f32.mrb[0].mxu0
    %v2873 = vpop.f32.mrb[0].mxu0
    %v2874 = vadd.f32 %v2789, %v2873
    %v2875 = vpop.f32.mrb[0].mxu0
    %2876 = vmatprep.mubr.bf16.mxu0 0
    %2877 = vmatmul.mubr.bf16.gmra.mrb[0].mxu0 %v2823
    %v2878 = vpop.f32.mrb[0].mxu0
    %v2879 = vadd.f32 %v2794, %v2878
    %v2880 = vpop.f32.mrb[0].mxu0
    %v2881 = vpop.f32.mrb[0].mxu0
    %v2882 = vadd.f32 %v2799, %v2881
    %v2883 = vpop.f32.mrb[0].mxu0
    %2884 = vdwg.mxu0
    %v2886 = vsel %vm2208, %v2095, 0
    %v2889 = vsel %vm2208, %v2096, 0
    %v2892 = vsel %vm2208, %v2097, 0
    %v2895 = vsel %vm2208, %v2098, 0
    %2897 = vmatprep.subr.mxu0 0.0
    %2898 = vmatpush1.msra.mxu0 %v2316
    %2899 = vmatprep.subr.mxu0 0.0
    %2900 = vmatpush1.msra.mxu0 %v2317
    %2901 = vmatprep.subr.mxu0 0.0
    %2902 = vmatpush1.msra.mxu0 %v2318
    %2903 = vmatprep.subr.mxu0 0.0
    %2904 = vmatpush1.msra.mxu0 %v2319
    %2905 = vmatprep.subr.mxu0 0.0
    %2906 = vmatpush1.msra.mxu0 %v2322
    %2907 = vmatprep.subr.mxu0 0.0
    %2908 = vmatpush1.msra.mxu0 0.0
    %2909 = vmatprep.subr.mxu0 0.0
    %2910 = vmatpush1.msra.mxu0 0.0
    %2911 = vmatprep.subr.mxu0 0.0
    %2912 = vmatpush1.msra.mxu0 0.0
    %2913 = vmatprep.subr.mxu0 0.0
    %2914 = vmatpush1.msra.mxu0 0.0
    %2915 = vmatprep.subr.mxu0 0.0
    %2916 = vmatpush1.msra.mxu0 0.0
    %2917 = vmatprep.subr.mxu0 0.0
    %2918 = vmatpush1.msra.mxu0 0.0
    %2919 = vmatprep.subr.mxu0 0.0
    %2920 = vmatpush1.msra.mxu0 0.0
    %2921 = vmatprep.subr.mxu0 0.0
    %2922 = vmatpush1.msra.mxu0 0.0
    %2923 = vmatprep.subr.mxu0 0.0
    %2924 = vmatpush1.msra.mxu0 0.0
    %2925 = vmatprep.subr.mxu0 0.0
    %2926 = vmatpush1.msra.mxu0 0.0
    %2927 = vmatprep.subr.mxu0 0.0
    %2928 = vmatpush1.msra.mxu0 0.0
    %2929 = vmatprep.subr.mxu0 0.0
    %2930 = vmatpush1.msra.mxu0 0.0
    %2931 = vmatprep.subr.mxu0 0.0
    %2932 = vmatpush1.msra.mxu0 0.0
    %2933 = vmatprep.subr.mxu0 0.0
    %2934 = vmatpush1.msra.mxu0 0.0
    %2935 = vmatprep.subr.mxu0 0.0
    %2936 = vmatpush1.msra.mxu0 0.0
    %2937 = vmatprep.subr.mxu0 0.0
    %2938 = vmatpush1.msra.mxu0 0.0
    %2939 = vmatprep.subr.mxu0 0.0
    %2940 = vmatpush1.msra.mxu0 0.0
    %2941 = vmatprep.subr.mxu0 0.0
    %2942 = vmatpush1.msra.mxu0 0.0
    %2943 = vmatprep.subr.mxu0 0.0
    %2944 = vmatpush1.msra.mxu0 0.0
    %2945 = vmatprep.subr.mxu0 0.0
    %2946 = vmatpush1.msra.mxu0 0.0
    %2947 = vmatprep.subr.mxu0 0.0
    %2948 = vmatpush1.msra.mxu0 0.0
    %2949 = vmatprep.subr.mxu0 0.0
    %2950 = vmatpush1.msra.mxu0 0.0
    %2951 = vmatprep.subr.mxu0 0.0
    %2952 = vmatpush1.msra.mxu0 0.0
    %2953 = vmatprep.subr.mxu0 0.0
    %2954 = vmatpush1.msra.mxu0 0.0
    %2955 = vmatprep.subr.mxu0 0.0
    %2956 = vmatpush1.msra.mxu0 0.0
    %2957 = vmatprep.subr.mxu0 0.0
    %2958 = vmatpush1.msra.mxu0 0.0
    %2959 = vmatprep.subr.mxu0 0.0
    %2960 = vmatpush1.msra.mxu0 0.0
    %2961 = vmatprep.mubr.f32.mxu0 0.0
    %2962 = vmatmul.mubr.f32.gmra.mrb[0].mxu0 %v2886
    %v2963 = vpop.f32.mrb[0].mxu0
    %v2964 = vadd.f32 0.0, %v2963
    %v2965 = vpop.f32.mrb[0].mxu0
    %2966 = vmatprep.mubr.f32.mxu0 0.0
    %2967 = vmatmul.mubr.f32.gmra.mrb[0].mxu0 %v2889
    %v2968 = vpop.f32.mrb[0].mxu0
    %v2969 = vadd.f32 0.0, %v2968
    %v2970 = vpop.f32.mrb[0].mxu0
    %2971 = vmatprep.mubr.f32.mxu0 0.0
    %2972 = vmatmul.mubr.f32.gmra.mrb[0].mxu0 %v2892
    %v2973 = vpop.f32.mrb[0].mxu0
    %v2974 = vadd.f32 0.0, %v2973
    %v2975 = vpop.f32.mrb[0].mxu0
    %2976 = vmatprep.mubr.f32.mxu0 0.0
    %2977 = vmatmul.mubr.f32.gmra.mrb[0].mxu0 %v2895
    %v2978 = vpop.f32.mrb[0].mxu0
    %v2979 = vadd.f32 0.0, %v2978
    %v2980 = vpop.f32.mrb[0].mxu0
    %2981 = vdwg.mxu0
    %v2982 = vld [vmem:[%s55] sm:$0xf]
    %v2983 = vld [vmem:[%s55 + $0x4] sm:$0xf]
    %v2984 = vld [vmem:[%s55 + $0x8] sm:$0xf]
    %v2985 = vld [vmem:[%s55 + $0xc] sm:$0xf]
    %v2986 = vld [vmem:[%s55 + $0x10] sm:$0xf]
    %v2987 = vld [vmem:[%s55 + $0x14] sm:$0x7]
    %v2988 = vpack.c.bf16 %v2969, %v2964
    %v2989 = vpack.c.bf16 %v2979, %v2974
    %v2990 = vld [vmem:[%s57] sm:$0xff]
    %v2991 = vld [vmem:[%s57 + $0x8] sm:$0xff]
    %v2992 = vld [vmem:[%s57 + $0x10] sm:$0xff]
    %v2993 = vld [vmem:[%s57 + $0x18] sm:$0xff]
    %v2994 = vld [vmem:[%s57 + $0x20] sm:$0xff]
    %v2995 = vld [vmem:[%s57 + $0x28] sm:$0x1f]
    %2997 = vset.pattern.permute.xlu0 0
    %2998 = vperm.xlu0 %2997, %v2990
    %v2999 = vpop.permute.xlu0 %2998
    %3002 = vset.pattern.permute.xlu0 0
    %3003 = vperm.xlu0 %3002, %v2991
    %v3004 = vpop.permute.xlu0 %3003
    %3007 = vset.pattern.permute.xlu0 0
    %3008 = vperm.xlu0 %3007, %v2992
    %v3009 = vpop.permute.xlu0 %3008
    %3012 = vset.pattern.permute.xlu0 0
    %3013 = vperm.xlu0 %3012, %v2993
    %v3014 = vpop.permute.xlu0 %3013
    %3017 = vset.pattern.permute.xlu0 0
    %3018 = vperm.xlu0 %3017, %v2994
    %v3019 = vpop.permute.xlu0 %3018
    %3022 = vset.pattern.permute.xlu0 0
    %3023 = vperm.xlu0 %3022, %v2995
    %v3024 = vpop.permute.xlu0 %3023
    %v3032 = vunpack.c.l.b16 %v2982
    %v3033 = vunpack.c.l.b16 %v2983
    %v3034 = vunpack.c.l.b16 %v2984
    %v3035 = vunpack.c.l.b16 %v2985
    %v3036 = vunpack.c.l.b16 %v2986
    %v3037 = vunpack.c.l.b16 %v2987
    %v3038 = vpack.c.b16 %v3033, %v3032
    %v3039 = vpack.c.b16 %v3035, %v3034
    %v3040 = vpack.c.b16 %v3037, %v3036
    %v3042 = vsel %vm2139, %v3038, 0
    %v3045 = vsel %vm2139, %v3039, 0
    %v3048 = vsel %vm2139, %v3040, 0
    %v3051 = vsel %vm2146, %v2989, 0
    %3053 = vmatprep.subr.bf16.mxu0 0
    %3054 = vmatpush1.bf16.msra.mxu0 %v2988
    %3055 = vmatprep.subr.bf16.mxu0 0
    %3056 = vmatpush1.bf16.msra.mxu0 %v3051
    %3057 = vmatprep.subr.bf16.mxu0 0
    %3058 = vmatpush1.bf16.msra.mxu0 0
    %3059 = vmatprep.subr.bf16.mxu0 0
    %3060 = vmatpush1.bf16.msra.mxu0 0
    %3061 = vmatprep.subr.bf16.mxu0 0
    %3062 = vmatpush1.bf16.msra.mxu0 0
    %3063 = vmatprep.subr.bf16.mxu0 0
    %3064 = vmatpush1.bf16.msra.mxu0 0
    %3065 = vmatprep.subr.bf16.mxu0 0
    %3066 = vmatpush1.bf16.msra.mxu0 0
    %3067 = vmatprep.subr.bf16.mxu0 0
    %3068 = vmatpush1.bf16.msra.mxu0 0
    %3069 = vmatprep.subr.bf16.mxu0 0
    %3070 = vmatpush1.bf16.msra.mxu0 0
    %3071 = vmatprep.subr.bf16.mxu0 0
    %3072 = vmatpush1.bf16.msra.mxu0 0
    %3073 = vmatprep.subr.bf16.mxu0 0
    %3074 = vmatpush1.bf16.msra.mxu0 0
    %3075 = vmatprep.subr.bf16.mxu0 0
    %3076 = vmatpush1.bf16.msra.mxu0 0
    %3077 = vmatprep.subr.bf16.mxu0 0
    %3078 = vmatpush1.bf16.msra.mxu0 0
    %3079 = vmatprep.subr.bf16.mxu0 0
    %3080 = vmatpush1.bf16.msra.mxu0 0
    %3081 = vmatprep.subr.bf16.mxu0 0
    %3082 = vmatpush1.bf16.msra.mxu0 0
    %3083 = vmatprep.subr.bf16.mxu0 0
    %3084 = vmatpush1.bf16.msra.mxu0 0
    %3085 = vmatprep.mubr.bf16.mxu0 0
    %3086 = vmatmul.mubr.bf16.gmra.mrb[0].mxu0 %v3042
    %v3087 = vpop.f32.mrb[0].mxu0
    %v3088 = vadd.f32 %v2999, %v3087
    %v3089 = vpop.f32.mrb[0].mxu0
    %v3090 = vpop.f32.mrb[0].mxu0
    %v3091 = vadd.f32 %v3004, %v3090
    %v3092 = vpop.f32.mrb[0].mxu0
    %3093 = vmatprep.mubr.bf16.mxu0 0
    %3094 = vmatmul.mubr.bf16.gmra.mrb[0].mxu0 %v3045
    %v3095 = vpop.f32.mrb[0].mxu0
    %v3096 = vadd.f32 %v3009, %v3095
    %v3097 = vpop.f32.mrb[0].mxu0
    %v3098 = vpop.f32.mrb[0].mxu0
    %v3099 = vadd.f32 %v3014, %v3098
    %v3100 = vpop.f32.mrb[0].mxu0
    %3101 = vmatprep.mubr.bf16.mxu0 0
    %3102 = vmatmul.mubr.bf16.gmra.mrb[0].mxu0 %v3048
    %v3103 = vpop.f32.mrb[0].mxu0
    %v3104 = vadd.f32 %v3019, %v3103
    %v3105 = vpop.f32.mrb[0].mxu0
    %v3106 = vpop.f32.mrb[0].mxu0
    %v3107 = vadd.f32 %v3024, %v3106
    %v3108 = vpop.f32.mrb[0].mxu0
    %3109 = vdwg.mxu0
    %v3110 = vadd.f32 %v2863, %v3088
    %v3111 = vadd.f32 %v2866, %v3091
    %v3112 = vadd.f32 %v2871, %v3096
    %v3113 = vadd.f32 %v2874, %v3099
    %v3114 = vadd.f32 %v2879, %v3104
    %v3115 = vadd.f32 %v2882, %v3107
    %v3116 = vmax.f32 %v3110, 0.0
    %v3117 = vmax.f32 %v3111, 0.0
    %v3118 = vmax.f32 %v3112, 0.0
    %v3119 = vmax.f32 %v3113, 0.0
    %v3120 = vmax.f32 %v3114, 0.0
    %v3121 = vmax.f32 %v3115, 0.0
    %v3122 = vld [vmem:[%s59] sm:$0xf]
    %v3123 = vld [vmem:[%s59 + $0x4] sm:$0xf]
    %v3124 = vld [vmem:[%s59 + $0x8] sm:$0xf]
    %v3125 = vld [vmem:[%s59 + $0xc] sm:$0xf]
    %v3126 = vld [vmem:[%s59 + $0x10] sm:$0xf]
    %v3127 = vld [vmem:[%s59 + $0x14] sm:$0x7]
    %v3128 = vpack.c.bf16 %v3117, %v3116
    %v3129 = vpack.c.bf16 %v3119, %v3118
    %v3130 = vpack.c.bf16 %v3121, %v3120
    %v3131 = vld [vmem:[%s61] sm:$0xff]
    %v3132 = vld [vmem:[%s61 + $0x8] sm:$0xff]
    %v3133 = vld [vmem:[%s61 + $0x10] sm:$0xff]
    %v3134 = vld [vmem:[%s61 + $0x18] sm:$0xff]
    %v3135 = vld [vmem:[%s61 + $0x20] sm:$0xff]
    %v3136 = vld [vmem:[%s61 + $0x28] sm:$0x1f]
    %3138 = vset.pattern.permute.xlu0 0
    %3139 = vperm.xlu0 %3138, %v3131
    %v3140 = vpop.permute.xlu0 %3139
    %3143 = vset.pattern.permute.xlu0 0
    %3144 = vperm.xlu0 %3143, %v3132
    %v3145 = vpop.permute.xlu0 %3144
    %3148 = vset.pattern.permute.xlu0 0
    %3149 = vperm.xlu0 %3148, %v3133
    %v3150 = vpop.permute.xlu0 %3149
    %3153 = vset.pattern.permute.xlu0 0
    %3154 = vperm.xlu0 %3153, %v3134
    %v3155 = vpop.permute.xlu0 %3154
    %3158 = vset.pattern.permute.xlu0 0
    %3159 = vperm.xlu0 %3158, %v3135
    %v3160 = vpop.permute.xlu0 %3159
    %3163 = vset.pattern.permute.xlu0 0
    %3164 = vperm.xlu0 %3163, %v3136
    %v3165 = vpop.permute.xlu0 %3164
    %v3173 = vunpack.c.l.b16 %v3122
    %v3174 = vunpack.c.l.b16 %v3123
    %v3175 = vunpack.c.l.b16 %v3124
    %v3176 = vunpack.c.l.b16 %v3125
    %v3177 = vunpack.c.l.b16 %v3126
    %v3178 = vunpack.c.l.b16 %v3127
    %v3179 = vpack.c.b16 %v3174, %v3173
    %v3180 = vpack.c.b16 %v3176, %v3175
    %v3181 = vpack.c.b16 %v3178, %v3177
    %vm3182 = vcmask 367616
    %v3184 = vsel %vm3182, %v3179, 0
    %v3187 = vsel %vm3182, %v3180, 0
    %v3190 = vsel %vm3182, %v3181, 0
    %vm3192 = vcmask 1045504
    %v3193 = vsel %vm3192, 4294967295, 65535
    %v3194 = vsel %vm2146, %v3193, 0
    %v3196 = vand.u32 %v3130, %v3194
    %3198 = vmatprep.subr.bf16.mxu0 0
    %3199 = vmatpush1.bf16.msra.mxu0 %v3128
    %3200 = vmatprep.subr.bf16.mxu0 0
    %3201 = vmatpush1.bf16.msra.mxu0 %v3129
    %3202 = vmatprep.subr.bf16.mxu0 0
    %3203 = vmatpush1.bf16.msra.mxu0 %v3196
    %3204 = vmatprep.subr.bf16.mxu0 0
    %3205 = vmatpush1.bf16.msra.mxu0 0
    %3206 = vmatprep.subr.bf16.mxu0 0
    %3207 = vmatpush1.bf16.msra.mxu0 0
    %3208 = vmatprep.subr.bf16.mxu0 0
    %3209 = vmatpush1.bf16.msra.mxu0 0
    %3210 = vmatprep.subr.bf16.mxu0 0
    %3211 = vmatpush1.bf16.msra.mxu0 0
    %3212 = vmatprep.subr.bf16.mxu0 0
    %3213 = vmatpush1.bf16.msra.mxu0 0
    %3214 = vmatprep.subr.bf16.mxu0 0
    %3215 = vmatpush1.bf16.msra.mxu0 0
    %3216 = vmatprep.subr.bf16.mxu0 0
    %3217 = vmatpush1.bf16.msra.mxu0 0
    %3218 = vmatprep.subr.bf16.mxu0 0
    %3219 = vmatpush1.bf16.msra.mxu0 0
    %3220 = vmatprep.subr.bf16.mxu0 0
    %3221 = vmatpush1.bf16.msra.mxu0 0
    %3222 = vmatprep.subr.bf16.mxu0 0
    %3223 = vmatpush1.bf16.msra.mxu0 0
    %3224 = vmatprep.subr.bf16.mxu0 0
    %3225 = vmatpush1.bf16.msra.mxu0 0
    %3226 = vmatprep.subr.bf16.mxu0 0
    %3227 = vmatpush1.bf16.msra.mxu0 0
    %3228 = vmatprep.subr.bf16.mxu0 0
    %3229 = vmatpush1.bf16.msra.mxu0 0
    %3230 = vmatprep.mubr.bf16.mxu0 0
    %3231 = vmatmul.mubr.bf16.gmra.mrb[0].mxu0 %v3184
    %v3232 = vpop.f32.mrb[0].mxu0
    %v3233 = vadd.f32 %v3140, %v3232
    %v3234 = vpop.f32.mrb[0].mxu0
    %v3235 = vpop.f32.mrb[0].mxu0
    %v3236 = vadd.f32 %v3145, %v3235
    %v3237 = vpop.f32.mrb[0].mxu0
    %3238 = vmatprep.mubr.bf16.mxu0 0
    %3239 = vmatmul.mubr.bf16.gmra.mrb[0].mxu0 %v3187
    %v3240 = vpop.f32.mrb[0].mxu0
    %v3241 = vadd.f32 %v3150, %v3240
    %v3242 = vpop.f32.mrb[0].mxu0
    %v3243 = vpop.f32.mrb[0].mxu0
    %v3244 = vadd.f32 %v3155, %v3243
    %v3245 = vpop.f32.mrb[0].mxu0
    %3246 = vmatprep.mubr.bf16.mxu0 0
    %3247 = vmatmul.mubr.bf16.gmra.mrb[0].mxu0 %v3190
    %v3248 = vpop.f32.mrb[0].mxu0
    %v3249 = vadd.f32 %v3160, %v3248
    %v3250 = vpop.f32.mrb[0].mxu0
    %v3251 = vpop.f32.mrb[0].mxu0
    %v3252 = vadd.f32 %v3165, %v3251
    %v3253 = vpop.f32.mrb[0].mxu0
    %3254 = vdwg.mxu0
    %v3255 = vmax.f32 %v3233, 0.0
    %v3256 = vmax.f32 %v3236, 0.0
    %v3257 = vmax.f32 %v3241, 0.0
    %v3258 = vmax.f32 %v3244, 0.0
    %v3259 = vmax.f32 %v3249, 0.0
    %v3260 = vmax.f32 %v3252, 0.0
    %v3261 = vld [vmem:[%s71] sm:$0xff]
    %v3262 = vld [vmem:[%s71 + $0x8] sm:$0xff]
    %v3263 = vld [vmem:[%s71 + $0x10] sm:$0x3]
    %vm3264 = vcmask 146432
    %v3266 = vsel %vm3264, %v3255, 0
    %v3269 = vsel %vm3264, %v3256, 0
    %v3272 = vsel %vm3264, %v3257, 0
    %v3275 = vsel %vm3264, %v3258, 0
    %v3278 = vsel %vm3264, %v3259, 0
    %v3281 = vsel %vm3264, %v3260, 0
    %v3284 = vsel %vm223, %v3263, 0
    %3286 = vmatprep.subr.mxu0 0.0
    %3287 = vmatpush1.msra.mxu0 %v3261
    %3288 = vmatprep.subr.mxu0 0.0
    %3289 = vmatpush1.msra.mxu0 %v3262
    %3290 = vmatprep.subr.mxu0 0.0
    %3291 = vmatpush1.msra.mxu0 %v3284
    %3292 = vmatprep.subr.mxu0 0.0
    %3293 = vmatpush1.msra.mxu0 0.0
    %3294 = vmatprep.subr.mxu0 0.0
    %3295 = vmatpush1.msra.mxu0 0.0
    %3296 = vmatprep.subr.mxu0 0.0
    %3297 = vmatpush1.msra.mxu0 0.0
    %3298 = vmatprep.subr.mxu0 0.0
    %3299 = vmatpush1.msra.mxu0 0.0
    %3300 = vmatprep.subr.mxu0 0.0
    %3301 = vmatpush1.msra.mxu0 0.0
    %3302 = vmatprep.subr.mxu0 0.0
    %3303 = vmatpush1.msra.mxu0 0.0
    %3304 = vmatprep.subr.mxu0 0.0
    %3305 = vmatpush1.msra.mxu0 0.0
    %3306 = vmatprep.subr.mxu0 0.0
    %3307 = vmatpush1.msra.mxu0 0.0
    %3308 = vmatprep.subr.mxu0 0.0
    %3309 = vmatpush1.msra.mxu0 0.0
    %3310 = vmatprep.subr.mxu0 0.0
    %3311 = vmatpush1.msra.mxu0 0.0
    %3312 = vmatprep.subr.mxu0 0.0
    %3313 = vmatpush1.msra.mxu0 0.0
    %3314 = vmatprep.subr.mxu0 0.0
    %3315 = vmatpush1.msra.mxu0 0.0
    %3316 = vmatprep.subr.mxu0 0.0
    %3317 = vmatpush1.msra.mxu0 0.0
    %3318 = vmatprep.subr.mxu0 0.0
    %3319 = vmatpush1.msra.mxu0 0.0
    %3320 = vmatprep.subr.mxu0 0.0
    %3321 = vmatpush1.msra.mxu0 0.0
    %3322 = vmatprep.subr.mxu0 0.0
    %3323 = vmatpush1.msra.mxu0 0.0
    %3324 = vmatprep.subr.mxu0 0.0
    %3325 = vmatpush1.msra.mxu0 0.0
    %3326 = vmatprep.subr.mxu0 0.0
    %3327 = vmatpush1.msra.mxu0 0.0
    %3328 = vmatprep.subr.mxu0 0.0
    %3329 = vmatpush1.msra.mxu0 0.0
    %3330 = vmatprep.subr.mxu0 0.0
    %3331 = vmatpush1.msra.mxu0 0.0
    %3332 = vmatprep.subr.mxu0 0.0
    %3333 = vmatpush1.msra.mxu0 0.0
    %3334 = vmatprep.subr.mxu0 0.0
    %3335 = vmatpush1.msra.mxu0 0.0
    %3336 = vmatprep.subr.mxu0 0.0
    %3337 = vmatpush1.msra.mxu0 0.0
    %3338 = vmatprep.subr.mxu0 0.0
    %3339 = vmatpush1.msra.mxu0 0.0
    %3340 = vmatprep.subr.mxu0 0.0
    %3341 = vmatpush1.msra.mxu0 0.0
    %3342 = vmatprep.subr.mxu0 0.0
    %3343 = vmatpush1.msra.mxu0 0.0
    %3344 = vmatprep.subr.mxu0 0.0
    %3345 = vmatpush1.msra.mxu0 0.0
    %3346 = vmatprep.subr.mxu0 0.0
    %3347 = vmatpush1.msra.mxu0 0.0
    %3348 = vmatprep.subr.mxu0 0.0
    %3349 = vmatpush1.msra.mxu0 0.0
    %3350 = vmatprep.mubr.f32.mxu0 0.0
    %3351 = vmatmul.mubr.f32.gmra.mrb[0].mxu0 %v3266
    %v3352 = vpop.f32.mrb[0].mxu0
    %v3353 = vadd.f32 0.0, %v3352
    %v3354 = vpop.f32.mrb[0].mxu0
    %3355 = vmatprep.mubr.f32.mxu0 0.0
    %3356 = vmatmul.mubr.f32.gmra.mrb[0].mxu0 %v3269
    %v3357 = vpop.f32.mrb[0].mxu0
    %v3358 = vadd.f32 0.0, %v3357
    %v3359 = vpop.f32.mrb[0].mxu0
    %3360 = vmatprep.mubr.f32.mxu0 0.0
    %3361 = vmatmul.mubr.f32.gmra.mrb[0].mxu0 %v3272
    %v3362 = vpop.f32.mrb[0].mxu0
    %v3363 = vadd.f32 0.0, %v3362
    %v3364 = vpop.f32.mrb[0].mxu0
    %3365 = vmatprep.mubr.f32.mxu0 0.0
    %3366 = vmatmul.mubr.f32.gmra.mrb[0].mxu0 %v3275
    %v3367 = vpop.f32.mrb[0].mxu0
    %v3368 = vadd.f32 0.0, %v3367
    %v3369 = vpop.f32.mrb[0].mxu0
    %3370 = vmatprep.mubr.f32.mxu0 0.0
    %3371 = vmatmul.mubr.f32.gmra.mrb[0].mxu0 %v3278
    %v3372 = vpop.f32.mrb[0].mxu0
    %v3373 = vadd.f32 0.0, %v3372
    %v3374 = vpop.f32.mrb[0].mxu0
    %3375 = vmatprep.mubr.f32.mxu0 0.0
    %3376 = vmatmul.mubr.f32.gmra.mrb[0].mxu0 %v3281
    %v3377 = vpop.f32.mrb[0].mxu0
    %v3378 = vadd.f32 0.0, %v3377
    %v3379 = vpop.f32.mrb[0].mxu0
    %3380 = vdwg.mxu0
    %v3381 = vld [vmem:[%s63] sm:$0xf]
    %v3382 = vld [vmem:[%s63 + $0x4] sm:$0xf]
    %v3383 = vld [vmem:[%s63 + $0x8] sm:$0xf]
    %v3384 = vld [vmem:[%s63 + $0xc] sm:$0xf]
    %v3385 = vld [vmem:[%s63 + $0x10] sm:$0xf]
    %v3386 = vld [vmem:[%s63 + $0x14] sm:$0x7]
    %v3387 = vpack.c.bf16 %v3358, %v3353
    %v3388 = vpack.c.bf16 %v3368, %v3363
    %v3389 = vpack.c.bf16 %v3378, %v3373
    %s3390 = scalar_lea.vmem %s71, 24
    %v3391 = vld [vmem:[%s3390] sm:$0xff]
    %v3392 = vld [vmem:[%s3390 + $0x8] sm:$0xff]
    %v3393 = vld [vmem:[%s3390 + $0x10] sm:$0x3]
    %v3395 = vsel %vm223, %v3393, 0
    %3397 = vmatprep.subr.mxu0 0.0
    %3398 = vmatpush1.msra.mxu0 %v3391
    %3399 = vmatprep.subr.mxu0 0.0
    %3400 = vmatpush1.msra.mxu0 %v3392
    %3401 = vmatprep.subr.mxu0 0.0
    %3402 = vmatpush1.msra.mxu0 %v3395
    %3403 = vmatprep.subr.mxu0 0.0
    %3404 = vmatpush1.msra.mxu0 0.0
    %3405 = vmatprep.subr.mxu0 0.0
    %3406 = vmatpush1.msra.mxu0 0.0
    %3407 = vmatprep.subr.mxu0 0.0
    %3408 = vmatpush1.msra.mxu0 0.0
    %3409 = vmatprep.subr.mxu0 0.0
    %3410 = vmatpush1.msra.mxu0 0.0
    %3411 = vmatprep.subr.mxu0 0.0
    %3412 = vmatpush1.msra.mxu0 0.0
    %3413 = vmatprep.subr.mxu0 0.0
    %3414 = vmatpush1.msra.mxu0 0.0
    %3415 = vmatprep.subr.mxu0 0.0
    %3416 = vmatpush1.msra.mxu0 0.0
    %3417 = vmatprep.subr.mxu0 0.0
    %3418 = vmatpush1.msra.mxu0 0.0
    %3419 = vmatprep.subr.mxu0 0.0
    %3420 = vmatpush1.msra.mxu0 0.0
    %3421 = vmatprep.subr.mxu0 0.0
    %3422 = vmatpush1.msra.mxu0 0.0
    %3423 = vmatprep.subr.mxu0 0.0
    %3424 = vmatpush1.msra.mxu0 0.0
    %3425 = vmatprep.subr.mxu0 0.0
    %3426 = vmatpush1.msra.mxu0 0.0
    %3427 = vmatprep.subr.mxu0 0.0
    %3428 = vmatpush1.msra.mxu0 0.0
    %3429 = vmatprep.subr.mxu0 0.0
    %3430 = vmatpush1.msra.mxu0 0.0
    %3431 = vmatprep.subr.mxu0 0.0
    %3432 = vmatpush1.msra.mxu0 0.0
    %3433 = vmatprep.subr.mxu0 0.0
    %3434 = vmatpush1.msra.mxu0 0.0
    %3435 = vmatprep.subr.mxu0 0.0
    %3436 = vmatpush1.msra.mxu0 0.0
    %3437 = vmatprep.subr.mxu0 0.0
    %3438 = vmatpush1.msra.mxu0 0.0
    %3439 = vmatprep.subr.mxu0 0.0
    %3440 = vmatpush1.msra.mxu0 0.0
    %3441 = vmatprep.subr.mxu0 0.0
    %3442 = vmatpush1.msra.mxu0 0.0
    %3443 = vmatprep.subr.mxu0 0.0
    %3444 = vmatpush1.msra.mxu0 0.0
    %3445 = vmatprep.subr.mxu0 0.0
    %3446 = vmatpush1.msra.mxu0 0.0
    %3447 = vmatprep.subr.mxu0 0.0
    %3448 = vmatpush1.msra.mxu0 0.0
    %3449 = vmatprep.subr.mxu0 0.0
    %3450 = vmatpush1.msra.mxu0 0.0
    %3451 = vmatprep.subr.mxu0 0.0
    %3452 = vmatpush1.msra.mxu0 0.0
    %3453 = vmatprep.subr.mxu0 0.0
    %3454 = vmatpush1.msra.mxu0 0.0
    %3455 = vmatprep.subr.mxu0 0.0
    %3456 = vmatpush1.msra.mxu0 0.0
    %3457 = vmatprep.subr.mxu0 0.0
    %3458 = vmatpush1.msra.mxu0 0.0
    %3459 = vmatprep.subr.mxu0 0.0
    %3460 = vmatpush1.msra.mxu0 0.0
    %3461 = vmatprep.mubr.f32.mxu0 0.0
    %3462 = vmatmul.mubr.f32.gmra.mrb[0].mxu0 %v3266
    %v3463 = vpop.f32.mrb[0].mxu0
    %v3464 = vadd.f32 0.0, %v3463
    %v3465 = vpop.f32.mrb[0].mxu0
    %3466 = vmatprep.mubr.f32.mxu0 0.0
    %3467 = vmatmul.mubr.f32.gmra.mrb[0].mxu0 %v3269
    %v3468 = vpop.f32.mrb[0].mxu0
    %v3469 = vadd.f32 0.0, %v3468
    %v3470 = vpop.f32.mrb[0].mxu0
    %3471 = vmatprep.mubr.f32.mxu0 0.0
    %3472 = vmatmul.mubr.f32.gmra.mrb[0].mxu0 %v3272
    %v3473 = vpop.f32.mrb[0].mxu0
    %v3474 = vadd.f32 0.0, %v3473
    %v3475 = vpop.f32.mrb[0].mxu0
    %3476 = vmatprep.mubr.f32.mxu0 0.0
    %3477 = vmatmul.mubr.f32.gmra.mrb[0].mxu0 %v3275
    %v3478 = vpop.f32.mrb[0].mxu0
    %v3479 = vadd.f32 0.0, %v3478
    %v3480 = vpop.f32.mrb[0].mxu0
    %3481 = vmatprep.mubr.f32.mxu0 0.0
    %3482 = vmatmul.mubr.f32.gmra.mrb[0].mxu0 %v3278
    %v3483 = vpop.f32.mrb[0].mxu0
    %v3484 = vadd.f32 0.0, %v3483
    %v3485 = vpop.f32.mrb[0].mxu0
    %3486 = vmatprep.mubr.f32.mxu0 0.0
    %3487 = vmatmul.mubr.f32.gmra.mrb[0].mxu0 %v3281
    %v3488 = vpop.f32.mrb[0].mxu0
    %v3489 = vadd.f32 0.0, %v3488
    %v3490 = vpop.f32.mrb[0].mxu0
    %3491 = vdwg.mxu0
    %s3492 = scalar_lea.vmem %s63, 24
    %v3493 = vld [vmem:[%s3492] sm:$0xf]
    %v3494 = vld [vmem:[%s3492 + $0x4] sm:$0xf]
    %v3495 = vld [vmem:[%s3492 + $0x8] sm:$0xf]
    %v3496 = vld [vmem:[%s3492 + $0xc] sm:$0xf]
    %v3497 = vld [vmem:[%s3492 + $0x10] sm:$0xf]
    %v3498 = vld [vmem:[%s3492 + $0x14] sm:$0x7]
    %v3499 = vpack.c.bf16 %v3469, %v3464
    %v3500 = vpack.c.bf16 %v3479, %v3474
    %v3501 = vpack.c.bf16 %v3489, %v3484
    %v3508 = vunpack.c.l.b16 %v3493
    %v3509 = vunpack.c.l.b16 %v3494
    %v3510 = vunpack.c.l.b16 %v3495
    %v3511 = vunpack.c.l.b16 %v3496
    %v3512 = vunpack.c.l.b16 %v3497
    %v3513 = vunpack.c.l.b16 %v3498
    %v3514 = vpack.c.b16 %v3509, %v3508
    %v3515 = vpack.c.b16 %v3511, %v3510
    %v3516 = vpack.c.b16 %v3513, %v3512
    %v3518 = vsel %vm3182, %v3514, 0
    %v3521 = vsel %vm3182, %v3515, 0
    %v3524 = vsel %vm3182, %v3516, 0
    %v3527 = vand.u32 %v3501, %v3194
    %3529 = vmatprep.subr.bf16.mxu0 0
    %3530 = vmatpush1.bf16.msra.mxu0 %v3499
    %3531 = vmatprep.subr.bf16.mxu0 0
    %3532 = vmatpush1.bf16.msra.mxu0 %v3500
    %3533 = vmatprep.subr.bf16.mxu0 0
    %3534 = vmatpush1.bf16.msra.mxu0 %v3527
    %3535 = vmatprep.subr.bf16.mxu0 0
    %3536 = vmatpush1.bf16.msra.mxu0 0
    %3537 = vmatprep.subr.bf16.mxu0 0
    %3538 = vmatpush1.bf16.msra.mxu0 0
    %3539 = vmatprep.subr.bf16.mxu0 0
    %3540 = vmatpush1.bf16.msra.mxu0 0
    %3541 = vmatprep.subr.bf16.mxu0 0
    %3542 = vmatpush1.bf16.msra.mxu0 0
    %3543 = vmatprep.subr.bf16.mxu0 0
    %3544 = vmatpush1.bf16.msra.mxu0 0
    %3545 = vmatprep.subr.bf16.mxu0 0
    %3546 = vmatpush1.bf16.msra.mxu0 0
    %3547 = vmatprep.subr.bf16.mxu0 0
    %3548 = vmatpush1.bf16.msra.mxu0 0
    %3549 = vmatprep.subr.bf16.mxu0 0
    %3550 = vmatpush1.bf16.msra.mxu0 0
    %3551 = vmatprep.subr.bf16.mxu0 0
    %3552 = vmatpush1.bf16.msra.mxu0 0
    %3553 = vmatprep.subr.bf16.mxu0 0
    %3554 = vmatpush1.bf16.msra.mxu0 0
    %3555 = vmatprep.subr.bf16.mxu0 0
    %3556 = vmatpush1.bf16.msra.mxu0 0
    %3557 = vmatprep.subr.bf16.mxu0 0
    %3558 = vmatpush1.bf16.msra.mxu0 0
    %3559 = vmatprep.subr.bf16.mxu0 0
    %3560 = vmatpush1.bf16.msra.mxu0 0
    %3561 = vmatprep.mubr.bf16.mxu0 0
    %3562 = vmatmul.mubr.bf16.gmra.mrb[0].mxu0 %v3518
    %v3563 = vpop.f32.mrb[0].mxu0
    %v3564 = vadd.f32 0.0, %v3563
    %v3565 = vpop.f32.mrb[0].mxu0
    %v3566 = vpop.f32.mrb[0].mxu0
    %v3567 = vadd.f32 0.0, %v3566
    %v3568 = vpop.f32.mrb[0].mxu0
    %3569 = vmatprep.mubr.bf16.mxu0 0
    %3570 = vmatmul.mubr.bf16.gmra.mrb[0].mxu0 %v3521
    %v3571 = vpop.f32.mrb[0].mxu0
    %v3572 = vadd.f32 0.0, %v3571
    %v3573 = vpop.f32.mrb[0].mxu0
    %v3574 = vpop.f32.mrb[0].mxu0
    %v3575 = vadd.f32 0.0, %v3574
    %v3576 = vpop.f32.mrb[0].mxu0
    %3577 = vmatprep.mubr.bf16.mxu0 0
    %3578 = vmatmul.mubr.bf16.gmra.mrb[0].mxu0 %v3524
    %v3579 = vpop.f32.mrb[0].mxu0
    %v3580 = vadd.f32 0.0, %v3579
    %v3581 = vpop.f32.mrb[0].mxu0
    %v3582 = vpop.f32.mrb[0].mxu0
    %v3583 = vadd.f32 0.0, %v3582
    %v3584 = vpop.f32.mrb[0].mxu0
    %3585 = vdwg.mxu0
    %v3592 = vunpack.c.l.b16 %v3381
    %v3593 = vunpack.c.l.b16 %v3382
    %v3594 = vunpack.c.l.b16 %v3383
    %v3595 = vunpack.c.l.b16 %v3384
    %v3596 = vunpack.c.l.b16 %v3385
    %v3597 = vunpack.c.l.b16 %v3386
    %v3598 = vpack.c.b16 %v3593, %v3592
    %v3599 = vpack.c.b16 %v3595, %v3594
    %v3600 = vpack.c.b16 %v3597, %v3596
    %v3602 = vsel %vm3182, %v3598, 0
    %v3605 = vsel %vm3182, %v3599, 0
    %v3608 = vsel %vm3182, %v3600, 0
    %v3611 = vand.u32 %v3389, %v3194
    %3613 = vmatprep.subr.bf16.mxu0 0
    %3614 = vmatpush1.bf16.msra.mxu0 %v3387
    %3615 = vmatprep.subr.bf16.mxu0 0
    %3616 = vmatpush1.bf16.msra.mxu0 %v3388
    %3617 = vmatprep.subr.bf16.mxu0 0
    %3618 = vmatpush1.bf16.msra.mxu0 %v3611
    %3619 = vmatprep.subr.bf16.mxu0 0
    %3620 = vmatpush1.bf16.msra.mxu0 0
    %3621 = vmatprep.subr.bf16.mxu0 0
    %3622 = vmatpush1.bf16.msra.mxu0 0
    %3623 = vmatprep.subr.bf16.mxu0 0
    %3624 = vmatpush1.bf16.msra.mxu0 0
    %3625 = vmatprep.subr.bf16.mxu0 0
    %3626 = vmatpush1.bf16.msra.mxu0 0
    %3627 = vmatprep.subr.bf16.mxu0 0
    %3628 = vmatpush1.bf16.msra.mxu0 0
    %3629 = vmatprep.subr.bf16.mxu0 0
    %3630 = vmatpush1.bf16.msra.mxu0 0
    %3631 = vmatprep.subr.bf16.mxu0 0
    %3632 = vmatpush1.bf16.msra.mxu0 0
    %3633 = vmatprep.subr.bf16.mxu0 0
    %3634 = vmatpush1.bf16.msra.mxu0 0
    %3635 = vmatprep.subr.bf16.mxu0 0
    %3636 = vmatpush1.bf16.msra.mxu0 0
    %3637 = vmatprep.subr.bf16.mxu0 0
    %3638 = vmatpush1.bf16.msra.mxu0 0
    %3639 = vmatprep.subr.bf16.mxu0 0
    %3640 = vmatpush1.bf16.msra.mxu0 0
    %3641 = vmatprep.subr.bf16.mxu0 0
    %3642 = vmatpush1.bf16.msra.mxu0 0
    %3643 = vmatprep.subr.bf16.mxu0 0
    %3644 = vmatpush1.bf16.msra.mxu0 0
    %3645 = vmatprep.mubr.bf16.mxu0 0
    %3646 = vmatmul.mubr.bf16.gmra.mrb[0].mxu0 %v3602
    %v3647 = vpop.f32.mrb[0].mxu0
    %v3648 = vadd.f32 %v3564, %v3647
    %v3649 = vpop.f32.mrb[0].mxu0
    %v3650 = vpop.f32.mrb[0].mxu0
    %v3651 = vadd.f32 %v3567, %v3650
    %v3652 = vpop.f32.mrb[0].mxu0
    %3653 = vmatprep.mubr.bf16.mxu0 0
    %3654 = vmatmul.mubr.bf16.gmra.mrb[0].mxu0 %v3605
    %v3655 = vpop.f32.mrb[0].mxu0
    %v3656 = vadd.f32 %v3572, %v3655
    %v3657 = vpop.f32.mrb[0].mxu0
    %v3658 = vpop.f32.mrb[0].mxu0
    %v3659 = vadd.f32 %v3575, %v3658
    %v3660 = vpop.f32.mrb[0].mxu0
    %3661 = vmatprep.mubr.bf16.mxu0 0
    %3662 = vmatmul.mubr.bf16.gmra.mrb[0].mxu0 %v3608
    %v3663 = vpop.f32.mrb[0].mxu0
    %v3664 = vadd.f32 %v3580, %v3663
    %v3665 = vpop.f32.mrb[0].mxu0
    %v3666 = vpop.f32.mrb[0].mxu0
    %v3667 = vadd.f32 %v3583, %v3666
    %v3668 = vpop.f32.mrb[0].mxu0
    %3669 = vdwg.mxu0
    %s3670 = scalar_lea.vmem %s71, 48
    %v3671 = vld [vmem:[%s3670] sm:$0xff]
    %v3672 = vld [vmem:[%s3670 + $0x8] sm:$0xff]
    %v3673 = vld [vmem:[%s3670 + $0x10] sm:$0x3]
    %v3675 = vsel %vm223, %v3673, 0
    %3677 = vmatprep.subr.mxu0 0.0
    %3678 = vmatpush1.msra.mxu0 %v3671
    %3679 = vmatprep.subr.mxu0 0.0
    %3680 = vmatpush1.msra.mxu0 %v3672
    %3681 = vmatprep.subr.mxu0 0.0
    %3682 = vmatpush1.msra.mxu0 %v3675
    %3683 = vmatprep.subr.mxu0 0.0
    %3684 = vmatpush1.msra.mxu0 0.0
    %3685 = vmatprep.subr.mxu0 0.0
    %3686 = vmatpush1.msra.mxu0 0.0
    %3687 = vmatprep.subr.mxu0 0.0
    %3688 = vmatpush1.msra.mxu0 0.0
    %3689 = vmatprep.subr.mxu0 0.0
    %3690 = vmatpush1.msra.mxu0 0.0
    %3691 = vmatprep.subr.mxu0 0.0
    %3692 = vmatpush1.msra.mxu0 0.0
    %3693 = vmatprep.subr.mxu0 0.0
    %3694 = vmatpush1.msra.mxu0 0.0
    %3695 = vmatprep.subr.mxu0 0.0
    %3696 = vmatpush1.msra.mxu0 0.0
    %3697 = vmatprep.subr.mxu0 0.0
    %3698 = vmatpush1.msra.mxu0 0.0
    %3699 = vmatprep.subr.mxu0 0.0
    %3700 = vmatpush1.msra.mxu0 0.0
    %3701 = vmatprep.subr.mxu0 0.0
    %3702 = vmatpush1.msra.mxu0 0.0
    %3703 = vmatprep.subr.mxu0 0.0
    %3704 = vmatpush1.msra.mxu0 0.0
    %3705 = vmatprep.subr.mxu0 0.0
    %3706 = vmatpush1.msra.mxu0 0.0
    %3707 = vmatprep.subr.mxu0 0.0
    %3708 = vmatpush1.msra.mxu0 0.0
    %3709 = vmatprep.subr.mxu0 0.0
    %3710 = vmatpush1.msra.mxu0 0.0
    %3711 = vmatprep.subr.mxu0 0.0
    %3712 = vmatpush1.msra.mxu0 0.0
    %3713 = vmatprep.subr.mxu0 0.0
    %3714 = vmatpush1.msra.mxu0 0.0
    %3715 = vmatprep.subr.mxu0 0.0
    %3716 = vmatpush1.msra.mxu0 0.0
    %3717 = vmatprep.subr.mxu0 0.0
    %3718 = vmatpush1.msra.mxu0 0.0
    %3719 = vmatprep.subr.mxu0 0.0
    %3720 = vmatpush1.msra.mxu0 0.0
    %3721 = vmatprep.subr.mxu0 0.0
    %3722 = vmatpush1.msra.mxu0 0.0
    %3723 = vmatprep.subr.mxu0 0.0
    %3724 = vmatpush1.msra.mxu0 0.0
    %3725 = vmatprep.subr.mxu0 0.0
    %3726 = vmatpush1.msra.mxu0 0.0
    %3727 = vmatprep.subr.mxu0 0.0
    %3728 = vmatpush1.msra.mxu0 0.0
    %3729 = vmatprep.subr.mxu0 0.0
    %3730 = vmatpush1.msra.mxu0 0.0
    %3731 = vmatprep.subr.mxu0 0.0
    %3732 = vmatpush1.msra.mxu0 0.0
    %3733 = vmatprep.subr.mxu0 0.0
    %3734 = vmatpush1.msra.mxu0 0.0
    %3735 = vmatprep.subr.mxu0 0.0
    %3736 = vmatpush1.msra.mxu0 0.0
    %3737 = vmatprep.subr.mxu0 0.0
    %3738 = vmatpush1.msra.mxu0 0.0
    %3739 = vmatprep.subr.mxu0 0.0
    %3740 = vmatpush1.msra.mxu0 0.0
    %3741 = vmatprep.mubr.f32.mxu0 0.0
    %3742 = vmatmul.mubr.f32.gmra.mrb[0].mxu0 %v3266
    %v3743 = vpop.f32.mrb[0].mxu0
    %v3744 = vadd.f32 0.0, %v3743
    %v3745 = vpop.f32.mrb[0].mxu0
    %3746 = vmatprep.mubr.f32.mxu0 0.0
    %3747 = vmatmul.mubr.f32.gmra.mrb[0].mxu0 %v3269
    %v3748 = vpop.f32.mrb[0].mxu0
    %v3749 = vadd.f32 0.0, %v3748
    %v3750 = vpop.f32.mrb[0].mxu0
    %3751 = vmatprep.mubr.f32.mxu0 0.0
    %3752 = vmatmul.mubr.f32.gmra.mrb[0].mxu0 %v3272
    %v3753 = vpop.f32.mrb[0].mxu0
    %v3754 = vadd.f32 0.0, %v3753
    %v3755 = vpop.f32.mrb[0].mxu0
    %3756 = vmatprep.mubr.f32.mxu0 0.0
    %3757 = vmatmul.mubr.f32.gmra.mrb[0].mxu0 %v3275
    %v3758 = vpop.f32.mrb[0].mxu0
    %v3759 = vadd.f32 0.0, %v3758
    %v3760 = vpop.f32.mrb[0].mxu0
    %3761 = vmatprep.mubr.f32.mxu0 0.0
    %3762 = vmatmul.mubr.f32.gmra.mrb[0].mxu0 %v3278
    %v3763 = vpop.f32.mrb[0].mxu0
    %v3764 = vadd.f32 0.0, %v3763
    %v3765 = vpop.f32.mrb[0].mxu0
    %3766 = vmatprep.mubr.f32.mxu0 0.0
    %3767 = vmatmul.mubr.f32.gmra.mrb[0].mxu0 %v3281
    %v3768 = vpop.f32.mrb[0].mxu0
    %v3769 = vadd.f32 0.0, %v3768
    %v3770 = vpop.f32.mrb[0].mxu0
    %3771 = vdwg.mxu0
    %s3772 = scalar_lea.vmem %s63, 48
    %v3773 = vld [vmem:[%s3772] sm:$0xf]
    %v3774 = vld [vmem:[%s3772 + $0x4] sm:$0xf]
    %v3775 = vld [vmem:[%s3772 + $0x8] sm:$0xf]
    %v3776 = vld [vmem:[%s3772 + $0xc] sm:$0xf]
    %v3777 = vld [vmem:[%s3772 + $0x10] sm:$0xf]
    %v3778 = vld [vmem:[%s3772 + $0x14] sm:$0x7]
    %v3779 = vpack.c.bf16 %v3749, %v3744
    %v3780 = vpack.c.bf16 %v3759, %v3754
    %v3781 = vpack.c.bf16 %v3769, %v3764
    %v3788 = vunpack.c.l.b16 %v3773
    %v3789 = vunpack.c.l.b16 %v3774
    %v3790 = vunpack.c.l.b16 %v3775
    %v3791 = vunpack.c.l.b16 %v3776
    %v3792 = vunpack.c.l.b16 %v3777
    %v3793 = vunpack.c.l.b16 %v3778
    %v3794 = vpack.c.b16 %v3789, %v3788
    %v3795 = vpack.c.b16 %v3791, %v3790
    %v3796 = vpack.c.b16 %v3793, %v3792
    %v3798 = vsel %vm3182, %v3794, 0
    %v3801 = vsel %vm3182, %v3795, 0
    %v3804 = vsel %vm3182, %v3796, 0
    %v3807 = vand.u32 %v3781, %v3194
    %3809 = vmatprep.subr.bf16.mxu0 0
    %3810 = vmatpush1.bf16.msra.mxu0 %v3779
    %3811 = vmatprep.subr.bf16.mxu0 0
    %3812 = vmatpush1.bf16.msra.mxu0 %v3780
    %3813 = vmatprep.subr.bf16.mxu0 0
    %3814 = vmatpush1.bf16.msra.mxu0 %v3807
    %3815 = vmatprep.subr.bf16.mxu0 0
    %3816 = vmatpush1.bf16.msra.mxu0 0
    %3817 = vmatprep.subr.bf16.mxu0 0
    %3818 = vmatpush1.bf16.msra.mxu0 0
    %3819 = vmatprep.subr.bf16.mxu0 0
    %3820 = vmatpush1.bf16.msra.mxu0 0
    %3821 = vmatprep.subr.bf16.mxu0 0
    %3822 = vmatpush1.bf16.msra.mxu0 0
    %3823 = vmatprep.subr.bf16.mxu0 0
    %3824 = vmatpush1.bf16.msra.mxu0 0
    %3825 = vmatprep.subr.bf16.mxu0 0
    %3826 = vmatpush1.bf16.msra.mxu0 0
    %3827 = vmatprep.subr.bf16.mxu0 0
    %3828 = vmatpush1.bf16.msra.mxu0 0
    %3829 = vmatprep.subr.bf16.mxu0 0
    %3830 = vmatpush1.bf16.msra.mxu0 0
    %3831 = vmatprep.subr.bf16.mxu0 0
    %3832 = vmatpush1.bf16.msra.mxu0 0
    %3833 = vmatprep.subr.bf16.mxu0 0
    %3834 = vmatpush1.bf16.msra.mxu0 0
    %3835 = vmatprep.subr.bf16.mxu0 0
    %3836 = vmatpush1.bf16.msra.mxu0 0
    %3837 = vmatprep.subr.bf16.mxu0 0
    %3838 = vmatpush1.bf16.msra.mxu0 0
    %3839 = vmatprep.subr.bf16.mxu0 0
    %3840 = vmatpush1.bf16.msra.mxu0 0
    %3841 = vmatprep.mubr.bf16.mxu0 0
    %3842 = vmatmul.mubr.bf16.gmra.mrb[0].mxu0 %v3798
    %v3843 = vpop.f32.mrb[0].mxu0
    %v3844 = vadd.f32 0.0, %v3843
    %v3845 = vpop.f32.mrb[0].mxu0
    %v3846 = vpop.f32.mrb[0].mxu0
    %v3847 = vadd.f32 0.0, %v3846
    %v3848 = vpop.f32.mrb[0].mxu0
    %3849 = vmatprep.mubr.bf16.mxu0 0
    %3850 = vmatmul.mubr.bf16.gmra.mrb[0].mxu0 %v3801
    %v3851 = vpop.f32.mrb[0].mxu0
    %v3852 = vadd.f32 0.0, %v3851
    %v3853 = vpop.f32.mrb[0].mxu0
    %v3854 = vpop.f32.mrb[0].mxu0
    %v3855 = vadd.f32 0.0, %v3854
    %v3856 = vpop.f32.mrb[0].mxu0
    %3857 = vmatprep.mubr.bf16.mxu0 0
    %3858 = vmatmul.mubr.bf16.gmra.mrb[0].mxu0 %v3804
    %v3859 = vpop.f32.mrb[0].mxu0
    %v3860 = vadd.f32 0.0, %v3859
    %v3861 = vpop.f32.mrb[0].mxu0
    %v3862 = vpop.f32.mrb[0].mxu0
    %v3863 = vadd.f32 0.0, %v3862
    %v3864 = vpop.f32.mrb[0].mxu0
    %3865 = vdwg.mxu0
    %v3866 = vadd.f32 %v3648, %v3844
    %v3867 = vadd.f32 %v3651, %v3847
    %v3868 = vadd.f32 %v3656, %v3852
    %v3869 = vadd.f32 %v3659, %v3855
    %v3870 = vadd.f32 %v3664, %v3860
    %v3871 = vadd.f32 %v3667, %v3863
    %v3872 = vld [vmem:[%s65] sm:$0xff]
    %v3873 = vld [vmem:[%s65 + $0x8] sm:$0xff]
    %v3874 = vld [vmem:[%s65 + $0x10] sm:$0xff]
    %v3875 = vld [vmem:[%s65 + $0x18] sm:$0xff]
    %v3876 = vld [vmem:[%s65 + $0x20] sm:$0xff]
    %v3877 = vld [vmem:[%s65 + $0x28] sm:$0x1f]
    %3879 = vset.pattern.permute.xlu0 0
    %3880 = vperm.xlu0 %3879, %v3872
    %v3881 = vpop.permute.xlu0 %3880
    %3884 = vset.pattern.permute.xlu0 0
    %3885 = vperm.xlu0 %3884, %v3873
    %v3886 = vpop.permute.xlu0 %3885
    %3889 = vset.pattern.permute.xlu0 0
    %3890 = vperm.xlu0 %3889, %v3874
    %v3891 = vpop.permute.xlu0 %3890
    %3894 = vset.pattern.permute.xlu0 0
    %3895 = vperm.xlu0 %3894, %v3875
    %v3896 = vpop.permute.xlu0 %3895
    %3899 = vset.pattern.permute.xlu0 0
    %3900 = vperm.xlu0 %3899, %v3876
    %v3901 = vpop.permute.xlu0 %3900
    %3904 = vset.pattern.permute.xlu0 0
    %3905 = vperm.xlu0 %3904, %v3877
    %v3906 = vpop.permute.xlu0 %3905
    %v3908 = vadd.f32 %v3866, %v3881
    %v3909 = vadd.f32 %v3867, %v3886
    %v3910 = vadd.f32 %v3868, %v3891
    %v3911 = vadd.f32 %v3869, %v3896
    %v3912 = vadd.f32 %v3870, %v3901
    %v3913 = vadd.f32 %v3871, %v3906
    %v3914 = vmax.f32 %v3908, 0.0
    %v3915 = vmax.f32 %v3909, 0.0
    %v3916 = vmax.f32 %v3910, 0.0
    %v3917 = vmax.f32 %v3911, 0.0
    %v3918 = vmax.f32 %v3912, 0.0
    %v3919 = vmax.f32 %v3913, 0.0
    %v3920 = vld [vmem:[%s67] sm:$0xf]
    %v3921 = vld [vmem:[%s67 + $0x4] sm:$0xf]
    %v3922 = vld [vmem:[%s67 + $0x8] sm:$0xf]
    %v3923 = vld [vmem:[%s67 + $0xc] sm:$0xf]
    %v3924 = vld [vmem:[%s67 + $0x10] sm:$0xf]
    %v3925 = vld [vmem:[%s67 + $0x14] sm:$0xf]
    %v3926 = vld [vmem:[%s67 + $0x18] sm:$0xf]
    %v3927 = vld [vmem:[%s67 + $0x1c] sm:$0xf]
    %v3928 = vld [vmem:[%s67 + $0x20] sm:$0x3]
    %v3929 = vpack.c.bf16 %v3915, %v3914
    %v3930 = vpack.c.bf16 %v3917, %v3916
    %v3931 = vpack.c.bf16 %v3919, %v3918
    %v3932 = vld [vmem:[%s69] sm:$0xff]
    %v3933 = vld [vmem:[%s69 + $0x8] sm:$0xff]
    %v3934 = vld [vmem:[%s69 + $0x10] sm:$0xff]
    %v3935 = vld [vmem:[%s69 + $0x18] sm:$0xff]
    %v3936 = vld [vmem:[%s69 + $0x20] sm:$0xff]
    %v3937 = vld [vmem:[%s69 + $0x28] sm:$0xff]
    %v3938 = vld [vmem:[%s69 + $0x30] sm:$0xff]
    %v3939 = vld [vmem:[%s69 + $0x38] sm:$0xff]
    %v3940 = vld [vmem:[%s69 + $0x40] sm:$0x7]
    %3942 = vset.pattern.permute.xlu0 0
    %3943 = vperm.xlu0 %3942, %v3932
    %v3944 = vpop.permute.xlu0 %3943
    %3947 = vset.pattern.permute.xlu0 0
    %3948 = vperm.xlu0 %3947, %v3933
    %v3949 = vpop.permute.xlu0 %3948
    %3952 = vset.pattern.permute.xlu0 0
    %3953 = vperm.xlu0 %3952, %v3934
    %v3954 = vpop.permute.xlu0 %3953
    %3957 = vset.pattern.permute.xlu0 0
    %3958 = vperm.xlu0 %3957, %v3935
    %v3959 = vpop.permute.xlu0 %3958
    %3962 = vset.pattern.permute.xlu0 0
    %3963 = vperm.xlu0 %3962, %v3936
    %v3964 = vpop.permute.xlu0 %3963
    %3967 = vset.pattern.permute.xlu0 0
    %3968 = vperm.xlu0 %3967, %v3937
    %v3969 = vpop.permute.xlu0 %3968
    %3972 = vset.pattern.permute.xlu0 0
    %3973 = vperm.xlu0 %3972, %v3938
    %v3974 = vpop.permute.xlu0 %3973
    %3977 = vset.pattern.permute.xlu0 0
    %3978 = vperm.xlu0 %3977, %v3939
    %v3979 = vpop.permute.xlu0 %3978
    %3982 = vset.pattern.permute.xlu0 0
    %3983 = vperm.xlu0 %3982, %v3940
    %v3984 = vpop.permute.xlu0 %3983
    %v3995 = vunpack.c.l.b16 %v3920
    %v3996 = vunpack.c.l.b16 %v3921
    %v3997 = vunpack.c.l.b16 %v3922
    %v3998 = vunpack.c.l.b16 %v3923
    %v3999 = vunpack.c.l.b16 %v3924
    %v4000 = vunpack.c.l.b16 %v3925
    %v4001 = vunpack.c.l.b16 %v3926
    %v4002 = vunpack.c.l.b16 %v3927
    %v4003 = vunpack.c.l.b16 %v3928
    %v4004 = vpack.c.b16 %v3996, %v3995
    %v4005 = vpack.c.b16 %v3998, %v3997
    %v4006 = vpack.c.b16 %v4000, %v3999
    %v4007 = vpack.c.b16 %v4002, %v4001
    %v4008 = vpack.c.b16 %v4003, %v4003
    %v4010 = vsel %vm3182, %v4004, 0
    %v4013 = vsel %vm3182, %v4005, 0
    %v4016 = vsel %vm3182, %v4006, 0
    %v4019 = vsel %vm3182, %v4007, 0
    %v4022 = vsel %vm3182, %v4008, 0
    %v4025 = vand.u32 %v3931, %v3194
    %4027 = vmatprep.subr.bf16.mxu0 0
    %4028 = vmatpush1.bf16.msra.mxu0 %v3929
    %4029 = vmatprep.subr.bf16.mxu0 0
    %4030 = vmatpush1.bf16.msra.mxu0 %v3930
    %4031 = vmatprep.subr.bf16.mxu0 0
    %4032 = vmatpush1.bf16.msra.mxu0 %v4025
    %4033 = vmatprep.subr.bf16.mxu0 0
    %4034 = vmatpush1.bf16.msra.mxu0 0
    %4035 = vmatprep.subr.bf16.mxu0 0
    %4036 = vmatpush1.bf16.msra.mxu0 0
    %4037 = vmatprep.subr.bf16.mxu0 0
    %4038 = vmatpush1.bf16.msra.mxu0 0
    %4039 = vmatprep.subr.bf16.mxu0 0
    %4040 = vmatpush1.bf16.msra.mxu0 0
    %4041 = vmatprep.subr.bf16.mxu0 0
    %4042 = vmatpush1.bf16.msra.mxu0 0
    %4043 = vmatprep.subr.bf16.mxu0 0
    %4044 = vmatpush1.bf16.msra.mxu0 0
    %4045 = vmatprep.subr.bf16.mxu0 0
    %4046 = vmatpush1.bf16.msra.mxu0 0
    %4047 = vmatprep.subr.bf16.mxu0 0
    %4048 = vmatpush1.bf16.msra.mxu0 0
    %4049 = vmatprep.subr.bf16.mxu0 0
    %4050 = vmatpush1.bf16.msra.mxu0 0
    %4051 = vmatprep.subr.bf16.mxu0 0
    %4052 = vmatpush1.bf16.msra.mxu0 0
    %4053 = vmatprep.subr.bf16.mxu0 0
    %4054 = vmatpush1.bf16.msra.mxu0 0
    %4055 = vmatprep.subr.bf16.mxu0 0
    %4056 = vmatpush1.bf16.msra.mxu0 0
    %4057 = vmatprep.subr.bf16.mxu0 0
    %4058 = vmatpush1.bf16.msra.mxu0 0
    %4059 = vmatprep.mubr.bf16.mxu0 0
    %4060 = vmatmul.mubr.bf16.gmra.mrb[0].mxu0 %v4010
    %v4061 = vpop.f32.mrb[0].mxu0
    %v4062 = vadd.f32 %v3944, %v4061
    %v4063 = vpop.f32.mrb[0].mxu0
    %v4064 = vpop.f32.mrb[0].mxu0
    %v4065 = vadd.f32 %v3949, %v4064
    %v4066 = vpop.f32.mrb[0].mxu0
    %4067 = vmatprep.mubr.bf16.mxu0 0
    %4068 = vmatmul.mubr.bf16.gmra.mrb[0].mxu0 %v4013
    %v4069 = vpop.f32.mrb[0].mxu0
    %v4070 = vadd.f32 %v3954, %v4069
    %v4071 = vpop.f32.mrb[0].mxu0
    %v4072 = vpop.f32.mrb[0].mxu0
    %v4073 = vadd.f32 %v3959, %v4072
    %v4074 = vpop.f32.mrb[0].mxu0
    %4075 = vmatprep.mubr.bf16.mxu0 0
    %4076 = vmatmul.mubr.bf16.gmra.mrb[0].mxu0 %v4016
    %v4077 = vpop.f32.mrb[0].mxu0
    %v4078 = vadd.f32 %v3964, %v4077
    %v4079 = vpop.f32.mrb[0].mxu0
    %v4080 = vpop.f32.mrb[0].mxu0
    %v4081 = vadd.f32 %v3969, %v4080
    %v4082 = vpop.f32.mrb[0].mxu0
    %4083 = vmatprep.mubr.bf16.mxu0 0
    %4084 = vmatmul.mubr.bf16.gmra.mrb[0].mxu0 %v4019
    %v4085 = vpop.f32.mrb[0].mxu0
    %v4086 = vadd.f32 %v3974, %v4085
    %v4087 = vpop.f32.mrb[0].mxu0
    %v4088 = vpop.f32.mrb[0].mxu0
    %v4089 = vadd.f32 %v3979, %v4088
    %v4090 = vpop.f32.mrb[0].mxu0
    %4091 = vmatprep.mubr.bf16.mxu0 0
    %4092 = vmatmul.mubr.bf16.gmra.mrb[0].mxu0 %v4022
    %v4093 = vpop.f32.mrb[0].mxu0
    %v4094 = vadd.f32 %v3984, %v4093
    %v4095 = vpop.f32.mrb[0].mxu0
    %v4096 = vpop.f32.mrb[0].mxu0
    %v4097 = vpop.f32.mrb[0].mxu0
    %4098 = vdwg.mxu0
    %v4100 = vsel %vm3264, %v3116, 0
    %v4103 = vsel %vm3264, %v3117, 0
    %v4106 = vsel %vm3264, %v3118, 0
    %v4109 = vsel %vm3264, %v3119, 0
    %v4112 = vsel %vm3264, %v3120, 0
    %v4115 = vsel %vm3264, %v3121, 0
    %4117 = vmatprep.subr.mxu0 0.0
    %4118 = vmatpush1.msra.mxu0 %v3391
    %4119 = vmatprep.subr.mxu0 0.0
    %4120 = vmatpush1.msra.mxu0 %v3392
    %4121 = vmatprep.subr.mxu0 0.0
    %4122 = vmatpush1.msra.mxu0 %v3395
    %4123 = vmatprep.subr.mxu0 0.0
    %4124 = vmatpush1.msra.mxu0 0.0
    %4125 = vmatprep.subr.mxu0 0.0
    %4126 = vmatpush1.msra.mxu0 0.0
    %4127 = vmatprep.subr.mxu0 0.0
    %4128 = vmatpush1.msra.mxu0 0.0
    %4129 = vmatprep.subr.mxu0 0.0
    %4130 = vmatpush1.msra.mxu0 0.0
    %4131 = vmatprep.subr.mxu0 0.0
    %4132 = vmatpush1.msra.mxu0 0.0
    %4133 = vmatprep.subr.mxu0 0.0
    %4134 = vmatpush1.msra.mxu0 0.0
    %4135 = vmatprep.subr.mxu0 0.0
    %4136 = vmatpush1.msra.mxu0 0.0
    %4137 = vmatprep.subr.mxu0 0.0
    %4138 = vmatpush1.msra.mxu0 0.0
    %4139 = vmatprep.subr.mxu0 0.0
    %4140 = vmatpush1.msra.mxu0 0.0
    %4141 = vmatprep.subr.mxu0 0.0
    %4142 = vmatpush1.msra.mxu0 0.0
    %4143 = vmatprep.subr.mxu0 0.0
    %4144 = vmatpush1.msra.mxu0 0.0
    %4145 = vmatprep.subr.mxu0 0.0
    %4146 = vmatpush1.msra.mxu0 0.0
    %4147 = vmatprep.subr.mxu0 0.0
    %4148 = vmatpush1.msra.mxu0 0.0
    %4149 = vmatprep.subr.mxu0 0.0
    %4150 = vmatpush1.msra.mxu0 0.0
    %4151 = vmatprep.subr.mxu0 0.0
    %4152 = vmatpush1.msra.mxu0 0.0
    %4153 = vmatprep.subr.mxu0 0.0
    %4154 = vmatpush1.msra.mxu0 0.0
    %4155 = vmatprep.subr.mxu0 0.0
    %4156 = vmatpush1.msra.mxu0 0.0
    %4157 = vmatprep.subr.mxu0 0.0
    %4158 = vmatpush1.msra.mxu0 0.0
    %4159 = vmatprep.subr.mxu0 0.0
    %4160 = vmatpush1.msra.mxu0 0.0
    %4161 = vmatprep.subr.mxu0 0.0
    %4162 = vmatpush1.msra.mxu0 0.0
    %4163 = vmatprep.subr.mxu0 0.0
    %4164 = vmatpush1.msra.mxu0 0.0
    %4165 = vmatprep.subr.mxu0 0.0
    %4166 = vmatpush1.msra.mxu0 0.0
    %4167 = vmatprep.subr.mxu0 0.0
    %4168 = vmatpush1.msra.mxu0 0.0
    %4169 = vmatprep.subr.mxu0 0.0
    %4170 = vmatpush1.msra.mxu0 0.0
    %4171 = vmatprep.subr.mxu0 0.0
    %4172 = vmatpush1.msra.mxu0 0.0
    %4173 = vmatprep.subr.mxu0 0.0
    %4174 = vmatpush1.msra.mxu0 0.0
    %4175 = vmatprep.subr.mxu0 0.0
    %4176 = vmatpush1.msra.mxu0 0.0
    %4177 = vmatprep.subr.mxu0 0.0
    %4178 = vmatpush1.msra.mxu0 0.0
    %4179 = vmatprep.subr.mxu0 0.0
    %4180 = vmatpush1.msra.mxu0 0.0
    %4181 = vmatprep.mubr.f32.mxu0 0.0
    %4182 = vmatmul.mubr.f32.gmra.mrb[0].mxu0 %v4100
    %v4183 = vpop.f32.mrb[0].mxu0
    %v4184 = vadd.f32 0.0, %v4183
    %v4185 = vpop.f32.mrb[0].mxu0
    %4186 = vmatprep.mubr.f32.mxu0 0.0
    %4187 = vmatmul.mubr.f32.gmra.mrb[0].mxu0 %v4103
    %v4188 = vpop.f32.mrb[0].mxu0
    %v4189 = vadd.f32 0.0, %v4188
    %v4190 = vpop.f32.mrb[0].mxu0
    %4191 = vmatprep.mubr.f32.mxu0 0.0
    %4192 = vmatmul.mubr.f32.gmra.mrb[0].mxu0 %v4106
    %v4193 = vpop.f32.mrb[0].mxu0
    %v4194 = vadd.f32 0.0, %v4193
    %v4195 = vpop.f32.mrb[0].mxu0
    %4196 = vmatprep.mubr.f32.mxu0 0.0
    %4197 = vmatmul.mubr.f32.gmra.mrb[0].mxu0 %v4109
    %v4198 = vpop.f32.mrb[0].mxu0
    %v4199 = vadd.f32 0.0, %v4198
    %v4200 = vpop.f32.mrb[0].mxu0
    %4201 = vmatprep.mubr.f32.mxu0 0.0
    %4202 = vmatmul.mubr.f32.gmra.mrb[0].mxu0 %v4112
    %v4203 = vpop.f32.mrb[0].mxu0
    %v4204 = vadd.f32 0.0, %v4203
    %v4205 = vpop.f32.mrb[0].mxu0
    %4206 = vmatprep.mubr.f32.mxu0 0.0
    %4207 = vmatmul.mubr.f32.gmra.mrb[0].mxu0 %v4115
    %v4208 = vpop.f32.mrb[0].mxu0
    %v4209 = vadd.f32 0.0, %v4208
    %v4210 = vpop.f32.mrb[0].mxu0
    %4211 = vdwg.mxu0
    %v4212 = vld [vmem:[%s73] sm:$0xf]
    %v4213 = vld [vmem:[%s73 + $0x4] sm:$0xf]
    %v4214 = vld [vmem:[%s73 + $0x8] sm:$0xf]
    %v4215 = vld [vmem:[%s73 + $0xc] sm:$0xf]
    %v4216 = vld [vmem:[%s73 + $0x10] sm:$0xf]
    %v4217 = vld [vmem:[%s73 + $0x14] sm:$0xf]
    %v4218 = vld [vmem:[%s73 + $0x18] sm:$0xf]
    %v4219 = vld [vmem:[%s73 + $0x1c] sm:$0xf]
    %v4220 = vld [vmem:[%s73 + $0x20] sm:$0x3]
    %v4221 = vpack.c.bf16 %v4189, %v4184
    %v4222 = vpack.c.bf16 %v4199, %v4194
    %v4223 = vpack.c.bf16 %v4209, %v4204
    %v4224 = vld [vmem:[%s75] sm:$0xff]
    %v4225 = vld [vmem:[%s75 + $0x8] sm:$0xff]
    %v4226 = vld [vmem:[%s75 + $0x10] sm:$0xff]
    %v4227 = vld [vmem:[%s75 + $0x18] sm:$0xff]
    %v4228 = vld [vmem:[%s75 + $0x20] sm:$0xff]
    %v4229 = vld [vmem:[%s75 + $0x28] sm:$0xff]
    %v4230 = vld [vmem:[%s75 + $0x30] sm:$0xff]
    %v4231 = vld [vmem:[%s75 + $0x38] sm:$0xff]
    %v4232 = vld [vmem:[%s75 + $0x40] sm:$0x7]
    %4234 = vset.pattern.permute.xlu0 0
    %4235 = vperm.xlu0 %4234, %v4224
    %v4236 = vpop.permute.xlu0 %4235
    %4239 = vset.pattern.permute.xlu0 0
    %4240 = vperm.xlu0 %4239, %v4225
    %v4241 = vpop.permute.xlu0 %4240
    %4244 = vset.pattern.permute.xlu0 0
    %4245 = vperm.xlu0 %4244, %v4226
    %v4246 = vpop.permute.xlu0 %4245
    %4249 = vset.pattern.permute.xlu0 0
    %4250 = vperm.xlu0 %4249, %v4227
    %v4251 = vpop.permute.xlu0 %4250
    %4254 = vset.pattern.permute.xlu0 0
    %4255 = vperm.xlu0 %4254, %v4228
    %v4256 = vpop.permute.xlu0 %4255
    %4259 = vset.pattern.permute.xlu0 0
    %4260 = vperm.xlu0 %4259, %v4229
    %v4261 = vpop.permute.xlu0 %4260
    %4264 = vset.pattern.permute.xlu0 0
    %4265 = vperm.xlu0 %4264, %v4230
    %v4266 = vpop.permute.xlu0 %4265
    %4269 = vset.pattern.permute.xlu0 0
    %4270 = vperm.xlu0 %4269, %v4231
    %v4271 = vpop.permute.xlu0 %4270
    %4274 = vset.pattern.permute.xlu0 0
    %4275 = vperm.xlu0 %4274, %v4232
    %v4276 = vpop.permute.xlu0 %4275
    %v4287 = vunpack.c.l.b16 %v4212
    %v4288 = vunpack.c.l.b16 %v4213
    %v4289 = vunpack.c.l.b16 %v4214
    %v4290 = vunpack.c.l.b16 %v4215
    %v4291 = vunpack.c.l.b16 %v4216
    %v4292 = vunpack.c.l.b16 %v4217
    %v4293 = vunpack.c.l.b16 %v4218
    %v4294 = vunpack.c.l.b16 %v4219
    %v4295 = vunpack.c.l.b16 %v4220
    %v4296 = vpack.c.b16 %v4288, %v4287
    %v4297 = vpack.c.b16 %v4290, %v4289
    %v4298 = vpack.c.b16 %v4292, %v4291
    %v4299 = vpack.c.b16 %v4294, %v4293
    %v4300 = vpack.c.b16 %v4295, %v4295
    %v4302 = vsel %vm3182, %v4296, 0
    %v4305 = vsel %vm3182, %v4297, 0
    %v4308 = vsel %vm3182, %v4298, 0
    %v4311 = vsel %vm3182, %v4299, 0
    %v4314 = vsel %vm3182, %v4300, 0
    %v4317 = vand.u32 %v4223, %v3194
    %4319 = vmatprep.subr.bf16.mxu0 0
    %4320 = vmatpush1.bf16.msra.mxu0 %v4221
    %4321 = vmatprep.subr.bf16.mxu0 0
    %4322 = vmatpush1.bf16.msra.mxu0 %v4222
    %4323 = vmatprep.subr.bf16.mxu0 0
    %4324 = vmatpush1.bf16.msra.mxu0 %v4317
    %4325 = vmatprep.subr.bf16.mxu0 0
    %4326 = vmatpush1.bf16.msra.mxu0 0
    %4327 = vmatprep.subr.bf16.mxu0 0
    %4328 = vmatpush1.bf16.msra.mxu0 0
    %4329 = vmatprep.subr.bf16.mxu0 0
    %4330 = vmatpush1.bf16.msra.mxu0 0
    %4331 = vmatprep.subr.bf16.mxu0 0
    %4332 = vmatpush1.bf16.msra.mxu0 0
    %4333 = vmatprep.subr.bf16.mxu0 0
    %4334 = vmatpush1.bf16.msra.mxu0 0
    %4335 = vmatprep.subr.bf16.mxu0 0
    %4336 = vmatpush1.bf16.msra.mxu0 0
    %4337 = vmatprep.subr.bf16.mxu0 0
    %4338 = vmatpush1.bf16.msra.mxu0 0
    %4339 = vmatprep.subr.bf16.mxu0 0
    %4340 = vmatpush1.bf16.msra.mxu0 0
    %4341 = vmatprep.subr.bf16.mxu0 0
    %4342 = vmatpush1.bf16.msra.mxu0 0
    %4343 = vmatprep.subr.bf16.mxu0 0
    %4344 = vmatpush1.bf16.msra.mxu0 0
    %4345 = vmatprep.subr.bf16.mxu0 0
    %4346 = vmatpush1.bf16.msra.mxu0 0
    %4347 = vmatprep.subr.bf16.mxu0 0
    %4348 = vmatpush1.bf16.msra.mxu0 0
    %4349 = vmatprep.subr.bf16.mxu0 0
    %4350 = vmatpush1.bf16.msra.mxu0 0
    %4351 = vmatprep.mubr.bf16.mxu0 0
    %4352 = vmatmul.mubr.bf16.gmra.mrb[0].mxu0 %v4302
    %v4353 = vpop.f32.mrb[0].mxu0
    %v4354 = vadd.f32 %v4236, %v4353
    %v4355 = vpop.f32.mrb[0].mxu0
    %v4356 = vpop.f32.mrb[0].mxu0
    %v4357 = vadd.f32 %v4241, %v4356
    %v4358 = vpop.f32.mrb[0].mxu0
    %4359 = vmatprep.mubr.bf16.mxu0 0
    %4360 = vmatmul.mubr.bf16.gmra.mrb[0].mxu0 %v4305
    %v4361 = vpop.f32.mrb[0].mxu0
    %v4362 = vadd.f32 %v4246, %v4361
    %v4363 = vpop.f32.mrb[0].mxu0
    %v4364 = vpop.f32.mrb[0].mxu0
    %v4365 = vadd.f32 %v4251, %v4364
    %v4366 = vpop.f32.mrb[0].mxu0
    %4367 = vmatprep.mubr.bf16.mxu0 0
    %4368 = vmatmul.mubr.bf16.gmra.mrb[0].mxu0 %v4308
    %v4369 = vpop.f32.mrb[0].mxu0
    %v4370 = vadd.f32 %v4256, %v4369
    %v4371 = vpop.f32.mrb[0].mxu0
    %v4372 = vpop.f32.mrb[0].mxu0
    %v4373 = vadd.f32 %v4261, %v4372
    %v4374 = vpop.f32.mrb[0].mxu0
    %4375 = vmatprep.mubr.bf16.mxu0 0
    %4376 = vmatmul.mubr.bf16.gmra.mrb[0].mxu0 %v4311
    %v4377 = vpop.f32.mrb[0].mxu0
    %v4378 = vadd.f32 %v4266, %v4377
    %v4379 = vpop.f32.mrb[0].mxu0
    %v4380 = vpop.f32.mrb[0].mxu0
    %v4381 = vadd.f32 %v4271, %v4380
    %v4382 = vpop.f32.mrb[0].mxu0
    %4383 = vmatprep.mubr.bf16.mxu0 0
    %4384 = vmatmul.mubr.bf16.gmra.mrb[0].mxu0 %v4314
    %v4385 = vpop.f32.mrb[0].mxu0
    %v4386 = vadd.f32 %v4276, %v4385
    %v4387 = vpop.f32.mrb[0].mxu0
    %v4388 = vpop.f32.mrb[0].mxu0
    %v4389 = vpop.f32.mrb[0].mxu0
    %4390 = vdwg.mxu0
    %v4391 = vadd.f32 %v4062, %v4354
    %v4392 = vadd.f32 %v4065, %v4357
    %v4393 = vadd.f32 %v4070, %v4362
    %v4394 = vadd.f32 %v4073, %v4365
    %v4395 = vadd.f32 %v4078, %v4370
    %v4396 = vadd.f32 %v4081, %v4373
    %v4397 = vadd.f32 %v4086, %v4378
    %v4398 = vadd.f32 %v4089, %v4381
    %v4399 = vadd.f32 %v4094, %v4386
    %v4400 = vmax.f32 %v4391, 0.0
    %v4401 = vmax.f32 %v4392, 0.0
    %v4402 = vmax.f32 %v4393, 0.0
    %v4403 = vmax.f32 %v4394, 0.0
    %v4404 = vmax.f32 %v4395, 0.0
    %v4405 = vmax.f32 %v4396, 0.0
    %v4406 = vmax.f32 %v4397, 0.0
    %v4407 = vmax.f32 %v4398, 0.0
    %v4408 = vmax.f32 %v4399, 0.0
    %v4409 = vld [vmem:[%s77] sm:$0xff]
    %v4410 = vld [vmem:[%s77 + $0x8] sm:$0x3]
    %vm4411 = vcmask 80896
    %v4413 = vsel %vm4411, %v4400, 0
    %v4416 = vsel %vm4411, %v4401, 0
    %v4419 = vsel %vm4411, %v4402, 0
    %v4422 = vsel %vm4411, %v4403, 0
    %v4425 = vsel %vm4411, %v4404, 0
    %v4428 = vsel %vm4411, %v4405, 0
    %v4431 = vsel %vm4411, %v4406, 0
    %v4434 = vsel %vm4411, %v4407, 0
    %v4437 = vsel %vm4411, %v4408, 0
    %v4440 = vsel %vm223, %v4410, 0
    %4442 = vmatprep.subr.mxu0 0.0
    %4443 = vmatpush1.msra.mxu0 %v4409
    %4444 = vmatprep.subr.mxu0 0.0
    %4445 = vmatpush1.msra.mxu0 %v4440
    %4446 = vmatprep.subr.mxu0 0.0
    %4447 = vmatpush1.msra.mxu0 0.0
    %4448 = vmatprep.subr.mxu0 0.0
    %4449 = vmatpush1.msra.mxu0 0.0
    %4450 = vmatprep.subr.mxu0 0.0
    %4451 = vmatpush1.msra.mxu0 0.0
    %4452 = vmatprep.subr.mxu0 0.0
    %4453 = vmatpush1.msra.mxu0 0.0
    %4454 = vmatprep.subr.mxu0 0.0
    %4455 = vmatpush1.msra.mxu0 0.0
    %4456 = vmatprep.subr.mxu0 0.0
    %4457 = vmatpush1.msra.mxu0 0.0
    %4458 = vmatprep.subr.mxu0 0.0
    %4459 = vmatpush1.msra.mxu0 0.0
    %4460 = vmatprep.subr.mxu0 0.0
    %4461 = vmatpush1.msra.mxu0 0.0
    %4462 = vmatprep.subr.mxu0 0.0
    %4463 = vmatpush1.msra.mxu0 0.0
    %4464 = vmatprep.subr.mxu0 0.0
    %4465 = vmatpush1.msra.mxu0 0.0
    %4466 = vmatprep.subr.mxu0 0.0
    %4467 = vmatpush1.msra.mxu0 0.0
    %4468 = vmatprep.subr.mxu0 0.0
    %4469 = vmatpush1.msra.mxu0 0.0
    %4470 = vmatprep.subr.mxu0 0.0
    %4471 = vmatpush1.msra.mxu0 0.0
    %4472 = vmatprep.subr.mxu0 0.0
    %4473 = vmatpush1.msra.mxu0 0.0
    %4474 = vmatprep.subr.mxu0 0.0
    %4475 = vmatpush1.msra.mxu0 0.0
    %4476 = vmatprep.subr.mxu0 0.0
    %4477 = vmatpush1.msra.mxu0 0.0
    %4478 = vmatprep.subr.mxu0 0.0
    %4479 = vmatpush1.msra.mxu0 0.0
    %4480 = vmatprep.subr.mxu0 0.0
    %4481 = vmatpush1.msra.mxu0 0.0
    %4482 = vmatprep.subr.mxu0 0.0
    %4483 = vmatpush1.msra.mxu0 0.0
    %4484 = vmatprep.subr.mxu0 0.0
    %4485 = vmatpush1.msra.mxu0 0.0
    %4486 = vmatprep.subr.mxu0 0.0
    %4487 = vmatpush1.msra.mxu0 0.0
    %4488 = vmatprep.subr.mxu0 0.0
    %4489 = vmatpush1.msra.mxu0 0.0
    %4490 = vmatprep.subr.mxu0 0.0
    %4491 = vmatpush1.msra.mxu0 0.0
    %4492 = vmatprep.subr.mxu0 0.0
    %4493 = vmatpush1.msra.mxu0 0.0
    %4494 = vmatprep.subr.mxu0 0.0
    %4495 = vmatpush1.msra.mxu0 0.0
    %4496 = vmatprep.subr.mxu0 0.0
    %4497 = vmatpush1.msra.mxu0 0.0
    %4498 = vmatprep.subr.mxu0 0.0
    %4499 = vmatpush1.msra.mxu0 0.0
    %4500 = vmatprep.subr.mxu0 0.0
    %4501 = vmatpush1.msra.mxu0 0.0
    %4502 = vmatprep.subr.mxu0 0.0
    %4503 = vmatpush1.msra.mxu0 0.0
    %4504 = vmatprep.subr.mxu0 0.0
    %4505 = vmatpush1.msra.mxu0 0.0
    %4506 = vmatprep.mubr.f32.mxu0 0.0
    %4507 = vmatmul.mubr.f32.gmra.mrb[0].mxu0 %v4413
    %v4508 = vpop.f32.mrb[0].mxu0
    %v4509 = vadd.f32 0.0, %v4508
    %v4510 = vpop.f32.mrb[0].mxu0
    %4511 = vmatprep.mubr.f32.mxu0 0.0
    %4512 = vmatmul.mubr.f32.gmra.mrb[0].mxu0 %v4416
    %v4513 = vpop.f32.mrb[0].mxu0
    %v4514 = vadd.f32 0.0, %v4513
    %v4515 = vpop.f32.mrb[0].mxu0
    %4516 = vmatprep.mubr.f32.mxu0 0.0
    %4517 = vmatmul.mubr.f32.gmra.mrb[0].mxu0 %v4419
    %v4518 = vpop.f32.mrb[0].mxu0
    %v4519 = vadd.f32 0.0, %v4518
    %v4520 = vpop.f32.mrb[0].mxu0
    %4521 = vmatprep.mubr.f32.mxu0 0.0
    %4522 = vmatmul.mubr.f32.gmra.mrb[0].mxu0 %v4422
    %v4523 = vpop.f32.mrb[0].mxu0
    %v4524 = vadd.f32 0.0, %v4523
    %v4525 = vpop.f32.mrb[0].mxu0
    %4526 = vmatprep.mubr.f32.mxu0 0.0
    %4527 = vmatmul.mubr.f32.gmra.mrb[0].mxu0 %v4425
    %v4528 = vpop.f32.mrb[0].mxu0
    %v4529 = vadd.f32 0.0, %v4528
    %v4530 = vpop.f32.mrb[0].mxu0
    %4531 = vmatprep.mubr.f32.mxu0 0.0
    %4532 = vmatmul.mubr.f32.gmra.mrb[0].mxu0 %v4428
    %v4533 = vpop.f32.mrb[0].mxu0
    %v4534 = vadd.f32 0.0, %v4533
    %v4535 = vpop.f32.mrb[0].mxu0
    %4536 = vmatprep.mubr.f32.mxu0 0.0
    %4537 = vmatmul.mubr.f32.gmra.mrb[0].mxu0 %v4431
    %v4538 = vpop.f32.mrb[0].mxu0
    %v4539 = vadd.f32 0.0, %v4538
    %v4540 = vpop.f32.mrb[0].mxu0
    %4541 = vmatprep.mubr.f32.mxu0 0.0
    %4542 = vmatmul.mubr.f32.gmra.mrb[0].mxu0 %v4434
    %v4543 = vpop.f32.mrb[0].mxu0
    %v4544 = vadd.f32 0.0, %v4543
    %v4545 = vpop.f32.mrb[0].mxu0
    %4546 = vmatprep.mubr.f32.mxu0 0.0
    %4547 = vmatmul.mubr.f32.gmra.mrb[0].mxu0 %v4437
    %v4548 = vpop.f32.mrb[0].mxu0
    %v4549 = vadd.f32 0.0, %v4548
    %v4550 = vpop.f32.mrb[0].mxu0
    %4551 = vdwg.mxu0
    %v4552 = vld [vmem:[%s79] sm:$0xff]
    %v4553 = vld [vmem:[%s79 + $0x8] sm:$0xff]
    %v4554 = vld [vmem:[%s79 + $0x10] sm:$0xff]
    %v4555 = vld [vmem:[%s79 + $0x18] sm:$0xff]
    %v4556 = vld [vmem:[%s79 + $0x20] sm:$0xff]
    %v4557 = vld [vmem:[%s79 + $0x28] sm:$0xff]
    %v4558 = vld [vmem:[%s79 + $0x30] sm:$0xff]
    %v4559 = vld [vmem:[%s79 + $0x38] sm:$0xff]
    %v4560 = vld [vmem:[%s79 + $0x40] sm:$0x7]
    %4562 = vset.pattern.permute.xlu0 0
    %4563 = vperm.xlu0 %4562, %v4552
    %v4564 = vpop.permute.xlu0 %4563
    %4567 = vset.pattern.permute.xlu0 0
    %4568 = vperm.xlu0 %4567, %v4553
    %v4569 = vpop.permute.xlu0 %4568
    %4572 = vset.pattern.permute.xlu0 0
    %4573 = vperm.xlu0 %4572, %v4554
    %v4574 = vpop.permute.xlu0 %4573
    %4577 = vset.pattern.permute.xlu0 0
    %4578 = vperm.xlu0 %4577, %v4555
    %v4579 = vpop.permute.xlu0 %4578
    %4582 = vset.pattern.permute.xlu0 0
    %4583 = vperm.xlu0 %4582, %v4556
    %v4584 = vpop.permute.xlu0 %4583
    %4587 = vset.pattern.permute.xlu0 0
    %4588 = vperm.xlu0 %4587, %v4557
    %v4589 = vpop.permute.xlu0 %4588
    %4592 = vset.pattern.permute.xlu0 0
    %4593 = vperm.xlu0 %4592, %v4558
    %v4594 = vpop.permute.xlu0 %4593
    %4597 = vset.pattern.permute.xlu0 0
    %4598 = vperm.xlu0 %4597, %v4559
    %v4599 = vpop.permute.xlu0 %4598
    %4602 = vset.pattern.permute.xlu0 0
    %4603 = vperm.xlu0 %4602, %v4560
    %v4604 = vpop.permute.xlu0 %4603
    %v4606 = vmul.f32 %v4564, %v4509
    %v4607 = vmul.f32 %v4569, %v4514
    %v4608 = vmul.f32 %v4574, %v4519
    %v4609 = vmul.f32 %v4579, %v4524
    %v4610 = vmul.f32 %v4584, %v4529
    %v4611 = vmul.f32 %v4589, %v4534
    %v4612 = vmul.f32 %v4594, %v4539
    %v4613 = vmul.f32 %v4599, %v4544
    %v4614 = vmul.f32 %v4604, %v4549
    %vm4615 = vcmask 15360
    %v4616 = vsel %vm4615, %v4606, 0.0
    %v4617 = vsel %vm4615, %v4607, 0.0
    %v4618 = vadd.f32 %v4616, %v4617
    %v4619 = vsel %vm4615, %v4608, 0.0
    %v4620 = vadd.f32 %v4618, %v4619
    %v4621 = vsel %vm4615, %v4609, 0.0
    %v4622 = vadd.f32 %v4620, %v4621
    %v4623 = vsel %vm4615, %v4610, 0.0
    %v4624 = vadd.f32 %v4622, %v4623
    %v4625 = vsel %vm4615, %v4611, 0.0
    %v4626 = vadd.f32 %v4624, %v4625
    %v4627 = vsel %vm4615, %v4612, 0.0
    %v4628 = vadd.f32 %v4626, %v4627
    %v4629 = vsel %vm4615, %v4613, 0.0
    %v4630 = vadd.f32 %v4628, %v4629
    %vm4631 = vcmask 10240
    %v4632 = vsel %vm4631, %v4614, 0.0
    %v4633 = vadd.f32 %v4630, %v4632
    %v4634 = vrot.slane %v4633, 4
    %v4635 = vadd.f32 %v4633, %v4634
    %v4636 = vrot.slane %v4635, 2
    %v4637 = vadd.f32 %v4635, %v4636
    %v4638 = vrot.slane %v4637, 1
    %v4639 = vadd.f32 %v4637, %v4638
    %v4640 = vld [vmem:[#allocation2] sm:$0x1]
    %4642 = vset.pattern.permute.xlu0 0
    %4643 = vperm.xlu0 %4642, %v4640
    %v4644 = vpop.permute.xlu0 %4643
    %v4646 = vlaneseq
    %v4647 = vshrl.u32 %v4646, 7
    %v4648 = vsub.s32 0, %v4647
    %v4649 = vrot.slane %v4644, %v4648
    %v4650 = vadd.f32 %v4639, %v4649
    %vm4651 = vcmask 8192
    %4652 = vst.msk [vmem:[#allocation3] sm:$0x1] %vm4651, %v4650
    // Predicated region
    $region166: #{squigglenet_forward.1} parent=1 // pred_check
      _
    $region167: #{squigglenet_forward.1} parent=1 // pred_check_branch
      %4654 = sbr.rel (0) target = $region169
    $region168: #{squigglenet_forward.1} parent=1 // pred_region
      %s4656 = ssub.s32 16, 16
      %4657 = vsyncadd [#allocation4], %s4656
      %s4659 = sshll.u32 [#allocation3], 4
      %s4660 = int_to_ptr.vmem [resolvable:$true] %s4659
      %4662 = dma.vmem_to_hbm [thread:$0]  %s4660, 16, %s83, [#allocation4]
    $region169: #{squigglenet_forward.1} parent=1 // pred_fallthru
      _
    // Predicated region
    $region170: #{squigglenet_forward.1} parent=1 // pred_check
      _
    $region171: #{squigglenet_forward.1} parent=1 // pred_check_branch
      %4664 = sbr.rel (0) target = $region173
    $region172: #{squigglenet_forward.1} parent=1 // pred_region
      %4665 = dma.done [#allocation4], 16
    $region173: #{squigglenet_forward.1} parent=1 // pred_fallthru
      _
    %4666 = vsyncpa [#allocation4], 1

</llo_original>
